<compile_context>
chip_gen: v5e
topology: v5e:2x2
jax: 0.10.0
libtpu: 0.0.40
codegen_flags: <defaults>
</compile_context>

<pallas_src>
import numpy as np
import jax
import jax.numpy as jnp
from jax.experimental import pallas as pl
from jax.experimental.pallas import tpu as pltpu

IM_SIZE = (28, 28)
IN_BLOCKS = (1, 2, 3)
COMPARE_MODE = "subtract"  # TODO(synk): 'concatenate' compare_mode not wired (module default is 'subtract')
HID = 50
N_OUT = 2
N_OUT_PAD = 128            # lane-dense output store; real logits live in [:, :2]
LANE = 128
SUB = 8
NK1 = 8                    # K-chunks for the dominant block-1 matmul


def _round_up(x, m):
    return ((x + m - 1) // m) * m


def _block_shapes(im_size):
    size1 = [s - 10 for s in im_size]
    size2 = [int(s / 2 - 4) for s in size1]
    size3 = [s - 4 for s in size2]
    chans = {1: 60, 2: 100, 3: 200}
    spatial = {1: tuple(size1), 2: tuple(size2), 3: tuple(size3)}
    flat = {1: chans[1] * int(np.prod(size1)),
            2: chans[2] * int(np.prod(size2)),
            3: chans[3] * int(np.prod(size3))}
    return chans, spatial, flat


CHANS, SPATIAL, FLAT = _block_shapes(IM_SIZE)
# lane-aligned (zero-padded) K dims
K1P = _round_up(FLAT[1], NK1 * LANE)   # 19440 -> 19456 (divisible by NK1*128)
K2P = _round_up(FLAT[2], LANE)         # 2500  -> 2560
K3P = _round_up(FLAT[3], LANE)         # 200   -> 256
TK1 = K1P // NK1                       # 2432


# ----------------------------- Pallas kernel --------------------------------
def evaluator_kernel(f11_ref, f21_ref, f12_ref, f22_ref, f13_ref, f23_ref,
                     w1_ref, b1_ref, w2_ref, b2_ref, w3_ref, b3_ref,
                     wfa_ref, wfb_ref, wfc_ref, bf_ref, wo_ref, bo_ref,
                     out_ref, acc_ref):
    k = pl.program_id(1)

    @pl.when(k == 0)
    def _():
        acc_ref[...] = jnp.zeros_like(acc_ref)

    # block 1: subtract this K-chunk in f32 on the VPU (v5e has no bf16 VALU),
    # feed bf16 to the MXU, accumulate in f32 scratch across the K grid axis.
    d1 = (f11_ref[...].astype(jnp.float32)
          - f21_ref[...].astype(jnp.float32)).astype(jnp.bfloat16)
    acc_ref[...] += jnp.dot(d1, w1_ref[...], preferred_element_type=jnp.float32)

    @pl.when(k == pl.num_programs(1) - 1)
    def _():
        h1 = jnp.maximum(acc_ref[...] + b1_ref[...], 0.0)

        d2 = (f12_ref[...].astype(jnp.float32)
              - f22_ref[...].astype(jnp.float32)).astype(jnp.bfloat16)
        d3 = (f13_ref[...].astype(jnp.float32)
              - f23_ref[...].astype(jnp.float32)).astype(jnp.bfloat16)
        h2 = jnp.maximum(
            jnp.dot(d2, w2_ref[...], preferred_element_type=jnp.float32) + b2_ref[...], 0.0)
        h3 = jnp.maximum(
            jnp.dot(d3, w3_ref[...], preferred_element_type=jnp.float32) + b3_ref[...], 0.0)

        # Linear(150, 50): three (50,50) partial products summed == concat @ W.
        z = (jnp.dot(h1.astype(jnp.bfloat16), wfa_ref[...], preferred_element_type=jnp.float32)
             + jnp.dot(h2.astype(jnp.bfloat16), wfb_ref[...], preferred_element_type=jnp.float32)
             + jnp.dot(h3.astype(jnp.bfloat16), wfc_ref[...], preferred_element_type=jnp.float32)
             + bf_ref[...])
        h = jnp.maximum(z, 0.0)

        # lane-dense store: wo/bo are zero-padded to 128 output lanes.
        out_ref[...] = (jnp.dot(h.astype(jnp.bfloat16), wo_ref[...],
                                preferred_element_type=jnp.float32) + bo_ref[...])


# ------------------------------ host wrapper ---------------------------------
def _pad2(x, rows, cols):
    r, c = x.shape
    return jnp.pad(x, ((0, rows - r), (0, cols - c)))


def evaluator_pallas(features1, features2, params):
    # flatten NCHW -> (B, C*H*W), matching torch .view(B, -1)
    flats1 = [features1[str(i)].reshape(features1[str(i)].shape[0], -1) for i in IN_BLOCKS]
    flats2 = [features2[str(i)].reshape(features2[str(i)].shape[0], -1) for i in IN_BLOCKS]
    B = flats1[0].shape[0]

    TB = min(128, _round_up(B, SUB))       # batch tile (sublane-aligned)
    B_pad = _round_up(B, TB)
    nb = B_pad // TB

    bf16 = jnp.bfloat16
    kpads = (K1P, K2P, K3P)

    def prep(x, kp):
        return _pad2(x.astype(bf16), B_pad, kp)

    f11 = prep(flats1[0], kpads[0]); f21 = prep(flats2[0], kpads[0])
    f12 = prep(flats1[1], kpads[1]); f22 = prep(flats2[1], kpads[1])
    f13 = prep(flats1[2], kpads[2]); f23 = prep(flats2[2], kpads[2])

    # weights in bf16 (f32 accumulation in-kernel); biases stay f32.
    w1 = _pad2(params["w1"].astype(bf16), K1P, HID)
    w2 = _pad2(params["w2"].astype(bf16), K2P, HID)
    w3 = _pad2(params["w3"].astype(bf16), K3P, HID)
    wfa = params["wfa"].astype(bf16)
    wfb = params["wfb"].astype(bf16)
    wfc = params["wfc"].astype(bf16)
    wo = _pad2(params["wo"].astype(bf16), HID, N_OUT_PAD)
    bo = _pad2(params["bo"], 1, N_OUT_PAD)
    b1, b2, b3, bf = params["b1"], params["b2"], params["b3"], params["bf"]

    grid = (nb, NK1)

    def feat1_spec():
        return pl.BlockSpec((TB, TK1), lambda i, k: (i, k))

    def feat_small_spec(kp):
        return pl.BlockSpec((TB, kp), lambda i, k: (i, 0))

    def const_spec(shape):
        return pl.BlockSpec(shape, lambda i, k: (0, 0))

    in_specs = [
        feat1_spec(), feat1_spec(),                       # f11, f21 (K-chunked)
        feat_small_spec(K2P), feat_small_spec(K2P),       # f12, f22
        feat_small_spec(K3P), feat_small_spec(K3P),       # f13, f23
        pl.BlockSpec((TK1, HID), lambda i, k: (k, 0)),    # w1 K-chunks
        const_spec((1, HID)),                             # b1
        const_spec((K2P, HID)), const_spec((1, HID)),     # w2, b2
        const_spec((K3P, HID)), const_spec((1, HID)),     # w3, b3
        const_spec((HID, HID)), const_spec((HID, HID)), const_spec((HID, HID)),  # wfa/b/c
        const_spec((1, HID)),                             # bf
        const_spec((HID, N_OUT_PAD)),                     # wo (lane-padded)
        const_spec((1, N_OUT_PAD)),                       # bo (lane-padded)
    ]
    out_spec = pl.BlockSpec((TB, N_OUT_PAD), lambda i, k: (i, 0))

    out = pl.pallas_call(
        evaluator_kernel,
        out_shape=jax.ShapeDtypeStruct((B_pad, N_OUT_PAD), jnp.float32),
        grid_spec=pltpu.PrefetchScalarGridSpec(
            num_scalar_prefetch=0,
            grid=grid,
            in_specs=in_specs,
            out_specs=out_spec,
            scratch_shapes=[pltpu.VMEM((TB, HID), jnp.float32)]),
        compiler_params=pltpu.CompilerParams(
            dimension_semantics=("parallel", "arbitrary"),
            # actual footprint at TB<=128 is only a few MiB; 32 MiB leaves
            # double-buffer headroom and is valid on v5e/v6e/v7x (<= 64 MiB).
            vmem_limit_bytes=32 * 1024 * 1024),
    )(f11, f21, f12, f22, f13, f23,
      w1, b1, w2, b2, w3, b3, wfa, wfb, wfc, bf, wo, bo)

    return out[:B, :N_OUT]


# ------------------------- deterministic parameters --------------------------
def make_params(key):
    def linear(key, fan_in, fan_out):
        kw, kb = jax.random.split(key)
        bound = 1.0 / np.sqrt(fan_in)
        w = jax.random.uniform(kw, (fan_in, fan_out), jnp.float32, -bound, bound)
        b = jax.random.uniform(kb, (1, fan_out), jnp.float32, -bound, bound)
        return w, b

    keys = jax.random.split(key, 5)
    params = {}
    params["w1"], params["b1"] = linear(keys[0], FLAT[1], HID)
    params["w2"], params["b2"] = linear(keys[1], FLAT[2], HID)
    params["w3"], params["b3"] = linear(keys[2], FLAT[3], HID)
    wf, bf = linear(keys[3], HID * len(IN_BLOCKS), HID)
    params["wfa"], params["wfb"], params["wfc"] = wf[:HID], wf[HID:2 * HID], wf[2 * HID:]
    params["bf"] = bf
    params["wo"], params["bo"] = linear(keys[4], HID, N_OUT)
    return params


# ------------------------------ JAX reference --------------------------------
def evaluator_ref(features1, features2, params):
    # mirrors the kernel numerics: bf16 operands, f32 MXU accumulation.
    bf16 = jnp.bfloat16
    ws = [(params["w1"], params["b1"]),
          (params["w2"], params["b2"]),
          (params["w3"], params["b3"])]
    hs = []
    for idx, i in enumerate(IN_BLOCKS):
        f1 = features1[str(i)].reshape(features1[str(i)].shape[0], -1)
        f2 = features2[str(i)].reshape(features2[str(i)].shape[0], -1)
        d = (f1.astype(bf16).astype(jnp.float32)
             - f2.astype(bf16).astype(jnp.float32)).astype(bf16)
        w, b = ws[idx]
        hs.append(jnp.maximum(
            jnp.dot(d, w.astype(bf16), preferred_element_type=jnp.float32) + b, 0.0))
    wf = jnp.concatenate([params["wfa"], params["wfb"], params["wfc"]], axis=0).astype(bf16)
    deep = jnp.concatenate([h.astype(bf16) for h in hs], axis=1)
    h = jnp.maximum(jnp.dot(deep, wf, preferred_element_type=jnp.float32) + params["bf"], 0.0)
    return (jnp.dot(h.astype(bf16), params["wo"].astype(bf16),
                    preferred_element_type=jnp.float32) + params["bo"])


# ----------------------------------- main ------------------------------------
if __name__ == "__main__":
    key = jax.random.PRNGKey(0)
    k_param, k_data = jax.random.split(key)
    params = make_params(k_param)

    B = 2
    dkeys = jax.random.split(k_data, 2 * len(IN_BLOCKS))
    features1, features2 = {}, {}
    for n, i in enumerate(IN_BLOCKS):
        c = CHANS[i]
        h, w = SPATIAL[i]
        features1[str(i)] = jax.random.normal(dkeys[2 * n], (B, c, h, w), jnp.float32)
        features2[str(i)] = jax.random.normal(dkeys[2 * n + 1], (B, c, h, w), jnp.float32)

    logits = jax.block_until_ready(evaluator_pallas(features1, features2, params))
    ref = jax.block_until_ready(evaluator_ref(features1, features2, params))

    assert logits.shape == (B, N_OUT), logits.shape
    np.testing.assert_allclose(np.asarray(logits), np.asarray(ref),
                               rtol=5e-3, atol=5e-3)
    print("KERNEL_OK")
</pallas_src>

<mosaic_0001>
module attributes {stable_mosaic.version = 11 : i64} {
  func.func @evaluator_kernel(%arg0: i32, %arg1: i32, %arg2: memref<8x2432xbf16, #tpu.memory_space<vmem>>, %arg3: memref<8x2432xbf16, #tpu.memory_space<vmem>>, %arg4: memref<8x2560xbf16, #tpu.memory_space<vmem>>, %arg5: memref<8x2560xbf16, #tpu.memory_space<vmem>>, %arg6: memref<8x256xbf16, #tpu.memory_space<vmem>>, %arg7: memref<8x256xbf16, #tpu.memory_space<vmem>>, %arg8: memref<2432x50xbf16, #tpu.memory_space<vmem>>, %arg9: memref<1x50xf32, #tpu.memory_space<vmem>>, %arg10: memref<2560x50xbf16, #tpu.memory_space<vmem>>, %arg11: memref<1x50xf32, #tpu.memory_space<vmem>>, %arg12: memref<256x50xbf16, #tpu.memory_space<vmem>>, %arg13: memref<1x50xf32, #tpu.memory_space<vmem>>, %arg14: memref<50x50xbf16, #tpu.memory_space<vmem>>, %arg15: memref<50x50xbf16, #tpu.memory_space<vmem>>, %arg16: memref<50x50xbf16, #tpu.memory_space<vmem>>, %arg17: memref<1x50xf32, #tpu.memory_space<vmem>>, %arg18: memref<50x128xbf16, #tpu.memory_space<vmem>>, %arg19: memref<1x128xf32, #tpu.memory_space<vmem>>, %arg20: memref<8x128xf32, #tpu.memory_space<vmem>>, %arg21: memref<8x50xf32, #tpu.memory_space<vmem>>) attributes {dimension_semantics = [#tpu.dimension_semantics<parallel>, #tpu.dimension_semantics<arbitrary>], iteration_bounds = array<i64: 1, 8>, scalar_prefetch = 0 : i64, scratch_operands = 1 : i64, tpu.core_type = #tpu.core_type<tc>, window_params = [{transform_indices = @transform_0, window_bounds = array<i64: 8, 2432>}, {transform_indices = @transform_1, window_bounds = array<i64: 8, 2432>}, {transform_indices = @transform_2, window_bounds = array<i64: 8, 2560>}, {transform_indices = @transform_3, window_bounds = array<i64: 8, 2560>}, {transform_indices = @transform_4, window_bounds = array<i64: 8, 256>}, {transform_indices = @transform_5, window_bounds = array<i64: 8, 256>}, {transform_indices = @transform_6, window_bounds = array<i64: 2432, 50>}, {pipeline_mode = #tpu.pipeline_mode<synchronous>, transform_indices = @transform_7, window_bounds = array<i64: 1, 50>}, {pipeline_mode = #tpu.pipeline_mode<synchronous>, transform_indices = @transform_8, window_bounds = array<i64: 2560, 50>}, {pipeline_mode = #tpu.pipeline_mode<synchronous>, transform_indices = @transform_9, window_bounds = array<i64: 1, 50>}, {pipeline_mode = #tpu.pipeline_mode<synchronous>, transform_indices = @transform_10, window_bounds = array<i64: 256, 50>}, {pipeline_mode = #tpu.pipeline_mode<synchronous>, transform_indices = @transform_11, window_bounds = array<i64: 1, 50>}, {pipeline_mode = #tpu.pipeline_mode<synchronous>, transform_indices = @transform_12, window_bounds = array<i64: 50, 50>}, {pipeline_mode = #tpu.pipeline_mode<synchronous>, transform_indices = @transform_13, window_bounds = array<i64: 50, 50>}, {pipeline_mode = #tpu.pipeline_mode<synchronous>, transform_indices = @transform_14, window_bounds = array<i64: 50, 50>}, {pipeline_mode = #tpu.pipeline_mode<synchronous>, transform_indices = @transform_15, window_bounds = array<i64: 1, 50>}, {pipeline_mode = #tpu.pipeline_mode<synchronous>, transform_indices = @transform_16, window_bounds = array<i64: 50, 128>}, {pipeline_mode = #tpu.pipeline_mode<synchronous>, transform_indices = @transform_17, window_bounds = array<i64: 1, 128>}, {transform_indices = @transform_18, window_bounds = array<i64: 8, 128>}]} {
    %c0_i32 = arith.constant 0 : i32
    %0 = arith.cmpi eq, %arg1, %c0_i32 : i32
    %1 = arith.extui %0 : i1 to i32
    %c0_i32_0 = arith.constant 0 : i32
    %2 = arith.cmpi ne, %1, %c0_i32_0 : i32
    scf.if %2 {
      %cst_11 = arith.constant 0.000000e+00 : f32
      %17 = vector.broadcast %cst_11 : f32 to vector<8x50xf32>
      %c0_12 = arith.constant 0 : index
      %c0_13 = arith.constant 0 : index
      %18 = vector.load %arg21[%c0_12, %c0_13] : memref<8x50xf32, #tpu.memory_space<vmem>>, vector<8x50xf32>
      tpu.vector_store %arg21[%c0_12, %c0_13], %17 {strides = array<i32>} : memref<8x50xf32, #tpu.memory_space<vmem>>, vector<8x50xf32>,
    } else {
    }
    %c0 = arith.constant 0 : index
    %c0_1 = arith.constant 0 : index
    %3 = vector.load %arg2[%c0, %c0_1] : memref<8x2432xbf16, #tpu.memory_space<vmem>>, vector<8x2432xbf16>
    %4 = arith.extf %3 : vector<8x2432xbf16> to vector<8x2432xf32>
    %c0_2 = arith.constant 0 : index
    %c0_3 = arith.constant 0 : index
    %5 = vector.load %arg3[%c0_2, %c0_3] : memref<8x2432xbf16, #tpu.memory_space<vmem>>, vector<8x2432xbf16>
    %6 = arith.extf %5 : vector<8x2432xbf16> to vector<8x2432xf32>
    %7 = arith.subf %4, %6 : vector<8x2432xf32>
    %8 = arith.truncf %7 : vector<8x2432xf32> to vector<8x2432xbf16>
    %c0_4 = arith.constant 0 : index
    %c0_5 = arith.constant 0 : index
    %9 = vector.load %arg21[%c0_4, %c0_5] : memref<8x50xf32, #tpu.memory_space<vmem>>, vector<8x50xf32>
    %c0_6 = arith.constant 0 : index
    %c0_7 = arith.constant 0 : index
    %10 = vector.load %arg8[%c0_6, %c0_7] : memref<2432x50xbf16, #tpu.memory_space<vmem>>, vector<2432x50xbf16>
    %cst = arith.constant dense<0.000000e+00> : vector<8x50xf32>
    %11 = tpu.matmul %8, %10, %cst {dimension_numbers = #tpu.dot_dimension_numbers<[1], [0], [0], [1], [0, 0, 1, 1], [], []>} : vector<8x2432xbf16>, vector<2432x50xbf16>, vector<8x50xf32> -> vector<8x50xf32>
    %12 = arith.addf %9, %11 : vector<8x50xf32>
    %c0_8 = arith.constant 0 : index
    %c0_9 = arith.constant 0 : index
    %13 = vector.load %arg21[%c0_8, %c0_9] : memref<8x50xf32, #tpu.memory_space<vmem>>, vector<8x50xf32>
    tpu.vector_store %arg21[%c0_8, %c0_9], %12 {strides = array<i32>} : memref<8x50xf32, #tpu.memory_space<vmem>>, vector<8x50xf32>,
    %c7_i32 = arith.constant 7 : i32
    %14 = arith.cmpi eq, %arg1, %c7_i32 : i32
    %15 = arith.extui %14 : i1 to i32
    %c0_i32_10 = arith.constant 0 : i32
    %16 = arith.cmpi ne, %15, %c0_i32_10 : i32
    scf.if %16 {
      %c0_11 = arith.constant 0 : index
      %c0_12 = arith.constant 0 : index
      %17 = vector.load %arg21[%c0_11, %c0_12] : memref<8x50xf32, #tpu.memory_space<vmem>>, vector<8x50xf32>
      %c0_13 = arith.constant 0 : index
      %c0_14 = arith.constant 0 : index
      %18 = vector.load %arg9[%c0_13, %c0_14] : memref<1x50xf32, #tpu.memory_space<vmem>>, vector<1x50xf32>
      %19 = vector.broadcast %18 : vector<1x50xf32> to vector<8x50xf32>
      %20 = arith.addf %17, %19 : vector<8x50xf32>
      %cst_15 = arith.constant 0.000000e+00 : f32
      %21 = vector.broadcast %cst_15 : f32 to vector<8x50xf32>
      %22 = arith.maximumf %20, %21 : vector<8x50xf32>
      %c0_16 = arith.constant 0 : index
      %c0_17 = arith.constant 0 : index
      %23 = vector.load %arg4[%c0_16, %c0_17] : memref<8x2560xbf16, #tpu.memory_space<vmem>>, vector<8x2560xbf16>
      %24 = arith.extf %23 : vector<8x2560xbf16> to vector<8x2560xf32>
      %c0_18 = arith.constant 0 : index
      %c0_19 = arith.constant 0 : index
      %25 = vector.load %arg5[%c0_18, %c0_19] : memref<8x2560xbf16, #tpu.memory_space<vmem>>, vector<8x2560xbf16>
      %26 = arith.extf %25 : vector<8x2560xbf16> to vector<8x2560xf32>
      %27 = arith.subf %24, %26 : vector<8x2560xf32>
      %28 = arith.truncf %27 : vector<8x2560xf32> to vector<8x2560xbf16>
      %c0_20 = arith.constant 0 : index
      %c0_21 = arith.constant 0 : index
      %29 = vector.load %arg6[%c0_20, %c0_21] : memref<8x256xbf16, #tpu.memory_space<vmem>>, vector<8x256xbf16>
      %30 = arith.extf %29 : vector<8x256xbf16> to vector<8x256xf32>
      %c0_22 = arith.constant 0 : index
      %c0_23 = arith.constant 0 : index
      %31 = vector.load %arg7[%c0_22, %c0_23] : memref<8x256xbf16, #tpu.memory_space<vmem>>, vector<8x256xbf16>
      %32 = arith.extf %31 : vector<8x256xbf16> to vector<8x256xf32>
      %33 = arith.subf %30, %32 : vector<8x256xf32>
      %34 = arith.truncf %33 : vector<8x256xf32> to vector<8x256xbf16>
      %c0_24 = arith.constant 0 : index
      %c0_25 = arith.constant 0 : index
      %35 = vector.load %arg10[%c0_24, %c0_25] : memref<2560x50xbf16, #tpu.memory_space<vmem>>, vector<2560x50xbf16>
      %cst_26 = arith.constant dense<0.000000e+00> : vector<8x50xf32>
      %36 = tpu.matmul %28, %35, %cst_26 {dimension_numbers = #tpu.dot_dimension_numbers<[1], [0], [0], [1], [0, 0, 1, 1], [], []>} : vector<8x2560xbf16>, vector<2560x50xbf16>, vector<8x50xf32> -> vector<8x50xf32>
      %c0_27 = arith.constant 0 : index
      %c0_28 = arith.constant 0 : index
      %37 = vector.load %arg11[%c0_27, %c0_28] : memref<1x50xf32, #tpu.memory_space<vmem>>, vector<1x50xf32>
      %38 = vector.broadcast %37 : vector<1x50xf32> to vector<8x50xf32>
      %39 = arith.addf %36, %38 : vector<8x50xf32>
      %cst_29 = arith.constant 0.000000e+00 : f32
      %40 = vector.broadcast %cst_29 : f32 to vector<8x50xf32>
      %41 = arith.maximumf %39, %40 : vector<8x50xf32>
      %c0_30 = arith.constant 0 : index
      %c0_31 = arith.constant 0 : index
      %42 = vector.load %arg12[%c0_30, %c0_31] : memref<256x50xbf16, #tpu.memory_space<vmem>>, vector<256x50xbf16>
      %cst_32 = arith.constant dense<0.000000e+00> : vector<8x50xf32>
      %43 = tpu.matmul %34, %42, %cst_32 {dimension_numbers = #tpu.dot_dimension_numbers<[1], [0], [0], [1], [0, 0, 1, 1], [], []>} : vector<8x256xbf16>, vector<256x50xbf16>, vector<8x50xf32> -> vector<8x50xf32>
      %c0_33 = arith.constant 0 : index
      %c0_34 = arith.constant 0 : index
      %44 = vector.load %arg13[%c0_33, %c0_34] : memref<1x50xf32, #tpu.memory_space<vmem>>, vector<1x50xf32>
      %45 = vector.broadcast %44 : vector<1x50xf32> to vector<8x50xf32>
      %46 = arith.addf %43, %45 : vector<8x50xf32>
      %cst_35 = arith.constant 0.000000e+00 : f32
      %47 = vector.broadcast %cst_35 : f32 to vector<8x50xf32>
      %48 = arith.maximumf %46, %47 : vector<8x50xf32>
      %49 = arith.truncf %22 : vector<8x50xf32> to vector<8x50xbf16>
      %c0_36 = arith.constant 0 : index
      %c0_37 = arith.constant 0 : index
      %50 = vector.load %arg14[%c0_36, %c0_37] : memref<50x50xbf16, #tpu.memory_space<vmem>>, vector<50x50xbf16>
      %cst_38 = arith.constant dense<0.000000e+00> : vector<8x50xf32>
      %51 = tpu.matmul %49, %50, %cst_38 {dimension_numbers = #tpu.dot_dimension_numbers<[1], [0], [0], [1], [0, 0, 1, 1], [], []>} : vector<8x50xbf16>, vector<50x50xbf16>, vector<8x50xf32> -> vector<8x50xf32>
      %52 = arith.truncf %41 : vector<8x50xf32> to vector<8x50xbf16>
      %c0_39 = arith.constant 0 : index
      %c0_40 = arith.constant 0 : index
      %53 = vector.load %arg15[%c0_39, %c0_40] : memref<50x50xbf16, #tpu.memory_space<vmem>>, vector<50x50xbf16>
      %cst_41 = arith.constant dense<0.000000e+00> : vector<8x50xf32>
      %54 = tpu.matmul %52, %53, %cst_41 {dimension_numbers = #tpu.dot_dimension_numbers<[1], [0], [0], [1], [0, 0, 1, 1], [], []>} : vector<8x50xbf16>, vector<50x50xbf16>, vector<8x50xf32> -> vector<8x50xf32>
      %55 = arith.addf %51, %54 : vector<8x50xf32>
      %56 = arith.truncf %48 : vector<8x50xf32> to vector<8x50xbf16>
      %c0_42 = arith.constant 0 : index
      %c0_43 = arith.constant 0 : index
      %57 = vector.load %arg16[%c0_42, %c0_43] : memref<50x50xbf16, #tpu.memory_space<vmem>>, vector<50x50xbf16>
      %cst_44 = arith.constant dense<0.000000e+00> : vector<8x50xf32>
      %58 = tpu.matmul %56, %57, %cst_44 {dimension_numbers = #tpu.dot_dimension_numbers<[1], [0], [0], [1], [0, 0, 1, 1], [], []>} : vector<8x50xbf16>, vector<50x50xbf16>, vector<8x50xf32> -> vector<8x50xf32>
      %59 = arith.addf %55, %58 : vector<8x50xf32>
      %c0_45 = arith.constant 0 : index
      %c0_46 = arith.constant 0 : index
      %60 = vector.load %arg17[%c0_45, %c0_46] : memref<1x50xf32, #tpu.memory_space<vmem>>, vector<1x50xf32>
      %61 = vector.broadcast %60 : vector<1x50xf32> to vector<8x50xf32>
      %62 = arith.addf %59, %61 : vector<8x50xf32>
      %cst_47 = arith.constant 0.000000e+00 : f32
      %63 = vector.broadcast %cst_47 : f32 to vector<8x50xf32>
      %64 = arith.maximumf %62, %63 : vector<8x50xf32>
      %65 = arith.truncf %64 : vector<8x50xf32> to vector<8x50xbf16>
      %c0_48 = arith.constant 0 : index
      %c0_49 = arith.constant 0 : index
      %66 = vector.load %arg18[%c0_48, %c0_49] : memref<50x128xbf16, #tpu.memory_space<vmem>>, vector<50x128xbf16>
      %cst_50 = arith.constant dense<0.000000e+00> : vector<8x128xf32>
      %67 = tpu.matmul %65, %66, %cst_50 {dimension_numbers = #tpu.dot_dimension_numbers<[1], [0], [0], [1], [0, 0, 1, 1], [], []>} : vector<8x50xbf16>, vector<50x128xbf16>, vector<8x128xf32> -> vector<8x128xf32>
      %c0_51 = arith.constant 0 : index
      %c0_52 = arith.constant 0 : index
      %68 = vector.load %arg19[%c0_51, %c0_52] : memref<1x128xf32, #tpu.memory_space<vmem>>, vector<1x128xf32>
      %69 = vector.broadcast %68 : vector<1x128xf32> to vector<8x128xf32>
      %70 = arith.addf %67, %69 : vector<8x128xf32>
      %c0_53 = arith.constant 0 : index
      %c0_54 = arith.constant 0 : index
      %71 = vector.load %arg20[%c0_53, %c0_54] : memref<8x128xf32, #tpu.memory_space<vmem>>, vector<8x128xf32>
      tpu.vector_store %arg20[%c0_53, %c0_54], %70 {strides = array<i32>} : memref<8x128xf32, #tpu.memory_space<vmem>>, vector<8x128xf32>,
    } else {
    }
    return
  }
  func.func @transform_0(%arg0: i32, %arg1: i32) -> (i32, i32) {
    %c0_i32 = arith.constant 0 : i32
    return %arg0, %arg1 : i32, i32
  }
  func.func @transform_1(%arg0: i32, %arg1: i32) -> (i32, i32) {
    %c0_i32 = arith.constant 0 : i32
    return %arg0, %arg1 : i32, i32
  }
  func.func @transform_2(%arg0: i32, %arg1: i32) -> (i32, i32) {
    %c0_i32 = arith.constant 0 : i32
    %c0_i32_0 = arith.constant 0 : i32
    return %arg0, %c0_i32 : i32, i32
  }
  func.func @transform_3(%arg0: i32, %arg1: i32) -> (i32, i32) {
    %c0_i32 = arith.constant 0 : i32
    %c0_i32_0 = arith.constant 0 : i32
    return %arg0, %c0_i32 : i32, i32
  }
  func.func @transform_4(%arg0: i32, %arg1: i32) -> (i32, i32) {
    %c0_i32 = arith.constant 0 : i32
    %c0_i32_0 = arith.constant 0 : i32
    return %arg0, %c0_i32 : i32, i32
  }
  func.func @transform_5(%arg0: i32, %arg1: i32) -> (i32, i32) {
    %c0_i32 = arith.constant 0 : i32
    %c0_i32_0 = arith.constant 0 : i32
    return %arg0, %c0_i32 : i32, i32
  }
  func.func @transform_6(%arg0: i32, %arg1: i32) -> (i32, i32) {
    %c0_i32 = arith.constant 0 : i32
    %c0_i32_0 = arith.constant 0 : i32
    return %arg1, %c0_i32 : i32, i32
  }
  func.func @transform_7(%arg0: i32, %arg1: i32) -> (i32, i32) {
    %c0_i32 = arith.constant 0 : i32
    %c0_i32_0 = arith.constant 0 : i32
    %c0_i32_1 = arith.constant 0 : i32
    return %c0_i32, %c0_i32_0 : i32, i32
  }
  func.func @transform_8(%arg0: i32, %arg1: i32) -> (i32, i32) {
    %c0_i32 = arith.constant 0 : i32
    %c0_i32_0 = arith.constant 0 : i32
    %c0_i32_1 = arith.constant 0 : i32
    return %c0_i32, %c0_i32_0 : i32, i32
  }
  func.func @transform_9(%arg0: i32, %arg1: i32) -> (i32, i32) {
    %c0_i32 = arith.constant 0 : i32
    %c0_i32_0 = arith.constant 0 : i32
    %c0_i32_1 = arith.constant 0 : i32
    return %c0_i32, %c0_i32_0 : i32, i32
  }
  func.func @transform_10(%arg0: i32, %arg1: i32) -> (i32, i32) {
    %c0_i32 = arith.constant 0 : i32
    %c0_i32_0 = arith.constant 0 : i32
    %c0_i32_1 = arith.constant 0 : i32
    return %c0_i32, %c0_i32_0 : i32, i32
  }
  func.func @transform_11(%arg0: i32, %arg1: i32) -> (i32, i32) {
    %c0_i32 = arith.constant 0 : i32
    %c0_i32_0 = arith.constant 0 : i32
    %c0_i32_1 = arith.constant 0 : i32
    return %c0_i32, %c0_i32_0 : i32, i32
  }
  func.func @transform_12(%arg0: i32, %arg1: i32) -> (i32, i32) {
    %c0_i32 = arith.constant 0 : i32
    %c0_i32_0 = arith.constant 0 : i32
    %c0_i32_1 = arith.constant 0 : i32
    return %c0_i32, %c0_i32_0 : i32, i32
  }
  func.func @transform_13(%arg0: i32, %arg1: i32) -> (i32, i32) {
    %c0_i32 = arith.constant 0 : i32
    %c0_i32_0 = arith.constant 0 : i32
    %c0_i32_1 = arith.constant 0 : i32
    return %c0_i32, %c0_i32_0 : i32, i32
  }
  func.func @transform_14(%arg0: i32, %arg1: i32) -> (i32, i32) {
    %c0_i32 = arith.constant 0 : i32
    %c0_i32_0 = arith.constant 0 : i32
    %c0_i32_1 = arith.constant 0 : i32
    return %c0_i32, %c0_i32_0 : i32, i32
  }
  func.func @transform_15(%arg0: i32, %arg1: i32) -> (i32, i32) {
    %c0_i32 = arith.constant 0 : i32
    %c0_i32_0 = arith.constant 0 : i32
    %c0_i32_1 = arith.constant 0 : i32
    return %c0_i32, %c0_i32_0 : i32, i32
  }
  func.func @transform_16(%arg0: i32, %arg1: i32) -> (i32, i32) {
    %c0_i32 = arith.constant 0 : i32
    %c0_i32_0 = arith.constant 0 : i32
    %c0_i32_1 = arith.constant 0 : i32
    return %c0_i32, %c0_i32_0 : i32, i32
  }
  func.func @transform_17(%arg0: i32, %arg1: i32) -> (i32, i32) {
    %c0_i32 = arith.constant 0 : i32
    %c0_i32_0 = arith.constant 0 : i32
    %c0_i32_1 = arith.constant 0 : i32
    return %c0_i32, %c0_i32_0 : i32, i32
  }
  func.func @transform_18(%arg0: i32, %arg1: i32) -> (i32, i32) {
    %c0_i32 = arith.constant 0 : i32
    %c0_i32_0 = arith.constant 0 : i32
    return %arg0, %c0_i32 : i32, i32
  }
}

</mosaic_0001>

<llo_original>
// kernel: tpu_custom_call.1
$region0: #{tpu_custom_call.1}
  #allocation0 [shape = 'u32[]', space=smem, size = 0x4, offset = 0x4, fixed_abs, tag = 'smem constant byte address 0x4 - core index']
  #allocation1 [shape = 'u32[72,128]{1,0:T(1,128)}', space=vmem, size = 0x9000, scoped, tag = 'internal scratch']
  #allocation2 [shape = 'f32[8,50]{1,0:T(8,128)}', space=vmem, size = 0x1000, scoped, tag = 'scratch operand']
  %s0 = inlined_call_operand.vmem [shape: bf16[8,19456], index: 0, kind: input, shape index: {}]
  %s1 = inlined_call_operand.vmem [shape: bf16[8,19456], index: 1, kind: input, shape index: {}]
  %s2 = inlined_call_operand.vmem [shape: bf16[8,2560], index: 2, kind: input, shape index: {}]
  %s3 = inlined_call_operand.vmem [shape: bf16[8,2560], index: 3, kind: input, shape index: {}]
  %s4 = inlined_call_operand.vmem [shape: bf16[8,256], index: 4, kind: input, shape index: {}]
  %s5 = inlined_call_operand.vmem [shape: bf16[8,256], index: 5, kind: input, shape index: {}]
  %s6 = inlined_call_operand.vmem [shape: bf16[19456,50], index: 6, kind: input, shape index: {}]
  %s7 = inlined_call_operand.vmem [shape: f32[1,50], index: 7, kind: input, shape index: {}]
  %s8 = inlined_call_operand.vmem [shape: bf16[2560,50], index: 8, kind: input, shape index: {}]
  %s9 = inlined_call_operand.vmem [shape: f32[1,50], index: 9, kind: input, shape index: {}]
  %s10 = inlined_call_operand.vmem [shape: bf16[256,50], index: 10, kind: input, shape index: {}]
  %s11 = inlined_call_operand.vmem [shape: f32[1,50], index: 11, kind: input, shape index: {}]
  %s12 = inlined_call_operand.vmem [shape: bf16[50,50], index: 12, kind: input, shape index: {}]
  %s13 = inlined_call_operand.vmem [shape: bf16[50,50], index: 13, kind: input, shape index: {}]
  %s14 = inlined_call_operand.vmem [shape: bf16[50,50], index: 14, kind: input, shape index: {}]
  %s15 = inlined_call_operand.vmem [shape: f32[1,50], index: 15, kind: input, shape index: {}]
  %s16 = inlined_call_operand.vmem [shape: bf16[50,128], index: 16, kind: input, shape index: {}]
  %s17 = inlined_call_operand.vmem [shape: f32[1,128], index: 17, kind: input, shape index: {}]
  %s18 = inlined_call_operand.hbm [shape: f32[8,128], index: 18, kind: output, shape index: {}]
  %s19 = sld [smem:[#allocation0]]
  $region113: #{tpu_custom_call.1} parent=0
    _
  %s21 = ssub.s32 1, %s19
  %s22 = scalar_select 0, %s21, %s19
  $region1: #{tpu_custom_call.1} parent=0
    #allocation3 [shape = 'u8[4096]{0}', space=vmem, size = 0x1000, scoped, tag = 'output window, operand 0, single buffered']
    #allocation4 [shape = 's32[2]{0}', space=sflag, size = 0x8, scoped, tag = 'scoped memory for tpu_custom_call.1']
    %23 = vsyncpa [#allocation4], 0
    loop: start=0, step=1, limit=10
    $region2: #{tpu_custom_call.1} parent=1 // loop_pre_header
      _
    $region3: #{tpu_custom_call.1} parent=1 // loop_header
      %s25 = sphi 0, %s29
      %p26 = scmp.ge.s32.totalorder %s25, 10
      %s32 = sphi 0, %s44
      %s33 = sphi 0, %s40
      %s34 = sphi 0, %s32
      %s35 = sphi 0, %s33
      %s36 = sphi 0, %s34
      %s37 = sphi 0, %s35
      %s49 = sphi 0, %s51
      %s52 = sphi 0, %s49
      %s53 = sphi 0, %s52
      %s69 = sphi 0, %s53
      %s77 = sphi 0, %s79
      %s80 = sphi 0, %s77
      %s81 = sphi 0, %s80
      %s97 = sphi 0, %s81
      %s103 = sphi 0, %s105
      %s106 = sphi 0, %s103
      %s107 = sphi 0, %s106
      %s123 = sphi 0, %s107
      %s129 = sphi 0, %s131
      %s132 = sphi 0, %s129
      %s133 = sphi 0, %s132
      %s149 = sphi 0, %s133
      %s155 = sphi 0, %s157
      %s158 = sphi 0, %s155
      %s159 = sphi 0, %s158
      %s175 = sphi 0, %s159
      %s181 = sphi 0, %s183
      %s184 = sphi 0, %s181
      %s185 = sphi 0, %s184
      %s201 = sphi 0, %s185
      %s207 = sphi 0, %s209
      %s210 = sphi 0, %s207
      %s211 = sphi 0, %s210
      %s227 = sphi 0, %s211
      %s231 = sphi 0, %s231
      %s233 = sphi 0, %s231
      %s234 = sphi 0, %s233
      %s248 = sphi 0, %s234
      %s252 = sphi 0, %s252
      %s254 = sphi 0, %s252
      %s255 = sphi 0, %s254
      %s269 = sphi 0, %s255
      %s273 = sphi 0, %s273
      %s275 = sphi 0, %s273
      %s276 = sphi 0, %s275
      %s290 = sphi 0, %s276
      %s294 = sphi 0, %s294
      %s296 = sphi 0, %s294
      %s297 = sphi 0, %s296
      %s311 = sphi 0, %s297
      %s315 = sphi 0, %s315
      %s317 = sphi 0, %s315
      %s318 = sphi 0, %s317
      %s332 = sphi 0, %s318
      %s336 = sphi 0, %s336
      %s338 = sphi 0, %s336
      %s339 = sphi 0, %s338
      %s353 = sphi 0, %s339
      %s357 = sphi 0, %s357
      %s359 = sphi 0, %s357
      %s360 = sphi 0, %s359
      %s374 = sphi 0, %s360
      %s378 = sphi 0, %s378
      %s380 = sphi 0, %s378
      %s381 = sphi 0, %s380
      %s395 = sphi 0, %s381
      %s399 = sphi 0, %s399
      %s401 = sphi 0, %s399
      %s402 = sphi 0, %s401
      %s416 = sphi 0, %s402
      %s420 = sphi 0, %s420
      %s422 = sphi 0, %s420
      %s423 = sphi 0, %s422
      %s437 = sphi 0, %s423
      %s441 = sphi 0, %s441
      %s443 = sphi 0, %s441
      %s444 = sphi 0, %s443
      %s458 = sphi 0, %s444
      %s464 = sphi 0, %s466
      %s467 = sphi 0, %s464
      %s468 = sphi 0, %s467
      %s484 = sphi 0, %s468
    $region4: #{tpu_custom_call.1} parent=1 // loop_header_branch
      %28 = sbr.rel (%p26) target = $region8
    $region5: #{tpu_custom_call.1} parent=1 // loop_body
      %s30 = ssub.s32 %s25, 1
      %s31 = ssub.s32 %s25, 2
      %s38 = sadd.s32 1, %s33
      %p39 = scmp.ge.s32.totalorder %s38, 8
      %s40 = scalar_select %p39, 0, %s38
      %s41 = sadd.s32 1, %s32
      %s42 = scalar_select %p39, %s41, %s32
      %p43 = scmp.ge.s32.totalorder %s42, 1
      %s44 = scalar_select %p43, 0, %s42
      %s45 = ssub.s32 %s32, %s44
      %s46 = ssub.s32 %s33, %s40
      %s47 = sor.u32 %s45, %s46
      %p48 = scmp.eq.s32.totalorder %s47, 0
      %s50 = sadd.s32 %s49, 1
      %s51 = scalar_select %p48, %s49, %s50
      %p54 = pneg %p48
      %p55 = scmp.eq.s32.totalorder %s25, 7
      %p56 = por %p54, %p55
      %p57 = scmp.ne.s32.totalorder %s49, %s52
      %p58 = scmp.eq.s32.totalorder %s25, 0
      %p59 = por %p57, %p58
      %p60 = scmp.ne.s32.totalorder %s49, %s52
      %p61 = scmp.eq.s32.totalorder %s30, 7
      %p62 = por %p60, %p61
      %p63 = scmp.ne.s32.totalorder %s52, %s53
      %p64 = scmp.eq.s32.totalorder %s30, 0
      %p65 = por %p63, %p64
      %p66 = scmp.ne.s32.totalorder %s52, %s53
      %p67 = scmp.eq.s32.totalorder %s31, 7
      %p68 = por %p66, %p67
      %p70 = scmp.ne.s32.totalorder %s53, %s69
      %p71 = scmp.eq.s32.totalorder %s31, 0
      %p72 = por %p70, %p71
      %s73 = ssub.s32 %s32, %s44
      %s74 = ssub.s32 %s33, %s40
      %s75 = sor.u32 %s73, %s74
      %p76 = scmp.eq.s32.totalorder %s75, 0
      %s78 = sadd.s32 %s77, 1
      %s79 = scalar_select %p76, %s77, %s78
      %p82 = pneg %p76
      %p83 = scmp.eq.s32.totalorder %s25, 7
      %p84 = por %p82, %p83
      %p85 = scmp.ne.s32.totalorder %s77, %s80
      %p86 = scmp.eq.s32.totalorder %s25, 0
      %p87 = por %p85, %p86
      %p88 = scmp.ne.s32.totalorder %s77, %s80
      %p89 = scmp.eq.s32.totalorder %s30, 7
      %p90 = por %p88, %p89
      %p91 = scmp.ne.s32.totalorder %s80, %s81
      %p92 = scmp.eq.s32.totalorder %s30, 0
      %p93 = por %p91, %p92
      %p94 = scmp.ne.s32.totalorder %s80, %s81
      %p95 = scmp.eq.s32.totalorder %s31, 7
      %p96 = por %p94, %p95
      %p98 = scmp.ne.s32.totalorder %s81, %s97
      %p99 = scmp.eq.s32.totalorder %s31, 0
      %p100 = por %p98, %p99
      %s101 = ssub.s32 %s32, %s44
      %p102 = scmp.eq.s32.totalorder %s101, 0
      %s104 = sadd.s32 %s103, 1
      %s105 = scalar_select %p102, %s103, %s104
      %p108 = pneg %p102
      %p109 = scmp.eq.s32.totalorder %s25, 7
      %p110 = por %p108, %p109
      %p111 = scmp.ne.s32.totalorder %s103, %s106
      %p112 = scmp.eq.s32.totalorder %s25, 0
      %p113 = por %p111, %p112
      %p114 = scmp.ne.s32.totalorder %s103, %s106
      %p115 = scmp.eq.s32.totalorder %s30, 7
      %p116 = por %p114, %p115
      %p117 = scmp.ne.s32.totalorder %s106, %s107
      %p118 = scmp.eq.s32.totalorder %s30, 0
      %p119 = por %p117, %p118
      %p120 = scmp.ne.s32.totalorder %s106, %s107
      %p121 = scmp.eq.s32.totalorder %s31, 7
      %p122 = por %p120, %p121
      %p124 = scmp.ne.s32.totalorder %s107, %s123
      %p125 = scmp.eq.s32.totalorder %s31, 0
      %p126 = por %p124, %p125
      %s127 = ssub.s32 %s32, %s44
      %p128 = scmp.eq.s32.totalorder %s127, 0
      %s130 = sadd.s32 %s129, 1
      %s131 = scalar_select %p128, %s129, %s130
      %p134 = pneg %p128
      %p135 = scmp.eq.s32.totalorder %s25, 7
      %p136 = por %p134, %p135
      %p137 = scmp.ne.s32.totalorder %s129, %s132
      %p138 = scmp.eq.s32.totalorder %s25, 0
      %p139 = por %p137, %p138
      %p140 = scmp.ne.s32.totalorder %s129, %s132
      %p141 = scmp.eq.s32.totalorder %s30, 7
      %p142 = por %p140, %p141
      %p143 = scmp.ne.s32.totalorder %s132, %s133
      %p144 = scmp.eq.s32.totalorder %s30, 0
      %p145 = por %p143, %p144
      %p146 = scmp.ne.s32.totalorder %s132, %s133
      %p147 = scmp.eq.s32.totalorder %s31, 7
      %p148 = por %p146, %p147
      %p150 = scmp.ne.s32.totalorder %s133, %s149
      %p151 = scmp.eq.s32.totalorder %s31, 0
      %p152 = por %p150, %p151
      %s153 = ssub.s32 %s32, %s44
      %p154 = scmp.eq.s32.totalorder %s153, 0
      %s156 = sadd.s32 %s155, 1
      %s157 = scalar_select %p154, %s155, %s156
      %p160 = pneg %p154
      %p161 = scmp.eq.s32.totalorder %s25, 7
      %p162 = por %p160, %p161
      %p163 = scmp.ne.s32.totalorder %s155, %s158
      %p164 = scmp.eq.s32.totalorder %s25, 0
      %p165 = por %p163, %p164
      %p166 = scmp.ne.s32.totalorder %s155, %s158
      %p167 = scmp.eq.s32.totalorder %s30, 7
      %p168 = por %p166, %p167
      %p169 = scmp.ne.s32.totalorder %s158, %s159
      %p170 = scmp.eq.s32.totalorder %s30, 0
      %p171 = por %p169, %p170
      %p172 = scmp.ne.s32.totalorder %s158, %s159
      %p173 = scmp.eq.s32.totalorder %s31, 7
      %p174 = por %p172, %p173
      %p176 = scmp.ne.s32.totalorder %s159, %s175
      %p177 = scmp.eq.s32.totalorder %s31, 0
      %p178 = por %p176, %p177
      %s179 = ssub.s32 %s32, %s44
      %p180 = scmp.eq.s32.totalorder %s179, 0
      %s182 = sadd.s32 %s181, 1
      %s183 = scalar_select %p180, %s181, %s182
      %p186 = pneg %p180
      %p187 = scmp.eq.s32.totalorder %s25, 7
      %p188 = por %p186, %p187
      %p189 = scmp.ne.s32.totalorder %s181, %s184
      %p190 = scmp.eq.s32.totalorder %s25, 0
      %p191 = por %p189, %p190
      %p192 = scmp.ne.s32.totalorder %s181, %s184
      %p193 = scmp.eq.s32.totalorder %s30, 7
      %p194 = por %p192, %p193
      %p195 = scmp.ne.s32.totalorder %s184, %s185
      %p196 = scmp.eq.s32.totalorder %s30, 0
      %p197 = por %p195, %p196
      %p198 = scmp.ne.s32.totalorder %s184, %s185
      %p199 = scmp.eq.s32.totalorder %s31, 7
      %p200 = por %p198, %p199
      %p202 = scmp.ne.s32.totalorder %s185, %s201
      %p203 = scmp.eq.s32.totalorder %s31, 0
      %p204 = por %p202, %p203
      %s205 = ssub.s32 %s33, %s40
      %p206 = scmp.eq.s32.totalorder %s205, 0
      %s208 = sadd.s32 %s207, 1
      %s209 = scalar_select %p206, %s207, %s208
      %p212 = pneg %p206
      %p213 = scmp.eq.s32.totalorder %s25, 7
      %p214 = por %p212, %p213
      %p215 = scmp.ne.s32.totalorder %s207, %s210
      %p216 = scmp.eq.s32.totalorder %s25, 0
      %p217 = por %p215, %p216
      %p218 = scmp.ne.s32.totalorder %s207, %s210
      %p219 = scmp.eq.s32.totalorder %s30, 7
      %p220 = por %p218, %p219
      %p221 = scmp.ne.s32.totalorder %s210, %s211
      %p222 = scmp.eq.s32.totalorder %s30, 0
      %p223 = por %p221, %p222
      %p224 = scmp.ne.s32.totalorder %s210, %s211
      %p225 = scmp.eq.s32.totalorder %s31, 7
      %p226 = por %p224, %p225
      %p228 = scmp.ne.s32.totalorder %s211, %s227
      %p229 = scmp.eq.s32.totalorder %s31, 0
      %p230 = por %p228, %p229
      %s232 = sadd.s32 %s231, 1
      %p235 = scmp.eq.s32.totalorder %s25, 7
      %p236 = scmp.ne.s32.totalorder %s231, %s233
      %p237 = scmp.eq.s32.totalorder %s25, 0
      %p238 = por %p236, %p237
      %p239 = scmp.ne.s32.totalorder %s231, %s233
      %p240 = scmp.eq.s32.totalorder %s30, 7
      %p241 = por %p239, %p240
      %p242 = scmp.ne.s32.totalorder %s233, %s234
      %p243 = scmp.eq.s32.totalorder %s30, 0
      %p244 = por %p242, %p243
      %p245 = scmp.ne.s32.totalorder %s233, %s234
      %p246 = scmp.eq.s32.totalorder %s31, 7
      %p247 = por %p245, %p246
      %p249 = scmp.ne.s32.totalorder %s234, %s248
      %p250 = scmp.eq.s32.totalorder %s31, 0
      %p251 = por %p249, %p250
      %s253 = sadd.s32 %s252, 1
      %p256 = scmp.eq.s32.totalorder %s25, 7
      %p257 = scmp.ne.s32.totalorder %s252, %s254
      %p258 = scmp.eq.s32.totalorder %s25, 0
      %p259 = por %p257, %p258
      %p260 = scmp.ne.s32.totalorder %s252, %s254
      %p261 = scmp.eq.s32.totalorder %s30, 7
      %p262 = por %p260, %p261
      %p263 = scmp.ne.s32.totalorder %s254, %s255
      %p264 = scmp.eq.s32.totalorder %s30, 0
      %p265 = por %p263, %p264
      %p266 = scmp.ne.s32.totalorder %s254, %s255
      %p267 = scmp.eq.s32.totalorder %s31, 7
      %p268 = por %p266, %p267
      %p270 = scmp.ne.s32.totalorder %s255, %s269
      %p271 = scmp.eq.s32.totalorder %s31, 0
      %p272 = por %p270, %p271
      %s274 = sadd.s32 %s273, 1
      %p277 = scmp.eq.s32.totalorder %s25, 7
      %p278 = scmp.ne.s32.totalorder %s273, %s275
      %p279 = scmp.eq.s32.totalorder %s25, 0
      %p280 = por %p278, %p279
      %p281 = scmp.ne.s32.totalorder %s273, %s275
      %p282 = scmp.eq.s32.totalorder %s30, 7
      %p283 = por %p281, %p282
      %p284 = scmp.ne.s32.totalorder %s275, %s276
      %p285 = scmp.eq.s32.totalorder %s30, 0
      %p286 = por %p284, %p285
      %p287 = scmp.ne.s32.totalorder %s275, %s276
      %p288 = scmp.eq.s32.totalorder %s31, 7
      %p289 = por %p287, %p288
      %p291 = scmp.ne.s32.totalorder %s276, %s290
      %p292 = scmp.eq.s32.totalorder %s31, 0
      %p293 = por %p291, %p292
      %s295 = sadd.s32 %s294, 1
      %p298 = scmp.eq.s32.totalorder %s25, 7
      %p299 = scmp.ne.s32.totalorder %s294, %s296
      %p300 = scmp.eq.s32.totalorder %s25, 0
      %p301 = por %p299, %p300
      %p302 = scmp.ne.s32.totalorder %s294, %s296
      %p303 = scmp.eq.s32.totalorder %s30, 7
      %p304 = por %p302, %p303
      %p305 = scmp.ne.s32.totalorder %s296, %s297
      %p306 = scmp.eq.s32.totalorder %s30, 0
      %p307 = por %p305, %p306
      %p308 = scmp.ne.s32.totalorder %s296, %s297
      %p309 = scmp.eq.s32.totalorder %s31, 7
      %p310 = por %p308, %p309
      %p312 = scmp.ne.s32.totalorder %s297, %s311
      %p313 = scmp.eq.s32.totalorder %s31, 0
      %p314 = por %p312, %p313
      %s316 = sadd.s32 %s315, 1
      %p319 = scmp.eq.s32.totalorder %s25, 7
      %p320 = scmp.ne.s32.totalorder %s315, %s317
      %p321 = scmp.eq.s32.totalorder %s25, 0
      %p322 = por %p320, %p321
      %p323 = scmp.ne.s32.totalorder %s315, %s317
      %p324 = scmp.eq.s32.totalorder %s30, 7
      %p325 = por %p323, %p324
      %p326 = scmp.ne.s32.totalorder %s317, %s318
      %p327 = scmp.eq.s32.totalorder %s30, 0
      %p328 = por %p326, %p327
      %p329 = scmp.ne.s32.totalorder %s317, %s318
      %p330 = scmp.eq.s32.totalorder %s31, 7
      %p331 = por %p329, %p330
      %p333 = scmp.ne.s32.totalorder %s318, %s332
      %p334 = scmp.eq.s32.totalorder %s31, 0
      %p335 = por %p333, %p334
      %s337 = sadd.s32 %s336, 1
      %p340 = scmp.eq.s32.totalorder %s25, 7
      %p341 = scmp.ne.s32.totalorder %s336, %s338
      %p342 = scmp.eq.s32.totalorder %s25, 0
      %p343 = por %p341, %p342
      %p344 = scmp.ne.s32.totalorder %s336, %s338
      %p345 = scmp.eq.s32.totalorder %s30, 7
      %p346 = por %p344, %p345
      %p347 = scmp.ne.s32.totalorder %s338, %s339
      %p348 = scmp.eq.s32.totalorder %s30, 0
      %p349 = por %p347, %p348
      %p350 = scmp.ne.s32.totalorder %s338, %s339
      %p351 = scmp.eq.s32.totalorder %s31, 7
      %p352 = por %p350, %p351
      %p354 = scmp.ne.s32.totalorder %s339, %s353
      %p355 = scmp.eq.s32.totalorder %s31, 0
      %p356 = por %p354, %p355
      %s358 = sadd.s32 %s357, 1
      %p361 = scmp.eq.s32.totalorder %s25, 7
      %p362 = scmp.ne.s32.totalorder %s357, %s359
      %p363 = scmp.eq.s32.totalorder %s25, 0
      %p364 = por %p362, %p363
      %p365 = scmp.ne.s32.totalorder %s357, %s359
      %p366 = scmp.eq.s32.totalorder %s30, 7
      %p367 = por %p365, %p366
      %p368 = scmp.ne.s32.totalorder %s359, %s360
      %p369 = scmp.eq.s32.totalorder %s30, 0
      %p370 = por %p368, %p369
      %p371 = scmp.ne.s32.totalorder %s359, %s360
      %p372 = scmp.eq.s32.totalorder %s31, 7
      %p373 = por %p371, %p372
      %p375 = scmp.ne.s32.totalorder %s360, %s374
      %p376 = scmp.eq.s32.totalorder %s31, 0
      %p377 = por %p375, %p376
      %s379 = sadd.s32 %s378, 1
      %p382 = scmp.eq.s32.totalorder %s25, 7
      %p383 = scmp.ne.s32.totalorder %s378, %s380
      %p384 = scmp.eq.s32.totalorder %s25, 0
      %p385 = por %p383, %p384
      %p386 = scmp.ne.s32.totalorder %s378, %s380
      %p387 = scmp.eq.s32.totalorder %s30, 7
      %p388 = por %p386, %p387
      %p389 = scmp.ne.s32.totalorder %s380, %s381
      %p390 = scmp.eq.s32.totalorder %s30, 0
      %p391 = por %p389, %p390
      %p392 = scmp.ne.s32.totalorder %s380, %s381
      %p393 = scmp.eq.s32.totalorder %s31, 7
      %p394 = por %p392, %p393
      %p396 = scmp.ne.s32.totalorder %s381, %s395
      %p397 = scmp.eq.s32.totalorder %s31, 0
      %p398 = por %p396, %p397
      %s400 = sadd.s32 %s399, 1
      %p403 = scmp.eq.s32.totalorder %s25, 7
      %p404 = scmp.ne.s32.totalorder %s399, %s401
      %p405 = scmp.eq.s32.totalorder %s25, 0
      %p406 = por %p404, %p405
      %p407 = scmp.ne.s32.totalorder %s399, %s401
      %p408 = scmp.eq.s32.totalorder %s30, 7
      %p409 = por %p407, %p408
      %p410 = scmp.ne.s32.totalorder %s401, %s402
      %p411 = scmp.eq.s32.totalorder %s30, 0
      %p412 = por %p410, %p411
      %p413 = scmp.ne.s32.totalorder %s401, %s402
      %p414 = scmp.eq.s32.totalorder %s31, 7
      %p415 = por %p413, %p414
      %p417 = scmp.ne.s32.totalorder %s402, %s416
      %p418 = scmp.eq.s32.totalorder %s31, 0
      %p419 = por %p417, %p418
      %s421 = sadd.s32 %s420, 1
      %p424 = scmp.eq.s32.totalorder %s25, 7
      %p425 = scmp.ne.s32.totalorder %s420, %s422
      %p426 = scmp.eq.s32.totalorder %s25, 0
      %p427 = por %p425, %p426
      %p428 = scmp.ne.s32.totalorder %s420, %s422
      %p429 = scmp.eq.s32.totalorder %s30, 7
      %p430 = por %p428, %p429
      %p431 = scmp.ne.s32.totalorder %s422, %s423
      %p432 = scmp.eq.s32.totalorder %s30, 0
      %p433 = por %p431, %p432
      %p434 = scmp.ne.s32.totalorder %s422, %s423
      %p435 = scmp.eq.s32.totalorder %s31, 7
      %p436 = por %p434, %p435
      %p438 = scmp.ne.s32.totalorder %s423, %s437
      %p439 = scmp.eq.s32.totalorder %s31, 0
      %p440 = por %p438, %p439
      %s442 = sadd.s32 %s441, 1
      %p445 = scmp.eq.s32.totalorder %s25, 7
      %p446 = scmp.ne.s32.totalorder %s441, %s443
      %p447 = scmp.eq.s32.totalorder %s25, 0
      %p448 = por %p446, %p447
      %p449 = scmp.ne.s32.totalorder %s441, %s443
      %p450 = scmp.eq.s32.totalorder %s30, 7
      %p451 = por %p449, %p450
      %p452 = scmp.ne.s32.totalorder %s443, %s444
      %p453 = scmp.eq.s32.totalorder %s30, 0
      %p454 = por %p452, %p453
      %p455 = scmp.ne.s32.totalorder %s443, %s444
      %p456 = scmp.eq.s32.totalorder %s31, 7
      %p457 = por %p455, %p456
      %p459 = scmp.ne.s32.totalorder %s444, %s458
      %p460 = scmp.eq.s32.totalorder %s31, 0
      %p461 = por %p459, %p460
      %s462 = ssub.s32 %s32, %s44
      %p463 = scmp.eq.s32.totalorder %s462, 0
      %s465 = sadd.s32 %s464, 1
      %s466 = scalar_select %p463, %s464, %s465
      %p469 = pneg %p463
      %p470 = scmp.eq.s32.totalorder %s25, 7
      %p471 = por %p469, %p470
      %p472 = scmp.ne.s32.totalorder %s464, %s467
      %p473 = scmp.eq.s32.totalorder %s25, 0
      %p474 = por %p472, %p473
      %p475 = scmp.ne.s32.totalorder %s464, %s467
      %p476 = scmp.eq.s32.totalorder %s30, 7
      %p477 = por %p475, %p476
      %p478 = scmp.ne.s32.totalorder %s467, %s468
      %p479 = scmp.eq.s32.totalorder %s30, 0
      %p480 = por %p478, %p479
      %p481 = scmp.ne.s32.totalorder %s467, %s468
      %p482 = scmp.eq.s32.totalorder %s31, 7
      %p483 = por %p481, %p482
      %p485 = scmp.ne.s32.totalorder %s468, %s484
      %p486 = scmp.eq.s32.totalorder %s31, 0
      %p487 = por %p485, %p486
      %p488 = scmp.le.s32.totalorder 1, %s25
      %p489 = scmp.lt.s32.totalorder %s25, 9
      %p490 = pnand %p488, %p489
      %p491 = pneg %p490
      // Predicated region
      $region9: #{tpu_custom_call.1} parent=5 // pred_check
        _
      $region10: #{tpu_custom_call.1} parent=5 // pred_check_branch
        %493 = sbr.rel (%p490) target = $region12
      $region11: #{tpu_custom_call.1} parent=5 // pred_region
        %s494 = ssub.s32 %s25, 1
        // Predicated region
        $region13: #{tpu_custom_call.1} parent=11 // pred_check
          %p495 = pneg %p119
        $region14: #{tpu_custom_call.1} parent=11 // pred_check_branch
          %497 = sbr.rel (%p495) target = $region16
        $region15: #{tpu_custom_call.1} parent=11 // pred_region
          %p498 = scmp.lt.s32.totalorder %s34, 0
          %s499 = scalar_select %p498, %s34, 0
          %s500 = smul.addr %s499, 20
          %s501 = smul.addr %s500, 4
          %s502 = scalar_lea.vmem %s2, %s501
        $region16: #{tpu_custom_call.1} parent=11 // pred_fallthru
          _
        // Predicated region
        $region17: #{tpu_custom_call.1} parent=11 // pred_check
          %p503 = pneg %p145
        $region18: #{tpu_custom_call.1} parent=11 // pred_check_branch
          %505 = sbr.rel (%p503) target = $region20
        $region19: #{tpu_custom_call.1} parent=11 // pred_region
          %p506 = scmp.lt.s32.totalorder %s34, 0
          %s507 = scalar_select %p506, %s34, 0
          %s508 = smul.addr %s507, 20
          %s509 = smul.addr %s508, 4
          %s510 = scalar_lea.vmem %s3, %s509
        $region20: #{tpu_custom_call.1} parent=11 // pred_fallthru
          _
        // Predicated region
        $region21: #{tpu_custom_call.1} parent=11 // pred_check
          %p511 = pneg %p171
        $region22: #{tpu_custom_call.1} parent=11 // pred_check_branch
          %513 = sbr.rel (%p511) target = $region24
        $region23: #{tpu_custom_call.1} parent=11 // pred_region
          %p514 = scmp.lt.s32.totalorder %s34, 0
          %s515 = scalar_select %p514, %s34, 0
          %s516 = smul.addr %s515, 2
          %s517 = smul.addr %s516, 4
          %s518 = scalar_lea.vmem %s4, %s517
        $region24: #{tpu_custom_call.1} parent=11 // pred_fallthru
          _
        // Predicated region
        $region25: #{tpu_custom_call.1} parent=11 // pred_check
          %p519 = pneg %p197
        $region26: #{tpu_custom_call.1} parent=11 // pred_check_branch
          %521 = sbr.rel (%p519) target = $region28
        $region27: #{tpu_custom_call.1} parent=11 // pred_region
          %p522 = scmp.lt.s32.totalorder %s34, 0
          %s523 = scalar_select %p522, %s34, 0
          %s524 = smul.addr %s523, 2
          %s525 = smul.addr %s524, 4
          %s526 = scalar_lea.vmem %s5, %s525
        $region28: #{tpu_custom_call.1} parent=11 // pred_fallthru
          _
        // Predicated region
        $region29: #{tpu_custom_call.1} parent=11 // pred_check
          %p527 = pneg %p244
        $region30: #{tpu_custom_call.1} parent=11 // pred_check_branch
          %529 = sbr.rel (%p527) target = $region32
        $region31: #{tpu_custom_call.1} parent=11 // pred_region
          _
        $region32: #{tpu_custom_call.1} parent=11 // pred_fallthru
          _
        // Predicated region
        $region33: #{tpu_custom_call.1} parent=11 // pred_check
          %p530 = pneg %p265
        $region34: #{tpu_custom_call.1} parent=11 // pred_check_branch
          %532 = sbr.rel (%p530) target = $region36
        $region35: #{tpu_custom_call.1} parent=11 // pred_region
          _
        $region36: #{tpu_custom_call.1} parent=11 // pred_fallthru
          _
        // Predicated region
        $region37: #{tpu_custom_call.1} parent=11 // pred_check
          %p533 = pneg %p286
        $region38: #{tpu_custom_call.1} parent=11 // pred_check_branch
          %535 = sbr.rel (%p533) target = $region40
        $region39: #{tpu_custom_call.1} parent=11 // pred_region
          _
        $region40: #{tpu_custom_call.1} parent=11 // pred_fallthru
          _
        // Predicated region
        $region41: #{tpu_custom_call.1} parent=11 // pred_check
          %p536 = pneg %p307
        $region42: #{tpu_custom_call.1} parent=11 // pred_check_branch
          %538 = sbr.rel (%p536) target = $region44
        $region43: #{tpu_custom_call.1} parent=11 // pred_region
          _
        $region44: #{tpu_custom_call.1} parent=11 // pred_fallthru
          _
        // Predicated region
        $region45: #{tpu_custom_call.1} parent=11 // pred_check
          %p539 = pneg %p328
        $region46: #{tpu_custom_call.1} parent=11 // pred_check_branch
          %541 = sbr.rel (%p539) target = $region48
        $region47: #{tpu_custom_call.1} parent=11 // pred_region
          _
        $region48: #{tpu_custom_call.1} parent=11 // pred_fallthru
          _
        // Predicated region
        $region49: #{tpu_custom_call.1} parent=11 // pred_check
          %p542 = pneg %p349
        $region50: #{tpu_custom_call.1} parent=11 // pred_check_branch
          %544 = sbr.rel (%p542) target = $region52
        $region51: #{tpu_custom_call.1} parent=11 // pred_region
          _
        $region52: #{tpu_custom_call.1} parent=11 // pred_fallthru
          _
        // Predicated region
        $region53: #{tpu_custom_call.1} parent=11 // pred_check
          %p545 = pneg %p370
        $region54: #{tpu_custom_call.1} parent=11 // pred_check_branch
          %547 = sbr.rel (%p545) target = $region56
        $region55: #{tpu_custom_call.1} parent=11 // pred_region
          _
        $region56: #{tpu_custom_call.1} parent=11 // pred_fallthru
          _
        // Predicated region
        $region57: #{tpu_custom_call.1} parent=11 // pred_check
          %p548 = pneg %p391
        $region58: #{tpu_custom_call.1} parent=11 // pred_check_branch
          %550 = sbr.rel (%p548) target = $region60
        $region59: #{tpu_custom_call.1} parent=11 // pred_region
          _
        $region60: #{tpu_custom_call.1} parent=11 // pred_fallthru
          _
        // Predicated region
        $region61: #{tpu_custom_call.1} parent=11 // pred_check
          %p551 = pneg %p412
        $region62: #{tpu_custom_call.1} parent=11 // pred_check_branch
          %553 = sbr.rel (%p551) target = $region64
        $region63: #{tpu_custom_call.1} parent=11 // pred_region
          _
        $region64: #{tpu_custom_call.1} parent=11 // pred_fallthru
          _
        // Predicated region
        $region65: #{tpu_custom_call.1} parent=11 // pred_check
          %p554 = pneg %p433
        $region66: #{tpu_custom_call.1} parent=11 // pred_check_branch
          %556 = sbr.rel (%p554) target = $region68
        $region67: #{tpu_custom_call.1} parent=11 // pred_region
          _
        $region68: #{tpu_custom_call.1} parent=11 // pred_fallthru
          _
        // Predicated region
        $region69: #{tpu_custom_call.1} parent=11 // pred_check
          %p557 = pneg %p454
        $region70: #{tpu_custom_call.1} parent=11 // pred_check_branch
          %559 = sbr.rel (%p557) target = $region72
        $region71: #{tpu_custom_call.1} parent=11 // pred_region
          _
        $region72: #{tpu_custom_call.1} parent=11 // pred_fallthru
          _
      $region12: #{tpu_custom_call.1} parent=5 // pred_fallthru
        _
      %p560 = scmp.lt.s32.totalorder %s25, 8
      // Predicated region
      $region73: #{tpu_custom_call.1} parent=5 // pred_check
        %p561 = pneg %p560
      $region74: #{tpu_custom_call.1} parent=5 // pred_check_branch
        %563 = sbr.rel (%p561) target = $region76
      $region75: #{tpu_custom_call.1} parent=5 // pred_region
        // Predicated region
        $region77: #{tpu_custom_call.1} parent=75 // pred_check
          %p564 = pneg %p59
        $region78: #{tpu_custom_call.1} parent=75 // pred_check_branch
          %566 = sbr.rel (%p564) target = $region80
        $region79: #{tpu_custom_call.1} parent=75 // pred_region
          %s567 = smul.u32 19, %s33
          %p568 = scmp.lt.s32.totalorder %s32, 0
          %s569 = scalar_select %p568, %s32, 0
          %p570 = scmp.lt.s32.totalorder %s567, 151
          %s571 = scalar_select %p570, %s567, 151
          %s572 = smul.addr %s569, 152
          %s573 = sadd.s32 %s571, %s572
          %s574 = smul.addr %s573, 4
          %s575 = scalar_lea.vmem %s0, %s574
          %s576 = smul.u32 19, %s33
        $region80: #{tpu_custom_call.1} parent=75 // pred_fallthru
          _
        // Predicated region
        $region81: #{tpu_custom_call.1} parent=75 // pred_check
          %p577 = pneg %p87
        $region82: #{tpu_custom_call.1} parent=75 // pred_check_branch
          %579 = sbr.rel (%p577) target = $region84
        $region83: #{tpu_custom_call.1} parent=75 // pred_region
          %s580 = smul.u32 19, %s33
          %p581 = scmp.lt.s32.totalorder %s32, 0
          %s582 = scalar_select %p581, %s32, 0
          %p583 = scmp.lt.s32.totalorder %s580, 151
          %s584 = scalar_select %p583, %s580, 151
          %s585 = smul.addr %s582, 152
          %s586 = sadd.s32 %s584, %s585
          %s587 = smul.addr %s586, 4
          %s588 = scalar_lea.vmem %s1, %s587
          %s589 = smul.u32 19, %s33
        $region84: #{tpu_custom_call.1} parent=75 // pred_fallthru
          _
        // Predicated region
        $region85: #{tpu_custom_call.1} parent=75 // pred_check
          %p590 = pneg %p217
        $region86: #{tpu_custom_call.1} parent=75 // pred_check_branch
          %592 = sbr.rel (%p590) target = $region88
        $region87: #{tpu_custom_call.1} parent=75 // pred_region
          %s593 = smul.u32 304, %s33
          %p594 = scmp.lt.s32.totalorder %s593, 2431
          %s595 = scalar_select %p594, %s593, 2431
          %s596 = smul.addr %s595, 4
          %s597 = scalar_lea.vmem %s6, %s596
          %s598 = smul.u32 304, %s33
        $region88: #{tpu_custom_call.1} parent=75 // pred_fallthru
          _
      $region76: #{tpu_custom_call.1} parent=5 // pred_fallthru
        _
      %p599 = scmp.le.s32.totalorder 1, %s25
      %p600 = scmp.lt.s32.totalorder %s25, 9
      %p601 = pnand %p599, %p600
      %p602 = pneg %p601
      // Predicated region
      $region89: #{tpu_custom_call.1} parent=5 // pred_check
        _
      $region90: #{tpu_custom_call.1} parent=5 // pred_check_branch
        %604 = sbr.rel (%p601) target = $region92
      $region91: #{tpu_custom_call.1} parent=5 // pred_region
        %s605 = ssub.s32 %s25, 1
        %s606 = smul.u32 19, %s35
        %p607 = scmp.lt.s32.totalorder %s34, 0
        %s608 = scalar_select %p607, %s34, 0
        %p609 = scmp.lt.s32.totalorder %s606, 151
        %s610 = scalar_select %p609, %s606, 151
        %s611 = smul.addr %s608, 152
        %s612 = sadd.s32 %s610, %s611
        %s613 = smul.addr %s612, 4
        %s614 = scalar_lea.vmem %s0, %s613
        %p615 = pneg %p65
        %p616 = pneg %p62
        %s617 = smul.u32 19, %s35
        %p618 = scmp.lt.s32.totalorder %s34, 0
        %s619 = scalar_select %p618, %s34, 0
        %p620 = scmp.lt.s32.totalorder %s617, 151
        %s621 = scalar_select %p620, %s617, 151
        %s622 = smul.addr %s619, 152
        %s623 = sadd.s32 %s621, %s622
        %s624 = smul.addr %s623, 4
        %s625 = scalar_lea.vmem %s1, %s624
        %p626 = pneg %p93
        %p627 = pneg %p90
        %p628 = scmp.lt.s32.totalorder %s34, 0
        %s629 = scalar_select %p628, %s34, 0
        %s630 = smul.addr %s629, 20
        %s631 = smul.addr %s630, 4
        %s632 = scalar_lea.vmem %s2, %s631
        %p633 = pneg %p119
        %p634 = pneg %p116
        %p635 = scmp.lt.s32.totalorder %s34, 0
        %s636 = scalar_select %p635, %s34, 0
        %s637 = smul.addr %s636, 20
        %s638 = smul.addr %s637, 4
        %s639 = scalar_lea.vmem %s3, %s638
        %p640 = pneg %p145
        %p641 = pneg %p142
        %p642 = scmp.lt.s32.totalorder %s34, 0
        %s643 = scalar_select %p642, %s34, 0
        %s644 = smul.addr %s643, 2
        %s645 = smul.addr %s644, 4
        %s646 = scalar_lea.vmem %s4, %s645
        %p647 = pneg %p171
        %p648 = pneg %p168
        %p649 = scmp.lt.s32.totalorder %s34, 0
        %s650 = scalar_select %p649, %s34, 0
        %s651 = smul.addr %s650, 2
        %s652 = smul.addr %s651, 4
        %s653 = scalar_lea.vmem %s5, %s652
        %p654 = pneg %p197
        %p655 = pneg %p194
        %s656 = smul.u32 304, %s35
        %p657 = scmp.lt.s32.totalorder %s656, 2431
        %s658 = scalar_select %p657, %s656, 2431
        %s659 = smul.addr %s658, 4
        %s660 = scalar_lea.vmem %s6, %s659
        %p661 = pneg %p223
        %p662 = pneg %p220
        %p663 = pneg %p244
        %p664 = pneg %p241
        %p665 = pneg %p265
        %p666 = pneg %p262
        %p667 = pneg %p286
        %p668 = pneg %p283
        %p669 = pneg %p307
        %p670 = pneg %p304
        %p671 = pneg %p328
        %p672 = pneg %p325
        %p673 = pneg %p349
        %p674 = pneg %p346
        %p675 = pneg %p370
        %p676 = pneg %p367
        %p677 = pneg %p391
        %p678 = pneg %p388
        %p679 = pneg %p412
        %p680 = pneg %p409
        %p681 = pneg %p433
        %p682 = pneg %p430
        %p683 = pneg %p454
        %p684 = pneg %p451
        %p685 = pneg %p480
        %p686 = pneg %p477
        %s687 = smul.u32 19, %s35
        %p688 = scmp.lt.s32.totalorder %s34, 0
        %s689 = scalar_select %p688, %s34, 0
        %p690 = scmp.lt.s32.totalorder %s687, 151
        %s691 = scalar_select %p690, %s687, 151
        %s692 = smul.addr %s689, 152
        %s693 = sadd.s32 %s691, %s692
        %s694 = smul.addr %s693, 4
        %s695 = scalar_lea.vmem %s0, %s694
        %s696 = smul.u32 19, %s35
        %s697 = smul.u32 19, %s35
        %p698 = scmp.lt.s32.totalorder %s34, 0
        %s699 = scalar_select %p698, %s34, 0
        %p700 = scmp.lt.s32.totalorder %s697, 151
        %s701 = scalar_select %p700, %s697, 151
        %s702 = smul.addr %s699, 152
        %s703 = sadd.s32 %s701, %s702
        %s704 = smul.addr %s703, 4
        %s705 = scalar_lea.vmem %s1, %s704
        %s706 = smul.u32 19, %s35
        %p707 = scmp.lt.s32.totalorder %s34, 0
        %s708 = scalar_select %p707, %s34, 0
        %s709 = smul.addr %s708, 20
        %s710 = smul.addr %s709, 4
        %s711 = scalar_lea.vmem %s2, %s710
        %p712 = scmp.lt.s32.totalorder %s34, 0
        %s713 = scalar_select %p712, %s34, 0
        %s714 = smul.addr %s713, 20
        %s715 = smul.addr %s714, 4
        %s716 = scalar_lea.vmem %s3, %s715
        %p717 = scmp.lt.s32.totalorder %s34, 0
        %s718 = scalar_select %p717, %s34, 0
        %s719 = smul.addr %s718, 2
        %s720 = smul.addr %s719, 4
        %s721 = scalar_lea.vmem %s4, %s720
        %p722 = scmp.lt.s32.totalorder %s34, 0
        %s723 = scalar_select %p722, %s34, 0
        %s724 = smul.addr %s723, 2
        %s725 = smul.addr %s724, 4
        %s726 = scalar_lea.vmem %s5, %s725
        %s727 = smul.u32 304, %s35
        %p728 = scmp.lt.s32.totalorder %s727, 2431
        %s729 = scalar_select %p728, %s727, 2431
        %s730 = smul.addr %s729, 4
        %s731 = scalar_lea.vmem %s6, %s730
        %s732 = smul.u32 304, %s35
        %p734 = scmp.eq.s32.totalorder %s35, 0
        // Predicated region
        $region93: #{tpu_custom_call.1} parent=91 // pred_check
          %p735 = pneg %p734
        $region94: #{tpu_custom_call.1} parent=91 // pred_check_branch
          %737 = sbr.rel (%p735) target = $region96
        $region95: #{tpu_custom_call.1} parent=91 // pred_region
          %vm738 = vcmask 408576
          %739 = vst.msk [vmem:[#allocation2] sm:$0xff] %vm738, 0.0
        $region96: #{tpu_custom_call.1} parent=91 // pred_fallthru
          _
        %v740 = vld [vmem:[%s695] sm:$0xff]
        %v741 = vld [vmem:[%s695 + $0x8] sm:$0xff]
        %v742 = vld [vmem:[%s695 + $0x10] sm:$0xff]
        %v743 = vld [vmem:[%s695 + $0x18] sm:$0xff]
        %v744 = vld [vmem:[%s695 + $0x20] sm:$0xff]
        %v745 = vld [vmem:[%s695 + $0x28] sm:$0xff]
        %v746 = vld [vmem:[%s695 + $0x30] sm:$0xff]
        %v747 = vld [vmem:[%s695 + $0x38] sm:$0xff]
        %v748 = vld [vmem:[%s695 + $0x40] sm:$0xff]
        %v749 = vld [vmem:[%s695 + $0x48] sm:$0xf]
        %v750 = vunpack.c.l.bf16 %v740
        %v751 = vunpack.c.h.bf16 %v740
        %v752 = vunpack.c.l.bf16 %v741
        %v753 = vunpack.c.h.bf16 %v741
        %v754 = vunpack.c.l.bf16 %v742
        %v755 = vunpack.c.h.bf16 %v742
        %v756 = vunpack.c.l.bf16 %v743
        %v757 = vunpack.c.h.bf16 %v743
        %v758 = vunpack.c.l.bf16 %v744
        %v759 = vunpack.c.h.bf16 %v744
        %v760 = vunpack.c.l.bf16 %v745
        %v761 = vunpack.c.h.bf16 %v745
        %v762 = vunpack.c.l.bf16 %v746
        %v763 = vunpack.c.h.bf16 %v746
        %v764 = vunpack.c.l.bf16 %v747
        %v765 = vunpack.c.h.bf16 %v747
        %v766 = vunpack.c.l.bf16 %v748
        %v767 = vunpack.c.h.bf16 %v748
        %v768 = vunpack.c.l.bf16 %v749
        %v769 = vld [vmem:[%s705] sm:$0xff]
        %v770 = vld [vmem:[%s705 + $0x8] sm:$0xff]
        %v771 = vld [vmem:[%s705 + $0x10] sm:$0xff]
        %v772 = vld [vmem:[%s705 + $0x18] sm:$0xff]
        %v773 = vld [vmem:[%s705 + $0x20] sm:$0xff]
        %v774 = vld [vmem:[%s705 + $0x28] sm:$0xff]
        %v775 = vld [vmem:[%s705 + $0x30] sm:$0xff]
        %v776 = vld [vmem:[%s705 + $0x38] sm:$0xff]
        %v777 = vld [vmem:[%s705 + $0x40] sm:$0xff]
        %v778 = vld [vmem:[%s705 + $0x48] sm:$0xf]
        %v779 = vunpack.c.l.bf16 %v769
        %v780 = vunpack.c.h.bf16 %v769
        %v781 = vunpack.c.l.bf16 %v770
        %v782 = vunpack.c.h.bf16 %v770
        %v783 = vunpack.c.l.bf16 %v771
        %v784 = vunpack.c.h.bf16 %v771
        %v785 = vunpack.c.l.bf16 %v772
        %v786 = vunpack.c.h.bf16 %v772
        %v787 = vunpack.c.l.bf16 %v773
        %v788 = vunpack.c.h.bf16 %v773
        %v789 = vunpack.c.l.bf16 %v774
        %v790 = vunpack.c.h.bf16 %v774
        %v791 = vunpack.c.l.bf16 %v775
        %v792 = vunpack.c.h.bf16 %v775
        %v793 = vunpack.c.l.bf16 %v776
        %v794 = vunpack.c.h.bf16 %v776
        %v795 = vunpack.c.l.bf16 %v777
        %v796 = vunpack.c.h.bf16 %v777
        %v797 = vunpack.c.l.bf16 %v778
        %v798 = vsub.f32 %v750, %v779
        %v799 = vsub.f32 %v751, %v780
        %v800 = vsub.f32 %v752, %v781
        %v801 = vsub.f32 %v753, %v782
        %v802 = vsub.f32 %v754, %v783
        %v803 = vsub.f32 %v755, %v784
        %v804 = vsub.f32 %v756, %v785
        %v805 = vsub.f32 %v757, %v786
        %v806 = vsub.f32 %v758, %v787
        %v807 = vsub.f32 %v759, %v788
        %v808 = vsub.f32 %v760, %v789
        %v809 = vsub.f32 %v761, %v790
        %v810 = vsub.f32 %v762, %v791
        %v811 = vsub.f32 %v763, %v792
        %v812 = vsub.f32 %v764, %v793
        %v813 = vsub.f32 %v765, %v794
        %v814 = vsub.f32 %v766, %v795
        %v815 = vsub.f32 %v767, %v796
        %v816 = vsub.f32 %v768, %v797
        %v817 = vpack.c.bf16 %v798, %v798
        %v818 = vpack.c.bf16 %v799, %v799
        %v819 = vpack.c.bf16 %v800, %v800
        %v820 = vpack.c.bf16 %v801, %v801
        %v821 = vpack.c.bf16 %v802, %v802
        %v822 = vpack.c.bf16 %v803, %v803
        %v823 = vpack.c.bf16 %v804, %v804
        %v824 = vpack.c.bf16 %v805, %v805
        %v825 = vpack.c.bf16 %v806, %v806
        %v826 = vpack.c.bf16 %v807, %v807
        %v827 = vpack.c.bf16 %v808, %v808
        %v828 = vpack.c.bf16 %v809, %v809
        %v829 = vpack.c.bf16 %v810, %v810
        %v830 = vpack.c.bf16 %v811, %v811
        %v831 = vpack.c.bf16 %v812, %v812
        %v832 = vpack.c.bf16 %v813, %v813
        %v833 = vpack.c.bf16 %v814, %v814
        %v834 = vpack.c.bf16 %v815, %v815
        %v835 = vpack.c.bf16 %v816, %v816
        %v836 = vld [vmem:[#allocation2] sm:$0xff]
        %v837 = vld [vmem:[%s731] sm:$0xf]
        %v838 = vld [vmem:[%s731 + $0x4] sm:$0xf]
        %v839 = vld [vmem:[%s731 + $0x8] sm:$0xf]
        %v840 = vld [vmem:[%s731 + $0xc] sm:$0xf]
        %v841 = vld [vmem:[%s731 + $0x10] sm:$0xf]
        %v842 = vld [vmem:[%s731 + $0x14] sm:$0xf]
        %v843 = vld [vmem:[%s731 + $0x18] sm:$0xf]
        %v844 = vld [vmem:[%s731 + $0x1c] sm:$0xf]
        %v845 = vld [vmem:[%s731 + $0x20] sm:$0xf]
        %v846 = vld [vmem:[%s731 + $0x24] sm:$0xf]
        %v847 = vld [vmem:[%s731 + $0x28] sm:$0xf]
        %v848 = vld [vmem:[%s731 + $0x2c] sm:$0xf]
        %v849 = vld [vmem:[%s731 + $0x30] sm:$0xf]
        %v850 = vld [vmem:[%s731 + $0x34] sm:$0xf]
        %v851 = vld [vmem:[%s731 + $0x38] sm:$0xf]
        %v852 = vld [vmem:[%s731 + $0x3c] sm:$0xf]
        %v853 = vld [vmem:[%s731 + $0x40] sm:$0xf]
        %v854 = vld [vmem:[%s731 + $0x44] sm:$0xf]
        %v855 = vld [vmem:[%s731 + $0x48] sm:$0xf]
        %v856 = vld [vmem:[%s731 + $0x4c] sm:$0xf]
        %v857 = vld [vmem:[%s731 + $0x50] sm:$0xf]
        %v858 = vld [vmem:[%s731 + $0x54] sm:$0xf]
        %v859 = vld [vmem:[%s731 + $0x58] sm:$0xf]
        %v860 = vld [vmem:[%s731 + $0x5c] sm:$0xf]
        %v861 = vld [vmem:[%s731 + $0x60] sm:$0xf]
        %v862 = vld [vmem:[%s731 + $0x64] sm:$0xf]
        %v863 = vld [vmem:[%s731 + $0x68] sm:$0xf]
        %v864 = vld [vmem:[%s731 + $0x6c] sm:$0xf]
        %v865 = vld [vmem:[%s731 + $0x70] sm:$0xf]
        %v866 = vld [vmem:[%s731 + $0x74] sm:$0xf]
        %v867 = vld [vmem:[%s731 + $0x78] sm:$0xf]
        %v868 = vld [vmem:[%s731 + $0x7c] sm:$0xf]
        %v869 = vld [vmem:[%s731 + $0x80] sm:$0xf]
        %v870 = vld [vmem:[%s731 + $0x84] sm:$0xf]
        %v871 = vld [vmem:[%s731 + $0x88] sm:$0xf]
        %v872 = vld [vmem:[%s731 + $0x8c] sm:$0xf]
        %v873 = vld [vmem:[%s731 + $0x90] sm:$0xf]
        %v874 = vld [vmem:[%s731 + $0x94] sm:$0xf]
        %v875 = vld [vmem:[%s731 + $0x98] sm:$0xf]
        %v876 = vld [vmem:[%s731 + $0x9c] sm:$0xf]
        %v877 = vld [vmem:[%s731 + $0xa0] sm:$0xf]
        %v878 = vld [vmem:[%s731 + $0xa4] sm:$0xf]
        %v879 = vld [vmem:[%s731 + $0xa8] sm:$0xf]
        %v880 = vld [vmem:[%s731 + $0xac] sm:$0xf]
        %v881 = vld [vmem:[%s731 + $0xb0] sm:$0xf]
        %v882 = vld [vmem:[%s731 + $0xb4] sm:$0xf]
        %v883 = vld [vmem:[%s731 + $0xb8] sm:$0xf]
        %v884 = vld [vmem:[%s731 + $0xbc] sm:$0xf]
        %v885 = vld [vmem:[%s731 + $0xc0] sm:$0xf]
        %v886 = vld [vmem:[%s731 + $0xc4] sm:$0xf]
        %v887 = vld [vmem:[%s731 + $0xc8] sm:$0xf]
        %v888 = vld [vmem:[%s731 + $0xcc] sm:$0xf]
        %v889 = vld [vmem:[%s731 + $0xd0] sm:$0xf]
        %v890 = vld [vmem:[%s731 + $0xd4] sm:$0xf]
        %v891 = vld [vmem:[%s731 + $0xd8] sm:$0xf]
        %v892 = vld [vmem:[%s731 + $0xdc] sm:$0xf]
        %v893 = vld [vmem:[%s731 + $0xe0] sm:$0xf]
        %v894 = vld [vmem:[%s731 + $0xe4] sm:$0xf]
        %v895 = vld [vmem:[%s731 + $0xe8] sm:$0xf]
        %v896 = vld [vmem:[%s731 + $0xec] sm:$0xf]
        %v897 = vld [vmem:[%s731 + $0xf0] sm:$0xf]
        %v898 = vld [vmem:[%s731 + $0xf4] sm:$0xf]
        %v899 = vld [vmem:[%s731 + $0xf8] sm:$0xf]
        %v900 = vld [vmem:[%s731 + $0xfc] sm:$0xf]
        %v901 = vld [vmem:[%s731 + $0x100] sm:$0xf]
        %v902 = vld [vmem:[%s731 + $0x104] sm:$0xf]
        %v903 = vld [vmem:[%s731 + $0x108] sm:$0xf]
        %v904 = vld [vmem:[%s731 + $0x10c] sm:$0xf]
        %v905 = vld [vmem:[%s731 + $0x110] sm:$0xf]
        %v906 = vld [vmem:[%s731 + $0x114] sm:$0xf]
        %v907 = vld [vmem:[%s731 + $0x118] sm:$0xf]
        %v908 = vld [vmem:[%s731 + $0x11c] sm:$0xf]
        %v909 = vld [vmem:[%s731 + $0x120] sm:$0xf]
        %v910 = vld [vmem:[%s731 + $0x124] sm:$0xf]
        %v911 = vld [vmem:[%s731 + $0x128] sm:$0xf]
        %v912 = vld [vmem:[%s731 + $0x12c] sm:$0xf]
        %v913 = vld [vmem:[%s731 + $0x130] sm:$0xf]
        %v914 = vld [vmem:[%s731 + $0x134] sm:$0xf]
        %v915 = vld [vmem:[%s731 + $0x138] sm:$0xf]
        %v916 = vld [vmem:[%s731 + $0x13c] sm:$0xf]
        %v917 = vld [vmem:[%s731 + $0x140] sm:$0xf]
        %v918 = vld [vmem:[%s731 + $0x144] sm:$0xf]
        %v919 = vld [vmem:[%s731 + $0x148] sm:$0xf]
        %v920 = vld [vmem:[%s731 + $0x14c] sm:$0xf]
        %v921 = vld [vmem:[%s731 + $0x150] sm:$0xf]
        %v922 = vld [vmem:[%s731 + $0x154] sm:$0xf]
        %v923 = vld [vmem:[%s731 + $0x158] sm:$0xf]
        %v924 = vld [vmem:[%s731 + $0x15c] sm:$0xf]
        %v925 = vld [vmem:[%s731 + $0x160] sm:$0xf]
        %v926 = vld [vmem:[%s731 + $0x164] sm:$0xf]
        %v927 = vld [vmem:[%s731 + $0x168] sm:$0xf]
        %v928 = vld [vmem:[%s731 + $0x16c] sm:$0xf]
        %v929 = vld [vmem:[%s731 + $0x170] sm:$0xf]
        %v930 = vld [vmem:[%s731 + $0x174] sm:$0xf]
        %v931 = vld [vmem:[%s731 + $0x178] sm:$0xf]
        %v932 = vld [vmem:[%s731 + $0x17c] sm:$0xf]
        %v933 = vld [vmem:[%s731 + $0x180] sm:$0xf]
        %v934 = vld [vmem:[%s731 + $0x184] sm:$0xf]
        %v935 = vld [vmem:[%s731 + $0x188] sm:$0xf]
        %v936 = vld [vmem:[%s731 + $0x18c] sm:$0xf]
        %v937 = vld [vmem:[%s731 + $0x190] sm:$0xf]
        %v938 = vld [vmem:[%s731 + $0x194] sm:$0xf]
        %v939 = vld [vmem:[%s731 + $0x198] sm:$0xf]
        %v940 = vld [vmem:[%s731 + $0x19c] sm:$0xf]
        %v941 = vld [vmem:[%s731 + $0x1a0] sm:$0xf]
        %v942 = vld [vmem:[%s731 + $0x1a4] sm:$0xf]
        %v943 = vld [vmem:[%s731 + $0x1a8] sm:$0xf]
        %v944 = vld [vmem:[%s731 + $0x1ac] sm:$0xf]
        %v945 = vld [vmem:[%s731 + $0x1b0] sm:$0xf]
        %v946 = vld [vmem:[%s731 + $0x1b4] sm:$0xf]
        %v947 = vld [vmem:[%s731 + $0x1b8] sm:$0xf]
        %v948 = vld [vmem:[%s731 + $0x1bc] sm:$0xf]
        %v949 = vld [vmem:[%s731 + $0x1c0] sm:$0xf]
        %v950 = vld [vmem:[%s731 + $0x1c4] sm:$0xf]
        %v951 = vld [vmem:[%s731 + $0x1c8] sm:$0xf]
        %v952 = vld [vmem:[%s731 + $0x1cc] sm:$0xf]
        %v953 = vld [vmem:[%s731 + $0x1d0] sm:$0xf]
        %v954 = vld [vmem:[%s731 + $0x1d4] sm:$0xf]
        %v955 = vld [vmem:[%s731 + $0x1d8] sm:$0xf]
        %v956 = vld [vmem:[%s731 + $0x1dc] sm:$0xf]
        %v957 = vld [vmem:[%s731 + $0x1e0] sm:$0xf]
        %v958 = vld [vmem:[%s731 + $0x1e4] sm:$0xf]
        %v959 = vld [vmem:[%s731 + $0x1e8] sm:$0xf]
        %v960 = vld [vmem:[%s731 + $0x1ec] sm:$0xf]
        %v961 = vld [vmem:[%s731 + $0x1f0] sm:$0xf]
        %v962 = vld [vmem:[%s731 + $0x1f4] sm:$0xf]
        %v963 = vld [vmem:[%s731 + $0x1f8] sm:$0xf]
        %v964 = vld [vmem:[%s731 + $0x1fc] sm:$0xf]
        %v965 = vld [vmem:[%s731 + $0x200] sm:$0xf]
        %v966 = vld [vmem:[%s731 + $0x204] sm:$0xf]
        %v967 = vld [vmem:[%s731 + $0x208] sm:$0xf]
        %v968 = vld [vmem:[%s731 + $0x20c] sm:$0xf]
        %v969 = vld [vmem:[%s731 + $0x210] sm:$0xf]
        %v970 = vld [vmem:[%s731 + $0x214] sm:$0xf]
        %v971 = vld [vmem:[%s731 + $0x218] sm:$0xf]
        %v972 = vld [vmem:[%s731 + $0x21c] sm:$0xf]
        %v973 = vld [vmem:[%s731 + $0x220] sm:$0xf]
        %v974 = vld [vmem:[%s731 + $0x224] sm:$0xf]
        %v975 = vld [vmem:[%s731 + $0x228] sm:$0xf]
        %v976 = vld [vmem:[%s731 + $0x22c] sm:$0xf]
        %v977 = vld [vmem:[%s731 + $0x230] sm:$0xf]
        %v978 = vld [vmem:[%s731 + $0x234] sm:$0xf]
        %v979 = vld [vmem:[%s731 + $0x238] sm:$0xf]
        %v980 = vld [vmem:[%s731 + $0x23c] sm:$0xf]
        %v981 = vld [vmem:[%s731 + $0x240] sm:$0xf]
        %v982 = vld [vmem:[%s731 + $0x244] sm:$0xf]
        %v983 = vld [vmem:[%s731 + $0x248] sm:$0xf]
        %v984 = vld [vmem:[%s731 + $0x24c] sm:$0xf]
        %v985 = vld [vmem:[%s731 + $0x250] sm:$0xf]
        %v986 = vld [vmem:[%s731 + $0x254] sm:$0xf]
        %v987 = vld [vmem:[%s731 + $0x258] sm:$0xf]
        %v988 = vld [vmem:[%s731 + $0x25c] sm:$0xf]
        %v989 = vld [vmem:[%s731 + $0x260] sm:$0xf]
        %v990 = vld [vmem:[%s731 + $0x264] sm:$0xf]
        %v991 = vld [vmem:[%s731 + $0x268] sm:$0xf]
        %v992 = vld [vmem:[%s731 + $0x26c] sm:$0xf]
        %v993 = vld [vmem:[%s731 + $0x270] sm:$0xf]
        %v994 = vld [vmem:[%s731 + $0x274] sm:$0xf]
        %v995 = vld [vmem:[%s731 + $0x278] sm:$0xf]
        %v996 = vld [vmem:[%s731 + $0x27c] sm:$0xf]
        %v997 = vld [vmem:[%s731 + $0x280] sm:$0xf]
        %v998 = vld [vmem:[%s731 + $0x284] sm:$0xf]
        %v999 = vld [vmem:[%s731 + $0x288] sm:$0xf]
        %v1000 = vld [vmem:[%s731 + $0x28c] sm:$0xf]
        %v1001 = vld [vmem:[%s731 + $0x290] sm:$0xf]
        %v1002 = vld [vmem:[%s731 + $0x294] sm:$0xf]
        %v1003 = vld [vmem:[%s731 + $0x298] sm:$0xf]
        %v1004 = vld [vmem:[%s731 + $0x29c] sm:$0xf]
        %v1005 = vld [vmem:[%s731 + $0x2a0] sm:$0xf]
        %v1006 = vld [vmem:[%s731 + $0x2a4] sm:$0xf]
        %v1007 = vld [vmem:[%s731 + $0x2a8] sm:$0xf]
        %v1008 = vld [vmem:[%s731 + $0x2ac] sm:$0xf]
        %v1009 = vld [vmem:[%s731 + $0x2b0] sm:$0xf]
        %v1010 = vld [vmem:[%s731 + $0x2b4] sm:$0xf]
        %v1011 = vld [vmem:[%s731 + $0x2b8] sm:$0xf]
        %v1012 = vld [vmem:[%s731 + $0x2bc] sm:$0xf]
        %v1013 = vld [vmem:[%s731 + $0x2c0] sm:$0xf]
        %v1014 = vld [vmem:[%s731 + $0x2c4] sm:$0xf]
        %v1015 = vld [vmem:[%s731 + $0x2c8] sm:$0xf]
        %v1016 = vld [vmem:[%s731 + $0x2cc] sm:$0xf]
        %v1017 = vld [vmem:[%s731 + $0x2d0] sm:$0xf]
        %v1018 = vld [vmem:[%s731 + $0x2d4] sm:$0xf]
        %v1019 = vld [vmem:[%s731 + $0x2d8] sm:$0xf]
        %v1020 = vld [vmem:[%s731 + $0x2dc] sm:$0xf]
        %v1021 = vld [vmem:[%s731 + $0x2e0] sm:$0xf]
        %v1022 = vld [vmem:[%s731 + $0x2e4] sm:$0xf]
        %v1023 = vld [vmem:[%s731 + $0x2e8] sm:$0xf]
        %v1024 = vld [vmem:[%s731 + $0x2ec] sm:$0xf]
        %v1025 = vld [vmem:[%s731 + $0x2f0] sm:$0xf]
        %v1026 = vld [vmem:[%s731 + $0x2f4] sm:$0xf]
        %v1027 = vld [vmem:[%s731 + $0x2f8] sm:$0xf]
        %v1028 = vld [vmem:[%s731 + $0x2fc] sm:$0xf]
        %v1029 = vld [vmem:[%s731 + $0x300] sm:$0xf]
        %v1030 = vld [vmem:[%s731 + $0x304] sm:$0xf]
        %v1031 = vld [vmem:[%s731 + $0x308] sm:$0xf]
        %v1032 = vld [vmem:[%s731 + $0x30c] sm:$0xf]
        %v1033 = vld [vmem:[%s731 + $0x310] sm:$0xf]
        %v1034 = vld [vmem:[%s731 + $0x314] sm:$0xf]
        %v1035 = vld [vmem:[%s731 + $0x318] sm:$0xf]
        %v1036 = vld [vmem:[%s731 + $0x31c] sm:$0xf]
        %v1037 = vld [vmem:[%s731 + $0x320] sm:$0xf]
        %v1038 = vld [vmem:[%s731 + $0x324] sm:$0xf]
        %v1039 = vld [vmem:[%s731 + $0x328] sm:$0xf]
        %v1040 = vld [vmem:[%s731 + $0x32c] sm:$0xf]
        %v1041 = vld [vmem:[%s731 + $0x330] sm:$0xf]
        %v1042 = vld [vmem:[%s731 + $0x334] sm:$0xf]
        %v1043 = vld [vmem:[%s731 + $0x338] sm:$0xf]
        %v1044 = vld [vmem:[%s731 + $0x33c] sm:$0xf]
        %v1045 = vld [vmem:[%s731 + $0x340] sm:$0xf]
        %v1046 = vld [vmem:[%s731 + $0x344] sm:$0xf]
        %v1047 = vld [vmem:[%s731 + $0x348] sm:$0xf]
        %v1048 = vld [vmem:[%s731 + $0x34c] sm:$0xf]
        %v1049 = vld [vmem:[%s731 + $0x350] sm:$0xf]
        %v1050 = vld [vmem:[%s731 + $0x354] sm:$0xf]
        %v1051 = vld [vmem:[%s731 + $0x358] sm:$0xf]
        %v1052 = vld [vmem:[%s731 + $0x35c] sm:$0xf]
        %v1053 = vld [vmem:[%s731 + $0x360] sm:$0xf]
        %v1054 = vld [vmem:[%s731 + $0x364] sm:$0xf]
        %v1055 = vld [vmem:[%s731 + $0x368] sm:$0xf]
        %v1056 = vld [vmem:[%s731 + $0x36c] sm:$0xf]
        %v1057 = vld [vmem:[%s731 + $0x370] sm:$0xf]
        %v1058 = vld [vmem:[%s731 + $0x374] sm:$0xf]
        %v1059 = vld [vmem:[%s731 + $0x378] sm:$0xf]
        %v1060 = vld [vmem:[%s731 + $0x37c] sm:$0xf]
        %v1061 = vld [vmem:[%s731 + $0x380] sm:$0xf]
        %v1062 = vld [vmem:[%s731 + $0x384] sm:$0xf]
        %v1063 = vld [vmem:[%s731 + $0x388] sm:$0xf]
        %v1064 = vld [vmem:[%s731 + $0x38c] sm:$0xf]
        %v1065 = vld [vmem:[%s731 + $0x390] sm:$0xf]
        %v1066 = vld [vmem:[%s731 + $0x394] sm:$0xf]
        %v1067 = vld [vmem:[%s731 + $0x398] sm:$0xf]
        %v1068 = vld [vmem:[%s731 + $0x39c] sm:$0xf]
        %v1069 = vld [vmem:[%s731 + $0x3a0] sm:$0xf]
        %v1070 = vld [vmem:[%s731 + $0x3a4] sm:$0xf]
        %v1071 = vld [vmem:[%s731 + $0x3a8] sm:$0xf]
        %v1072 = vld [vmem:[%s731 + $0x3ac] sm:$0xf]
        %v1073 = vld [vmem:[%s731 + $0x3b0] sm:$0xf]
        %v1074 = vld [vmem:[%s731 + $0x3b4] sm:$0xf]
        %v1075 = vld [vmem:[%s731 + $0x3b8] sm:$0xf]
        %v1076 = vld [vmem:[%s731 + $0x3bc] sm:$0xf]
        %v1077 = vld [vmem:[%s731 + $0x3c0] sm:$0xf]
        %v1078 = vld [vmem:[%s731 + $0x3c4] sm:$0xf]
        %v1079 = vld [vmem:[%s731 + $0x3c8] sm:$0xf]
        %v1080 = vld [vmem:[%s731 + $0x3cc] sm:$0xf]
        %v1081 = vld [vmem:[%s731 + $0x3d0] sm:$0xf]
        %v1082 = vld [vmem:[%s731 + $0x3d4] sm:$0xf]
        %v1083 = vld [vmem:[%s731 + $0x3d8] sm:$0xf]
        %v1084 = vld [vmem:[%s731 + $0x3dc] sm:$0xf]
        %v1085 = vld [vmem:[%s731 + $0x3e0] sm:$0xf]
        %v1086 = vld [vmem:[%s731 + $0x3e4] sm:$0xf]
        %v1087 = vld [vmem:[%s731 + $0x3e8] sm:$0xf]
        %v1088 = vld [vmem:[%s731 + $0x3ec] sm:$0xf]
        %v1089 = vld [vmem:[%s731 + $0x3f0] sm:$0xf]
        %v1090 = vld [vmem:[%s731 + $0x3f4] sm:$0xf]
        %v1091 = vld [vmem:[%s731 + $0x3f8] sm:$0xf]
        %v1092 = vld [vmem:[%s731 + $0x3fc] sm:$0xf]
        %v1093 = vld [vmem:[%s731 + $0x400] sm:$0xf]
        %v1094 = vld [vmem:[%s731 + $0x404] sm:$0xf]
        %v1095 = vld [vmem:[%s731 + $0x408] sm:$0xf]
        %v1096 = vld [vmem:[%s731 + $0x40c] sm:$0xf]
        %v1097 = vld [vmem:[%s731 + $0x410] sm:$0xf]
        %v1098 = vld [vmem:[%s731 + $0x414] sm:$0xf]
        %v1099 = vld [vmem:[%s731 + $0x418] sm:$0xf]
        %v1100 = vld [vmem:[%s731 + $0x41c] sm:$0xf]
        %v1101 = vld [vmem:[%s731 + $0x420] sm:$0xf]
        %v1102 = vld [vmem:[%s731 + $0x424] sm:$0xf]
        %v1103 = vld [vmem:[%s731 + $0x428] sm:$0xf]
        %v1104 = vld [vmem:[%s731 + $0x42c] sm:$0xf]
        %v1105 = vld [vmem:[%s731 + $0x430] sm:$0xf]
        %v1106 = vld [vmem:[%s731 + $0x434] sm:$0xf]
        %v1107 = vld [vmem:[%s731 + $0x438] sm:$0xf]
        %v1108 = vld [vmem:[%s731 + $0x43c] sm:$0xf]
        %v1109 = vld [vmem:[%s731 + $0x440] sm:$0xf]
        %v1110 = vld [vmem:[%s731 + $0x444] sm:$0xf]
        %v1111 = vld [vmem:[%s731 + $0x448] sm:$0xf]
        %v1112 = vld [vmem:[%s731 + $0x44c] sm:$0xf]
        %v1113 = vld [vmem:[%s731 + $0x450] sm:$0xf]
        %v1114 = vld [vmem:[%s731 + $0x454] sm:$0xf]
        %v1115 = vld [vmem:[%s731 + $0x458] sm:$0xf]
        %v1116 = vld [vmem:[%s731 + $0x45c] sm:$0xf]
        %v1117 = vld [vmem:[%s731 + $0x460] sm:$0xf]
        %v1118 = vld [vmem:[%s731 + $0x464] sm:$0xf]
        %v1119 = vld [vmem:[%s731 + $0x468] sm:$0xf]
        %v1120 = vld [vmem:[%s731 + $0x46c] sm:$0xf]
        %v1121 = vld [vmem:[%s731 + $0x470] sm:$0xf]
        %v1122 = vld [vmem:[%s731 + $0x474] sm:$0xf]
        %v1123 = vld [vmem:[%s731 + $0x478] sm:$0xf]
        %v1124 = vld [vmem:[%s731 + $0x47c] sm:$0xf]
        %v1125 = vld [vmem:[%s731 + $0x480] sm:$0xf]
        %v1126 = vld [vmem:[%s731 + $0x484] sm:$0xf]
        %v1127 = vld [vmem:[%s731 + $0x488] sm:$0xf]
        %v1128 = vld [vmem:[%s731 + $0x48c] sm:$0xf]
        %v1129 = vld [vmem:[%s731 + $0x490] sm:$0xf]
        %v1130 = vld [vmem:[%s731 + $0x494] sm:$0xf]
        %v1131 = vld [vmem:[%s731 + $0x498] sm:$0xf]
        %v1132 = vld [vmem:[%s731 + $0x49c] sm:$0xf]
        %v1133 = vld [vmem:[%s731 + $0x4a0] sm:$0xf]
        %v1134 = vld [vmem:[%s731 + $0x4a4] sm:$0xf]
        %v1135 = vld [vmem:[%s731 + $0x4a8] sm:$0xf]
        %v1136 = vld [vmem:[%s731 + $0x4ac] sm:$0xf]
        %v1137 = vld [vmem:[%s731 + $0x4b0] sm:$0xf]
        %v1138 = vld [vmem:[%s731 + $0x4b4] sm:$0xf]
        %v1139 = vld [vmem:[%s731 + $0x4b8] sm:$0xf]
        %v1140 = vld [vmem:[%s731 + $0x4bc] sm:$0xf]
        %v1445 = vunpack.c.l.b16 %v837
        %v1446 = vunpack.c.l.b16 %v838
        %v1447 = vunpack.c.l.b16 %v839
        %v1448 = vunpack.c.l.b16 %v840
        %v1449 = vunpack.c.l.b16 %v841
        %v1450 = vunpack.c.l.b16 %v842
        %v1451 = vunpack.c.l.b16 %v843
        %v1452 = vunpack.c.l.b16 %v844
        %v1453 = vunpack.c.l.b16 %v845
        %v1454 = vunpack.c.l.b16 %v846
        %v1455 = vunpack.c.l.b16 %v847
        %v1456 = vunpack.c.l.b16 %v848
        %v1457 = vunpack.c.l.b16 %v849
        %v1458 = vunpack.c.l.b16 %v850
        %v1459 = vunpack.c.l.b16 %v851
        %v1460 = vunpack.c.l.b16 %v852
        %v1461 = vunpack.c.l.b16 %v853
        %v1462 = vunpack.c.l.b16 %v854
        %v1463 = vunpack.c.l.b16 %v855
        %v1464 = vunpack.c.l.b16 %v856
        %v1465 = vunpack.c.l.b16 %v857
        %v1466 = vunpack.c.l.b16 %v858
        %v1467 = vunpack.c.l.b16 %v859
        %v1468 = vunpack.c.l.b16 %v860
        %v1469 = vunpack.c.l.b16 %v861
        %v1470 = vunpack.c.l.b16 %v862
        %v1471 = vunpack.c.l.b16 %v863
        %v1472 = vunpack.c.l.b16 %v864
        %v1473 = vunpack.c.l.b16 %v865
        %v1474 = vunpack.c.l.b16 %v866
        %v1475 = vunpack.c.l.b16 %v867
        %v1476 = vunpack.c.l.b16 %v868
        %v1477 = vunpack.c.l.b16 %v869
        %v1478 = vunpack.c.l.b16 %v870
        %v1479 = vunpack.c.l.b16 %v871
        %v1480 = vunpack.c.l.b16 %v872
        %v1481 = vunpack.c.l.b16 %v873
        %v1482 = vunpack.c.l.b16 %v874
        %v1483 = vunpack.c.l.b16 %v875
        %v1484 = vunpack.c.l.b16 %v876
        %v1485 = vunpack.c.l.b16 %v877
        %v1486 = vunpack.c.l.b16 %v878
        %v1487 = vunpack.c.l.b16 %v879
        %v1488 = vunpack.c.l.b16 %v880
        %v1489 = vunpack.c.l.b16 %v881
        %v1490 = vunpack.c.l.b16 %v882
        %v1491 = vunpack.c.l.b16 %v883
        %v1492 = vunpack.c.l.b16 %v884
        %v1493 = vunpack.c.l.b16 %v885
        %v1494 = vunpack.c.l.b16 %v886
        %v1495 = vunpack.c.l.b16 %v887
        %v1496 = vunpack.c.l.b16 %v888
        %v1497 = vunpack.c.l.b16 %v889
        %v1498 = vunpack.c.l.b16 %v890
        %v1499 = vunpack.c.l.b16 %v891
        %v1500 = vunpack.c.l.b16 %v892
        %v1501 = vunpack.c.l.b16 %v893
        %v1502 = vunpack.c.l.b16 %v894
        %v1503 = vunpack.c.l.b16 %v895
        %v1504 = vunpack.c.l.b16 %v896
        %v1505 = vunpack.c.l.b16 %v897
        %v1506 = vunpack.c.l.b16 %v898
        %v1507 = vunpack.c.l.b16 %v899
        %v1508 = vunpack.c.l.b16 %v900
        %v1509 = vunpack.c.l.b16 %v901
        %v1510 = vunpack.c.l.b16 %v902
        %v1511 = vunpack.c.l.b16 %v903
        %v1512 = vunpack.c.l.b16 %v904
        %v1513 = vunpack.c.l.b16 %v905
        %v1514 = vunpack.c.l.b16 %v906
        %v1515 = vunpack.c.l.b16 %v907
        %v1516 = vunpack.c.l.b16 %v908
        %v1517 = vunpack.c.l.b16 %v909
        %v1518 = vunpack.c.l.b16 %v910
        %v1519 = vunpack.c.l.b16 %v911
        %v1520 = vunpack.c.l.b16 %v912
        %v1521 = vunpack.c.l.b16 %v913
        %v1522 = vunpack.c.l.b16 %v914
        %v1523 = vunpack.c.l.b16 %v915
        %v1524 = vunpack.c.l.b16 %v916
        %v1525 = vunpack.c.l.b16 %v917
        %v1526 = vunpack.c.l.b16 %v918
        %v1527 = vunpack.c.l.b16 %v919
        %v1528 = vunpack.c.l.b16 %v920
        %v1529 = vunpack.c.l.b16 %v921
        %v1530 = vunpack.c.l.b16 %v922
        %v1531 = vunpack.c.l.b16 %v923
        %v1532 = vunpack.c.l.b16 %v924
        %v1533 = vunpack.c.l.b16 %v925
        %v1534 = vunpack.c.l.b16 %v926
        %v1535 = vunpack.c.l.b16 %v927
        %v1536 = vunpack.c.l.b16 %v928
        %v1537 = vunpack.c.l.b16 %v929
        %v1538 = vunpack.c.l.b16 %v930
        %v1539 = vunpack.c.l.b16 %v931
        %v1540 = vunpack.c.l.b16 %v932
        %v1541 = vunpack.c.l.b16 %v933
        %v1542 = vunpack.c.l.b16 %v934
        %v1543 = vunpack.c.l.b16 %v935
        %v1544 = vunpack.c.l.b16 %v936
        %v1545 = vunpack.c.l.b16 %v937
        %v1546 = vunpack.c.l.b16 %v938
        %v1547 = vunpack.c.l.b16 %v939
        %v1548 = vunpack.c.l.b16 %v940
        %v1549 = vunpack.c.l.b16 %v941
        %v1550 = vunpack.c.l.b16 %v942
        %v1551 = vunpack.c.l.b16 %v943
        %v1552 = vunpack.c.l.b16 %v944
        %v1553 = vunpack.c.l.b16 %v945
        %v1554 = vunpack.c.l.b16 %v946
        %v1555 = vunpack.c.l.b16 %v947
        %v1556 = vunpack.c.l.b16 %v948
        %v1557 = vunpack.c.l.b16 %v949
        %v1558 = vunpack.c.l.b16 %v950
        %v1559 = vunpack.c.l.b16 %v951
        %v1560 = vunpack.c.l.b16 %v952
        %v1561 = vunpack.c.l.b16 %v953
        %v1562 = vunpack.c.l.b16 %v954
        %v1563 = vunpack.c.l.b16 %v955
        %v1564 = vunpack.c.l.b16 %v956
        %v1565 = vunpack.c.l.b16 %v957
        %v1566 = vunpack.c.l.b16 %v958
        %v1567 = vunpack.c.l.b16 %v959
        %v1568 = vunpack.c.l.b16 %v960
        %v1569 = vunpack.c.l.b16 %v961
        %v1570 = vunpack.c.l.b16 %v962
        %v1571 = vunpack.c.l.b16 %v963
        %v1572 = vunpack.c.l.b16 %v964
        %v1573 = vunpack.c.l.b16 %v965
        %v1574 = vunpack.c.l.b16 %v966
        %v1575 = vunpack.c.l.b16 %v967
        %v1576 = vunpack.c.l.b16 %v968
        %v1577 = vunpack.c.l.b16 %v969
        %v1578 = vunpack.c.l.b16 %v970
        %v1579 = vunpack.c.l.b16 %v971
        %v1580 = vunpack.c.l.b16 %v972
        %v1581 = vunpack.c.l.b16 %v973
        %v1582 = vunpack.c.l.b16 %v974
        %v1583 = vunpack.c.l.b16 %v975
        %v1584 = vunpack.c.l.b16 %v976
        %v1585 = vunpack.c.l.b16 %v977
        %v1586 = vunpack.c.l.b16 %v978
        %v1587 = vunpack.c.l.b16 %v979
        %v1588 = vunpack.c.l.b16 %v980
        %v1589 = vunpack.c.l.b16 %v981
        %v1590 = vunpack.c.l.b16 %v982
        %v1591 = vunpack.c.l.b16 %v983
        %v1592 = vunpack.c.l.b16 %v984
        %v1593 = vunpack.c.l.b16 %v985
        %v1594 = vunpack.c.l.b16 %v986
        %v1595 = vunpack.c.l.b16 %v987
        %v1596 = vunpack.c.l.b16 %v988
        %v1597 = vunpack.c.l.b16 %v989
        %v1598 = vunpack.c.l.b16 %v990
        %v1599 = vunpack.c.l.b16 %v991
        %v1600 = vunpack.c.l.b16 %v992
        %v1601 = vunpack.c.l.b16 %v993
        %v1602 = vunpack.c.l.b16 %v994
        %v1603 = vunpack.c.l.b16 %v995
        %v1604 = vunpack.c.l.b16 %v996
        %v1605 = vunpack.c.l.b16 %v997
        %v1606 = vunpack.c.l.b16 %v998
        %v1607 = vunpack.c.l.b16 %v999
        %v1608 = vunpack.c.l.b16 %v1000
        %v1609 = vunpack.c.l.b16 %v1001
        %v1610 = vunpack.c.l.b16 %v1002
        %v1611 = vunpack.c.l.b16 %v1003
        %v1612 = vunpack.c.l.b16 %v1004
        %v1613 = vunpack.c.l.b16 %v1005
        %v1614 = vunpack.c.l.b16 %v1006
        %v1615 = vunpack.c.l.b16 %v1007
        %v1616 = vunpack.c.l.b16 %v1008
        %v1617 = vunpack.c.l.b16 %v1009
        %v1618 = vunpack.c.l.b16 %v1010
        %v1619 = vunpack.c.l.b16 %v1011
        %v1620 = vunpack.c.l.b16 %v1012
        %v1621 = vunpack.c.l.b16 %v1013
        %v1622 = vunpack.c.l.b16 %v1014
        %v1623 = vunpack.c.l.b16 %v1015
        %v1624 = vunpack.c.l.b16 %v1016
        %v1625 = vunpack.c.l.b16 %v1017
        %v1626 = vunpack.c.l.b16 %v1018
        %v1627 = vunpack.c.l.b16 %v1019
        %v1628 = vunpack.c.l.b16 %v1020
        %v1629 = vunpack.c.l.b16 %v1021
        %v1630 = vunpack.c.l.b16 %v1022
        %v1631 = vunpack.c.l.b16 %v1023
        %v1632 = vunpack.c.l.b16 %v1024
        %v1633 = vunpack.c.l.b16 %v1025
        %v1634 = vunpack.c.l.b16 %v1026
        %v1635 = vunpack.c.l.b16 %v1027
        %v1636 = vunpack.c.l.b16 %v1028
        %v1637 = vunpack.c.l.b16 %v1029
        %v1638 = vunpack.c.l.b16 %v1030
        %v1639 = vunpack.c.l.b16 %v1031
        %v1640 = vunpack.c.l.b16 %v1032
        %v1641 = vunpack.c.l.b16 %v1033
        %v1642 = vunpack.c.l.b16 %v1034
        %v1643 = vunpack.c.l.b16 %v1035
        %v1644 = vunpack.c.l.b16 %v1036
        %v1645 = vunpack.c.l.b16 %v1037
        %v1646 = vunpack.c.l.b16 %v1038
        %v1647 = vunpack.c.l.b16 %v1039
        %v1648 = vunpack.c.l.b16 %v1040
        %v1649 = vunpack.c.l.b16 %v1041
        %v1650 = vunpack.c.l.b16 %v1042
        %v1651 = vunpack.c.l.b16 %v1043
        %v1652 = vunpack.c.l.b16 %v1044
        %v1653 = vunpack.c.l.b16 %v1045
        %v1654 = vunpack.c.l.b16 %v1046
        %v1655 = vunpack.c.l.b16 %v1047
        %v1656 = vunpack.c.l.b16 %v1048
        %v1657 = vunpack.c.l.b16 %v1049
        %v1658 = vunpack.c.l.b16 %v1050
        %v1659 = vunpack.c.l.b16 %v1051
        %v1660 = vunpack.c.l.b16 %v1052
        %v1661 = vunpack.c.l.b16 %v1053
        %v1662 = vunpack.c.l.b16 %v1054
        %v1663 = vunpack.c.l.b16 %v1055
        %v1664 = vunpack.c.l.b16 %v1056
        %v1665 = vunpack.c.l.b16 %v1057
        %v1666 = vunpack.c.l.b16 %v1058
        %v1667 = vunpack.c.l.b16 %v1059
        %v1668 = vunpack.c.l.b16 %v1060
        %v1669 = vunpack.c.l.b16 %v1061
        %v1670 = vunpack.c.l.b16 %v1062
        %v1671 = vunpack.c.l.b16 %v1063
        %v1672 = vunpack.c.l.b16 %v1064
        %v1673 = vunpack.c.l.b16 %v1065
        %v1674 = vunpack.c.l.b16 %v1066
        %v1675 = vunpack.c.l.b16 %v1067
        %v1676 = vunpack.c.l.b16 %v1068
        %v1677 = vunpack.c.l.b16 %v1069
        %v1678 = vunpack.c.l.b16 %v1070
        %v1679 = vunpack.c.l.b16 %v1071
        %v1680 = vunpack.c.l.b16 %v1072
        %v1681 = vunpack.c.l.b16 %v1073
        %v1682 = vunpack.c.l.b16 %v1074
        %v1683 = vunpack.c.l.b16 %v1075
        %v1684 = vunpack.c.l.b16 %v1076
        %v1685 = vunpack.c.l.b16 %v1077
        %v1686 = vunpack.c.l.b16 %v1078
        %v1687 = vunpack.c.l.b16 %v1079
        %v1688 = vunpack.c.l.b16 %v1080
        %v1689 = vunpack.c.l.b16 %v1081
        %v1690 = vunpack.c.l.b16 %v1082
        %v1691 = vunpack.c.l.b16 %v1083
        %v1692 = vunpack.c.l.b16 %v1084
        %v1693 = vunpack.c.l.b16 %v1085
        %v1694 = vunpack.c.l.b16 %v1086
        %v1695 = vunpack.c.l.b16 %v1087
        %v1696 = vunpack.c.l.b16 %v1088
        %v1697 = vunpack.c.l.b16 %v1089
        %v1698 = vunpack.c.l.b16 %v1090
        %v1699 = vunpack.c.l.b16 %v1091
        %v1700 = vunpack.c.l.b16 %v1092
        %v1701 = vunpack.c.l.b16 %v1093
        %v1702 = vunpack.c.l.b16 %v1094
        %v1703 = vunpack.c.l.b16 %v1095
        %v1704 = vunpack.c.l.b16 %v1096
        %v1705 = vunpack.c.l.b16 %v1097
        %v1706 = vunpack.c.l.b16 %v1098
        %v1707 = vunpack.c.l.b16 %v1099
        %v1708 = vunpack.c.l.b16 %v1100
        %v1709 = vunpack.c.l.b16 %v1101
        %v1710 = vunpack.c.l.b16 %v1102
        %v1711 = vunpack.c.l.b16 %v1103
        %v1712 = vunpack.c.l.b16 %v1104
        %v1713 = vunpack.c.l.b16 %v1105
        %v1714 = vunpack.c.l.b16 %v1106
        %v1715 = vunpack.c.l.b16 %v1107
        %v1716 = vunpack.c.l.b16 %v1108
        %v1717 = vunpack.c.l.b16 %v1109
        %v1718 = vunpack.c.l.b16 %v1110
        %v1719 = vunpack.c.l.b16 %v1111
        %v1720 = vunpack.c.l.b16 %v1112
        %v1721 = vunpack.c.l.b16 %v1113
        %v1722 = vunpack.c.l.b16 %v1114
        %v1723 = vunpack.c.l.b16 %v1115
        %v1724 = vunpack.c.l.b16 %v1116
        %v1725 = vunpack.c.l.b16 %v1117
        %v1726 = vunpack.c.l.b16 %v1118
        %v1727 = vunpack.c.l.b16 %v1119
        %v1728 = vunpack.c.l.b16 %v1120
        %v1729 = vunpack.c.l.b16 %v1121
        %v1730 = vunpack.c.l.b16 %v1122
        %v1731 = vunpack.c.l.b16 %v1123
        %v1732 = vunpack.c.l.b16 %v1124
        %v1733 = vunpack.c.l.b16 %v1125
        %v1734 = vunpack.c.l.b16 %v1126
        %v1735 = vunpack.c.l.b16 %v1127
        %v1736 = vunpack.c.l.b16 %v1128
        %v1737 = vunpack.c.l.b16 %v1129
        %v1738 = vunpack.c.l.b16 %v1130
        %v1739 = vunpack.c.l.b16 %v1131
        %v1740 = vunpack.c.l.b16 %v1132
        %v1741 = vunpack.c.l.b16 %v1133
        %v1742 = vunpack.c.l.b16 %v1134
        %v1743 = vunpack.c.l.b16 %v1135
        %v1744 = vunpack.c.l.b16 %v1136
        %v1745 = vunpack.c.l.b16 %v1137
        %v1746 = vunpack.c.l.b16 %v1138
        %v1747 = vunpack.c.l.b16 %v1139
        %v1748 = vunpack.c.l.b16 %v1140
        %v1749 = vpack.c.b16 %v1446, %v1445
        %v1750 = vpack.c.b16 %v1448, %v1447
        %v1751 = vpack.c.b16 %v1450, %v1449
        %v1752 = vpack.c.b16 %v1452, %v1451
        %v1753 = vpack.c.b16 %v1454, %v1453
        %v1754 = vpack.c.b16 %v1456, %v1455
        %v1755 = vpack.c.b16 %v1458, %v1457
        %v1756 = vpack.c.b16 %v1460, %v1459
        %v1757 = vpack.c.b16 %v1462, %v1461
        %v1758 = vpack.c.b16 %v1464, %v1463
        %v1759 = vpack.c.b16 %v1466, %v1465
        %v1760 = vpack.c.b16 %v1468, %v1467
        %v1761 = vpack.c.b16 %v1470, %v1469
        %v1762 = vpack.c.b16 %v1472, %v1471
        %v1763 = vpack.c.b16 %v1474, %v1473
        %v1764 = vpack.c.b16 %v1476, %v1475
        %v1765 = vpack.c.b16 %v1478, %v1477
        %v1766 = vpack.c.b16 %v1480, %v1479
        %v1767 = vpack.c.b16 %v1482, %v1481
        %v1768 = vpack.c.b16 %v1484, %v1483
        %v1769 = vpack.c.b16 %v1486, %v1485
        %v1770 = vpack.c.b16 %v1488, %v1487
        %v1771 = vpack.c.b16 %v1490, %v1489
        %v1772 = vpack.c.b16 %v1492, %v1491
        %v1773 = vpack.c.b16 %v1494, %v1493
        %v1774 = vpack.c.b16 %v1496, %v1495
        %v1775 = vpack.c.b16 %v1498, %v1497
        %v1776 = vpack.c.b16 %v1500, %v1499
        %v1777 = vpack.c.b16 %v1502, %v1501
        %v1778 = vpack.c.b16 %v1504, %v1503
        %v1779 = vpack.c.b16 %v1506, %v1505
        %v1780 = vpack.c.b16 %v1508, %v1507
        %v1781 = vpack.c.b16 %v1510, %v1509
        %v1782 = vpack.c.b16 %v1512, %v1511
        %v1783 = vpack.c.b16 %v1514, %v1513
        %v1784 = vpack.c.b16 %v1516, %v1515
        %v1785 = vpack.c.b16 %v1518, %v1517
        %v1786 = vpack.c.b16 %v1520, %v1519
        %v1787 = vpack.c.b16 %v1522, %v1521
        %v1788 = vpack.c.b16 %v1524, %v1523
        %v1789 = vpack.c.b16 %v1526, %v1525
        %v1790 = vpack.c.b16 %v1528, %v1527
        %v1791 = vpack.c.b16 %v1530, %v1529
        %v1792 = vpack.c.b16 %v1532, %v1531
        %v1793 = vpack.c.b16 %v1534, %v1533
        %v1794 = vpack.c.b16 %v1536, %v1535
        %v1795 = vpack.c.b16 %v1538, %v1537
        %v1796 = vpack.c.b16 %v1540, %v1539
        %v1797 = vpack.c.b16 %v1542, %v1541
        %v1798 = vpack.c.b16 %v1544, %v1543
        %v1799 = vpack.c.b16 %v1546, %v1545
        %v1800 = vpack.c.b16 %v1548, %v1547
        %v1801 = vpack.c.b16 %v1550, %v1549
        %v1802 = vpack.c.b16 %v1552, %v1551
        %v1803 = vpack.c.b16 %v1554, %v1553
        %v1804 = vpack.c.b16 %v1556, %v1555
        %v1805 = vpack.c.b16 %v1558, %v1557
        %v1806 = vpack.c.b16 %v1560, %v1559
        %v1807 = vpack.c.b16 %v1562, %v1561
        %v1808 = vpack.c.b16 %v1564, %v1563
        %v1809 = vpack.c.b16 %v1566, %v1565
        %v1810 = vpack.c.b16 %v1568, %v1567
        %v1811 = vpack.c.b16 %v1570, %v1569
        %v1812 = vpack.c.b16 %v1572, %v1571
        %v1813 = vpack.c.b16 %v1574, %v1573
        %v1814 = vpack.c.b16 %v1576, %v1575
        %v1815 = vpack.c.b16 %v1578, %v1577
        %v1816 = vpack.c.b16 %v1580, %v1579
        %v1817 = vpack.c.b16 %v1582, %v1581
        %v1818 = vpack.c.b16 %v1584, %v1583
        %v1819 = vpack.c.b16 %v1586, %v1585
        %v1820 = vpack.c.b16 %v1588, %v1587
        %v1821 = vpack.c.b16 %v1590, %v1589
        %v1822 = vpack.c.b16 %v1592, %v1591
        %v1823 = vpack.c.b16 %v1594, %v1593
        %v1824 = vpack.c.b16 %v1596, %v1595
        %v1825 = vpack.c.b16 %v1598, %v1597
        %v1826 = vpack.c.b16 %v1600, %v1599
        %v1827 = vpack.c.b16 %v1602, %v1601
        %v1828 = vpack.c.b16 %v1604, %v1603
        %v1829 = vpack.c.b16 %v1606, %v1605
        %v1830 = vpack.c.b16 %v1608, %v1607
        %v1831 = vpack.c.b16 %v1610, %v1609
        %v1832 = vpack.c.b16 %v1612, %v1611
        %v1833 = vpack.c.b16 %v1614, %v1613
        %v1834 = vpack.c.b16 %v1616, %v1615
        %v1835 = vpack.c.b16 %v1618, %v1617
        %v1836 = vpack.c.b16 %v1620, %v1619
        %v1837 = vpack.c.b16 %v1622, %v1621
        %v1838 = vpack.c.b16 %v1624, %v1623
        %v1839 = vpack.c.b16 %v1626, %v1625
        %v1840 = vpack.c.b16 %v1628, %v1627
        %v1841 = vpack.c.b16 %v1630, %v1629
        %v1842 = vpack.c.b16 %v1632, %v1631
        %v1843 = vpack.c.b16 %v1634, %v1633
        %v1844 = vpack.c.b16 %v1636, %v1635
        %v1845 = vpack.c.b16 %v1638, %v1637
        %v1846 = vpack.c.b16 %v1640, %v1639
        %v1847 = vpack.c.b16 %v1642, %v1641
        %v1848 = vpack.c.b16 %v1644, %v1643
        %v1849 = vpack.c.b16 %v1646, %v1645
        %v1850 = vpack.c.b16 %v1648, %v1647
        %v1851 = vpack.c.b16 %v1650, %v1649
        %v1852 = vpack.c.b16 %v1652, %v1651
        %v1853 = vpack.c.b16 %v1654, %v1653
        %v1854 = vpack.c.b16 %v1656, %v1655
        %v1855 = vpack.c.b16 %v1658, %v1657
        %v1856 = vpack.c.b16 %v1660, %v1659
        %v1857 = vpack.c.b16 %v1662, %v1661
        %v1858 = vpack.c.b16 %v1664, %v1663
        %v1859 = vpack.c.b16 %v1666, %v1665
        %v1860 = vpack.c.b16 %v1668, %v1667
        %v1861 = vpack.c.b16 %v1670, %v1669
        %v1862 = vpack.c.b16 %v1672, %v1671
        %v1863 = vpack.c.b16 %v1674, %v1673
        %v1864 = vpack.c.b16 %v1676, %v1675
        %v1865 = vpack.c.b16 %v1678, %v1677
        %v1866 = vpack.c.b16 %v1680, %v1679
        %v1867 = vpack.c.b16 %v1682, %v1681
        %v1868 = vpack.c.b16 %v1684, %v1683
        %v1869 = vpack.c.b16 %v1686, %v1685
        %v1870 = vpack.c.b16 %v1688, %v1687
        %v1871 = vpack.c.b16 %v1690, %v1689
        %v1872 = vpack.c.b16 %v1692, %v1691
        %v1873 = vpack.c.b16 %v1694, %v1693
        %v1874 = vpack.c.b16 %v1696, %v1695
        %v1875 = vpack.c.b16 %v1698, %v1697
        %v1876 = vpack.c.b16 %v1700, %v1699
        %v1877 = vpack.c.b16 %v1702, %v1701
        %v1878 = vpack.c.b16 %v1704, %v1703
        %v1879 = vpack.c.b16 %v1706, %v1705
        %v1880 = vpack.c.b16 %v1708, %v1707
        %v1881 = vpack.c.b16 %v1710, %v1709
        %v1882 = vpack.c.b16 %v1712, %v1711
        %v1883 = vpack.c.b16 %v1714, %v1713
        %v1884 = vpack.c.b16 %v1716, %v1715
        %v1885 = vpack.c.b16 %v1718, %v1717
        %v1886 = vpack.c.b16 %v1720, %v1719
        %v1887 = vpack.c.b16 %v1722, %v1721
        %v1888 = vpack.c.b16 %v1724, %v1723
        %v1889 = vpack.c.b16 %v1726, %v1725
        %v1890 = vpack.c.b16 %v1728, %v1727
        %v1891 = vpack.c.b16 %v1730, %v1729
        %v1892 = vpack.c.b16 %v1732, %v1731
        %v1893 = vpack.c.b16 %v1734, %v1733
        %v1894 = vpack.c.b16 %v1736, %v1735
        %v1895 = vpack.c.b16 %v1738, %v1737
        %v1896 = vpack.c.b16 %v1740, %v1739
        %v1897 = vpack.c.b16 %v1742, %v1741
        %v1898 = vpack.c.b16 %v1744, %v1743
        %v1899 = vpack.c.b16 %v1746, %v1745
        %v1900 = vpack.c.b16 %v1748, %v1747
        %2053 = vmatpush.bf16.msra.mxu0 %v1756
        %2054 = vmatpush.bf16.msra.mxu0 %v1755
        %2055 = vmatpush.bf16.msra.mxu0 %v1754
        %2056 = vmatpush.bf16.msra.mxu0 %v1753
        %2057 = vmatpush.bf16.msra.mxu0 %v1752
        %2058 = vmatpush.bf16.msra.mxu0 %v1751
        %2059 = vmatpush.bf16.msra.mxu0 %v1750
        %2060 = vmatpush.bf16.msra.mxu0 %v1749
        %2061 = vmatmul.bf16.gmra.mxu0 %v817
        %v2062 = vpop.f32.mrf.mxu0
        %v2063 = vadd.f32 0.0, %v2062
        %v2064 = vpop.f32.mrf.mxu0
        %2065 = vdwg.mxu0
        %2066 = vmatpush.bf16.msra.mxu0 %v1764
        %2067 = vmatpush.bf16.msra.mxu0 %v1763
        %2068 = vmatpush.bf16.msra.mxu0 %v1762
        %2069 = vmatpush.bf16.msra.mxu0 %v1761
        %2070 = vmatpush.bf16.msra.mxu0 %v1760
        %2071 = vmatpush.bf16.msra.mxu0 %v1759
        %2072 = vmatpush.bf16.msra.mxu0 %v1758
        %2073 = vmatpush.bf16.msra.mxu0 %v1757
        %2074 = vmatmul.bf16.gmra.mxu0 %v818
        %v2075 = vpop.f32.mrf.mxu0
        %v2076 = vadd.f32 %v2063, %v2075
        %v2077 = vpop.f32.mrf.mxu0
        %2078 = vdwg.mxu0
        %2079 = vmatpush.bf16.msra.mxu0 %v1772
        %2080 = vmatpush.bf16.msra.mxu0 %v1771
        %2081 = vmatpush.bf16.msra.mxu0 %v1770
        %2082 = vmatpush.bf16.msra.mxu0 %v1769
        %2083 = vmatpush.bf16.msra.mxu0 %v1768
        %2084 = vmatpush.bf16.msra.mxu0 %v1767
        %2085 = vmatpush.bf16.msra.mxu0 %v1766
        %2086 = vmatpush.bf16.msra.mxu0 %v1765
        %2087 = vmatmul.bf16.gmra.mxu0 %v819
        %v2088 = vpop.f32.mrf.mxu0
        %v2089 = vadd.f32 %v2076, %v2088
        %v2090 = vpop.f32.mrf.mxu0
        %2091 = vdwg.mxu0
        %2092 = vmatpush.bf16.msra.mxu0 %v1780
        %2093 = vmatpush.bf16.msra.mxu0 %v1779
        %2094 = vmatpush.bf16.msra.mxu0 %v1778
        %2095 = vmatpush.bf16.msra.mxu0 %v1777
        %2096 = vmatpush.bf16.msra.mxu0 %v1776
        %2097 = vmatpush.bf16.msra.mxu0 %v1775
        %2098 = vmatpush.bf16.msra.mxu0 %v1774
        %2099 = vmatpush.bf16.msra.mxu0 %v1773
        %2100 = vmatmul.bf16.gmra.mxu0 %v820
        %v2101 = vpop.f32.mrf.mxu0
        %v2102 = vadd.f32 %v2089, %v2101
        %v2103 = vpop.f32.mrf.mxu0
        %2104 = vdwg.mxu0
        %2105 = vmatpush.bf16.msra.mxu0 %v1788
        %2106 = vmatpush.bf16.msra.mxu0 %v1787
        %2107 = vmatpush.bf16.msra.mxu0 %v1786
        %2108 = vmatpush.bf16.msra.mxu0 %v1785
        %2109 = vmatpush.bf16.msra.mxu0 %v1784
        %2110 = vmatpush.bf16.msra.mxu0 %v1783
        %2111 = vmatpush.bf16.msra.mxu0 %v1782
        %2112 = vmatpush.bf16.msra.mxu0 %v1781
        %2113 = vmatmul.bf16.gmra.mxu0 %v821
        %v2114 = vpop.f32.mrf.mxu0
        %v2115 = vadd.f32 %v2102, %v2114
        %v2116 = vpop.f32.mrf.mxu0
        %2117 = vdwg.mxu0
        %2118 = vmatpush.bf16.msra.mxu0 %v1796
        %2119 = vmatpush.bf16.msra.mxu0 %v1795
        %2120 = vmatpush.bf16.msra.mxu0 %v1794
        %2121 = vmatpush.bf16.msra.mxu0 %v1793
        %2122 = vmatpush.bf16.msra.mxu0 %v1792
        %2123 = vmatpush.bf16.msra.mxu0 %v1791
        %2124 = vmatpush.bf16.msra.mxu0 %v1790
        %2125 = vmatpush.bf16.msra.mxu0 %v1789
        %2126 = vmatmul.bf16.gmra.mxu0 %v822
        %v2127 = vpop.f32.mrf.mxu0
        %v2128 = vadd.f32 %v2115, %v2127
        %v2129 = vpop.f32.mrf.mxu0
        %2130 = vdwg.mxu0
        %2131 = vmatpush.bf16.msra.mxu0 %v1804
        %2132 = vmatpush.bf16.msra.mxu0 %v1803
        %2133 = vmatpush.bf16.msra.mxu0 %v1802
        %2134 = vmatpush.bf16.msra.mxu0 %v1801
        %2135 = vmatpush.bf16.msra.mxu0 %v1800
        %2136 = vmatpush.bf16.msra.mxu0 %v1799
        %2137 = vmatpush.bf16.msra.mxu0 %v1798
        %2138 = vmatpush.bf16.msra.mxu0 %v1797
        %2139 = vmatmul.bf16.gmra.mxu0 %v823
        %v2140 = vpop.f32.mrf.mxu0
        %v2141 = vadd.f32 %v2128, %v2140
        %v2142 = vpop.f32.mrf.mxu0
        %2143 = vdwg.mxu0
        %2144 = vmatpush.bf16.msra.mxu0 %v1812
        %2145 = vmatpush.bf16.msra.mxu0 %v1811
        %2146 = vmatpush.bf16.msra.mxu0 %v1810
        %2147 = vmatpush.bf16.msra.mxu0 %v1809
        %2148 = vmatpush.bf16.msra.mxu0 %v1808
        %2149 = vmatpush.bf16.msra.mxu0 %v1807
        %2150 = vmatpush.bf16.msra.mxu0 %v1806
        %2151 = vmatpush.bf16.msra.mxu0 %v1805
        %2152 = vmatmul.bf16.gmra.mxu0 %v824
        %v2153 = vpop.f32.mrf.mxu0
        %v2154 = vadd.f32 %v2141, %v2153
        %v2155 = vpop.f32.mrf.mxu0
        %2156 = vdwg.mxu0
        %2157 = vmatpush.bf16.msra.mxu0 %v1820
        %2158 = vmatpush.bf16.msra.mxu0 %v1819
        %2159 = vmatpush.bf16.msra.mxu0 %v1818
        %2160 = vmatpush.bf16.msra.mxu0 %v1817
        %2161 = vmatpush.bf16.msra.mxu0 %v1816
        %2162 = vmatpush.bf16.msra.mxu0 %v1815
        %2163 = vmatpush.bf16.msra.mxu0 %v1814
        %2164 = vmatpush.bf16.msra.mxu0 %v1813
        %2165 = vmatmul.bf16.gmra.mxu0 %v825
        %v2166 = vpop.f32.mrf.mxu0
        %v2167 = vadd.f32 %v2154, %v2166
        %v2168 = vpop.f32.mrf.mxu0
        %2169 = vdwg.mxu0
        %2170 = vmatpush.bf16.msra.mxu0 %v1828
        %2171 = vmatpush.bf16.msra.mxu0 %v1827
        %2172 = vmatpush.bf16.msra.mxu0 %v1826
        %2173 = vmatpush.bf16.msra.mxu0 %v1825
        %2174 = vmatpush.bf16.msra.mxu0 %v1824
        %2175 = vmatpush.bf16.msra.mxu0 %v1823
        %2176 = vmatpush.bf16.msra.mxu0 %v1822
        %2177 = vmatpush.bf16.msra.mxu0 %v1821
        %2178 = vmatmul.bf16.gmra.mxu0 %v826
        %v2179 = vpop.f32.mrf.mxu0
        %v2180 = vadd.f32 %v2167, %v2179
        %v2181 = vpop.f32.mrf.mxu0
        %2182 = vdwg.mxu0
        %2183 = vmatpush.bf16.msra.mxu0 %v1836
        %2184 = vmatpush.bf16.msra.mxu0 %v1835
        %2185 = vmatpush.bf16.msra.mxu0 %v1834
        %2186 = vmatpush.bf16.msra.mxu0 %v1833
        %2187 = vmatpush.bf16.msra.mxu0 %v1832
        %2188 = vmatpush.bf16.msra.mxu0 %v1831
        %2189 = vmatpush.bf16.msra.mxu0 %v1830
        %2190 = vmatpush.bf16.msra.mxu0 %v1829
        %2191 = vmatmul.bf16.gmra.mxu0 %v827
        %v2192 = vpop.f32.mrf.mxu0
        %v2193 = vadd.f32 %v2180, %v2192
        %v2194 = vpop.f32.mrf.mxu0
        %2195 = vdwg.mxu0
        %2196 = vmatpush.bf16.msra.mxu0 %v1844
        %2197 = vmatpush.bf16.msra.mxu0 %v1843
        %2198 = vmatpush.bf16.msra.mxu0 %v1842
        %2199 = vmatpush.bf16.msra.mxu0 %v1841
        %2200 = vmatpush.bf16.msra.mxu0 %v1840
        %2201 = vmatpush.bf16.msra.mxu0 %v1839
        %2202 = vmatpush.bf16.msra.mxu0 %v1838
        %2203 = vmatpush.bf16.msra.mxu0 %v1837
        %2204 = vmatmul.bf16.gmra.mxu0 %v828
        %v2205 = vpop.f32.mrf.mxu0
        %v2206 = vadd.f32 %v2193, %v2205
        %v2207 = vpop.f32.mrf.mxu0
        %2208 = vdwg.mxu0
        %2209 = vmatpush.bf16.msra.mxu0 %v1852
        %2210 = vmatpush.bf16.msra.mxu0 %v1851
        %2211 = vmatpush.bf16.msra.mxu0 %v1850
        %2212 = vmatpush.bf16.msra.mxu0 %v1849
        %2213 = vmatpush.bf16.msra.mxu0 %v1848
        %2214 = vmatpush.bf16.msra.mxu0 %v1847
        %2215 = vmatpush.bf16.msra.mxu0 %v1846
        %2216 = vmatpush.bf16.msra.mxu0 %v1845
        %2217 = vmatmul.bf16.gmra.mxu0 %v829
        %v2218 = vpop.f32.mrf.mxu0
        %v2219 = vadd.f32 %v2206, %v2218
        %v2220 = vpop.f32.mrf.mxu0
        %2221 = vdwg.mxu0
        %2222 = vmatpush.bf16.msra.mxu0 %v1860
        %2223 = vmatpush.bf16.msra.mxu0 %v1859
        %2224 = vmatpush.bf16.msra.mxu0 %v1858
        %2225 = vmatpush.bf16.msra.mxu0 %v1857
        %2226 = vmatpush.bf16.msra.mxu0 %v1856
        %2227 = vmatpush.bf16.msra.mxu0 %v1855
        %2228 = vmatpush.bf16.msra.mxu0 %v1854
        %2229 = vmatpush.bf16.msra.mxu0 %v1853
        %2230 = vmatmul.bf16.gmra.mxu0 %v830
        %v2231 = vpop.f32.mrf.mxu0
        %v2232 = vadd.f32 %v2219, %v2231
        %v2233 = vpop.f32.mrf.mxu0
        %2234 = vdwg.mxu0
        %2235 = vmatpush.bf16.msra.mxu0 %v1868
        %2236 = vmatpush.bf16.msra.mxu0 %v1867
        %2237 = vmatpush.bf16.msra.mxu0 %v1866
        %2238 = vmatpush.bf16.msra.mxu0 %v1865
        %2239 = vmatpush.bf16.msra.mxu0 %v1864
        %2240 = vmatpush.bf16.msra.mxu0 %v1863
        %2241 = vmatpush.bf16.msra.mxu0 %v1862
        %2242 = vmatpush.bf16.msra.mxu0 %v1861
        %2243 = vmatmul.bf16.gmra.mxu0 %v831
        %v2244 = vpop.f32.mrf.mxu0
        %v2245 = vadd.f32 %v2232, %v2244
        %v2246 = vpop.f32.mrf.mxu0
        %2247 = vdwg.mxu0
        %2248 = vmatpush.bf16.msra.mxu0 %v1876
        %2249 = vmatpush.bf16.msra.mxu0 %v1875
        %2250 = vmatpush.bf16.msra.mxu0 %v1874
        %2251 = vmatpush.bf16.msra.mxu0 %v1873
        %2252 = vmatpush.bf16.msra.mxu0 %v1872
        %2253 = vmatpush.bf16.msra.mxu0 %v1871
        %2254 = vmatpush.bf16.msra.mxu0 %v1870
        %2255 = vmatpush.bf16.msra.mxu0 %v1869
        %2256 = vmatmul.bf16.gmra.mxu0 %v832
        %v2257 = vpop.f32.mrf.mxu0
        %v2258 = vadd.f32 %v2245, %v2257
        %v2259 = vpop.f32.mrf.mxu0
        %2260 = vdwg.mxu0
        %2261 = vmatpush.bf16.msra.mxu0 %v1884
        %2262 = vmatpush.bf16.msra.mxu0 %v1883
        %2263 = vmatpush.bf16.msra.mxu0 %v1882
        %2264 = vmatpush.bf16.msra.mxu0 %v1881
        %2265 = vmatpush.bf16.msra.mxu0 %v1880
        %2266 = vmatpush.bf16.msra.mxu0 %v1879
        %2267 = vmatpush.bf16.msra.mxu0 %v1878
        %2268 = vmatpush.bf16.msra.mxu0 %v1877
        %2269 = vmatmul.bf16.gmra.mxu0 %v833
        %v2270 = vpop.f32.mrf.mxu0
        %v2271 = vadd.f32 %v2258, %v2270
        %v2272 = vpop.f32.mrf.mxu0
        %2273 = vdwg.mxu0
        %2274 = vmatpush.bf16.msra.mxu0 %v1892
        %2275 = vmatpush.bf16.msra.mxu0 %v1891
        %2276 = vmatpush.bf16.msra.mxu0 %v1890
        %2277 = vmatpush.bf16.msra.mxu0 %v1889
        %2278 = vmatpush.bf16.msra.mxu0 %v1888
        %2279 = vmatpush.bf16.msra.mxu0 %v1887
        %2280 = vmatpush.bf16.msra.mxu0 %v1886
        %2281 = vmatpush.bf16.msra.mxu0 %v1885
        %2282 = vmatmul.bf16.gmra.mxu0 %v834
        %v2283 = vpop.f32.mrf.mxu0
        %v2284 = vadd.f32 %v2271, %v2283
        %v2285 = vpop.f32.mrf.mxu0
        %2286 = vdwg.mxu0
        %2287 = vmatpush.bf16.msra.mxu0 %v1900
        %2288 = vmatpush.bf16.msra.mxu0 %v1899
        %2289 = vmatpush.bf16.msra.mxu0 %v1898
        %2290 = vmatpush.bf16.msra.mxu0 %v1897
        %2291 = vmatpush.bf16.msra.mxu0 %v1896
        %2292 = vmatpush.bf16.msra.mxu0 %v1895
        %2293 = vmatpush.bf16.msra.mxu0 %v1894
        %2294 = vmatpush.bf16.msra.mxu0 %v1893
        %2295 = vmatmul.bf16.gmra.mxu0 %v835
        %v2296 = vpop.f32.mrf.mxu0
        %v2297 = vadd.f32 %v2284, %v2296
        %v2298 = vpop.f32.mrf.mxu0
        %2299 = vdwg.mxu0
        %v2300 = vadd.f32 %v836, %v2297
        %vm2301 = vcmask 408576
        %2302 = vst.msk [vmem:[#allocation2] sm:$0xff] %vm2301, %v2300
        %p2303 = scmp.eq.s32.totalorder %s35, 7
        // Predicated region
        $region97: #{tpu_custom_call.1} parent=91 // pred_check
          %p2304 = pneg %p2303
        $region98: #{tpu_custom_call.1} parent=91 // pred_check_branch
          %2306 = sbr.rel (%p2304) target = $region100
        $region99: #{tpu_custom_call.1} parent=91 // pred_region
          %v2307 = vld [vmem:[#allocation2] sm:$0xff]
          %v2308 = vld [vmem:[%s7] sm:$0x1]
          %v2310 = vperm.slane %v2308, 0
          %v2312 = vadd.f32 %v2307, %v2310
          %v2313 = vmax.f32 %v2312, 0.0
          %v2314 = vld [vmem:[%s711] sm:$0xff]
          %v2315 = vld [vmem:[%s711 + $0x8] sm:$0xff]
          %v2316 = vld [vmem:[%s711 + $0x10] sm:$0xff]
          %v2317 = vld [vmem:[%s711 + $0x18] sm:$0xff]
          %v2318 = vld [vmem:[%s711 + $0x20] sm:$0xff]
          %v2319 = vld [vmem:[%s711 + $0x28] sm:$0xff]
          %v2320 = vld [vmem:[%s711 + $0x30] sm:$0xff]
          %v2321 = vld [vmem:[%s711 + $0x38] sm:$0xff]
          %v2322 = vld [vmem:[%s711 + $0x40] sm:$0xff]
          %v2323 = vld [vmem:[%s711 + $0x48] sm:$0xff]
          %v2324 = vunpack.c.l.bf16 %v2314
          %v2325 = vunpack.c.h.bf16 %v2314
          %v2326 = vunpack.c.l.bf16 %v2315
          %v2327 = vunpack.c.h.bf16 %v2315
          %v2328 = vunpack.c.l.bf16 %v2316
          %v2329 = vunpack.c.h.bf16 %v2316
          %v2330 = vunpack.c.l.bf16 %v2317
          %v2331 = vunpack.c.h.bf16 %v2317
          %v2332 = vunpack.c.l.bf16 %v2318
          %v2333 = vunpack.c.h.bf16 %v2318
          %v2334 = vunpack.c.l.bf16 %v2319
          %v2335 = vunpack.c.h.bf16 %v2319
          %v2336 = vunpack.c.l.bf16 %v2320
          %v2337 = vunpack.c.h.bf16 %v2320
          %v2338 = vunpack.c.l.bf16 %v2321
          %v2339 = vunpack.c.h.bf16 %v2321
          %v2340 = vunpack.c.l.bf16 %v2322
          %v2341 = vunpack.c.h.bf16 %v2322
          %v2342 = vunpack.c.l.bf16 %v2323
          %v2343 = vunpack.c.h.bf16 %v2323
          %v2344 = vld [vmem:[%s716] sm:$0xff]
          %v2345 = vld [vmem:[%s716 + $0x8] sm:$0xff]
          %v2346 = vld [vmem:[%s716 + $0x10] sm:$0xff]
          %v2347 = vld [vmem:[%s716 + $0x18] sm:$0xff]
          %v2348 = vld [vmem:[%s716 + $0x20] sm:$0xff]
          %v2349 = vld [vmem:[%s716 + $0x28] sm:$0xff]
          %v2350 = vld [vmem:[%s716 + $0x30] sm:$0xff]
          %v2351 = vld [vmem:[%s716 + $0x38] sm:$0xff]
          %v2352 = vld [vmem:[%s716 + $0x40] sm:$0xff]
          %v2353 = vld [vmem:[%s716 + $0x48] sm:$0xff]
          %v2354 = vunpack.c.l.bf16 %v2344
          %v2355 = vunpack.c.h.bf16 %v2344
          %v2356 = vunpack.c.l.bf16 %v2345
          %v2357 = vunpack.c.h.bf16 %v2345
          %v2358 = vunpack.c.l.bf16 %v2346
          %v2359 = vunpack.c.h.bf16 %v2346
          %v2360 = vunpack.c.l.bf16 %v2347
          %v2361 = vunpack.c.h.bf16 %v2347
          %v2362 = vunpack.c.l.bf16 %v2348
          %v2363 = vunpack.c.h.bf16 %v2348
          %v2364 = vunpack.c.l.bf16 %v2349
          %v2365 = vunpack.c.h.bf16 %v2349
          %v2366 = vunpack.c.l.bf16 %v2350
          %v2367 = vunpack.c.h.bf16 %v2350
          %v2368 = vunpack.c.l.bf16 %v2351
          %v2369 = vunpack.c.h.bf16 %v2351
          %v2370 = vunpack.c.l.bf16 %v2352
          %v2371 = vunpack.c.h.bf16 %v2352
          %v2372 = vunpack.c.l.bf16 %v2353
          %v2373 = vunpack.c.h.bf16 %v2353
          %v2374 = vsub.f32 %v2324, %v2354
          %v2375 = vsub.f32 %v2325, %v2355
          %v2376 = vsub.f32 %v2326, %v2356
          %v2377 = vsub.f32 %v2327, %v2357
          %v2378 = vsub.f32 %v2328, %v2358
          %v2379 = vsub.f32 %v2329, %v2359
          %v2380 = vsub.f32 %v2330, %v2360
          %v2381 = vsub.f32 %v2331, %v2361
          %v2382 = vsub.f32 %v2332, %v2362
          %v2383 = vsub.f32 %v2333, %v2363
          %v2384 = vsub.f32 %v2334, %v2364
          %v2385 = vsub.f32 %v2335, %v2365
          %v2386 = vsub.f32 %v2336, %v2366
          %v2387 = vsub.f32 %v2337, %v2367
          %v2388 = vsub.f32 %v2338, %v2368
          %v2389 = vsub.f32 %v2339, %v2369
          %v2390 = vsub.f32 %v2340, %v2370
          %v2391 = vsub.f32 %v2341, %v2371
          %v2392 = vsub.f32 %v2342, %v2372
          %v2393 = vsub.f32 %v2343, %v2373
          %v2394 = vpack.c.bf16 %v2374, %v2374
          %v2395 = vpack.c.bf16 %v2375, %v2375
          %v2396 = vpack.c.bf16 %v2376, %v2376
          %v2397 = vpack.c.bf16 %v2377, %v2377
          %v2398 = vpack.c.bf16 %v2378, %v2378
          %v2399 = vpack.c.bf16 %v2379, %v2379
          %v2400 = vpack.c.bf16 %v2380, %v2380
          %v2401 = vpack.c.bf16 %v2381, %v2381
          %v2402 = vpack.c.bf16 %v2382, %v2382
          %v2403 = vpack.c.bf16 %v2383, %v2383
          %v2404 = vpack.c.bf16 %v2384, %v2384
          %v2405 = vpack.c.bf16 %v2385, %v2385
          %v2406 = vpack.c.bf16 %v2386, %v2386
          %v2407 = vpack.c.bf16 %v2387, %v2387
          %v2408 = vpack.c.bf16 %v2388, %v2388
          %v2409 = vpack.c.bf16 %v2389, %v2389
          %v2410 = vpack.c.bf16 %v2390, %v2390
          %v2411 = vpack.c.bf16 %v2391, %v2391
          %v2412 = vpack.c.bf16 %v2392, %v2392
          %v2413 = vpack.c.bf16 %v2393, %v2393
          %v2414 = vld [vmem:[%s721] sm:$0xff]
          %v2415 = vunpack.c.l.bf16 %v2414
          %v2416 = vunpack.c.h.bf16 %v2414
          %v2417 = vld [vmem:[%s726] sm:$0xff]
          %v2418 = vunpack.c.l.bf16 %v2417
          %v2419 = vunpack.c.h.bf16 %v2417
          %v2420 = vsub.f32 %v2415, %v2418
          %v2421 = vsub.f32 %v2416, %v2419
          %v2422 = vpack.c.bf16 %v2420, %v2420
          %v2423 = vpack.c.bf16 %v2421, %v2421
          %v2424 = vld [vmem:[%s8] sm:$0xf]
          %v2425 = vld [vmem:[%s8 + $0x4] sm:$0xf]
          %v2426 = vld [vmem:[%s8 + $0x8] sm:$0xf]
          %v2427 = vld [vmem:[%s8 + $0xc] sm:$0xf]
          %v2428 = vld [vmem:[%s8 + $0x10] sm:$0xf]
          %v2429 = vld [vmem:[%s8 + $0x14] sm:$0xf]
          %v2430 = vld [vmem:[%s8 + $0x18] sm:$0xf]
          %v2431 = vld [vmem:[%s8 + $0x1c] sm:$0xf]
          %v2432 = vld [vmem:[%s8 + $0x20] sm:$0xf]
          %v2433 = vld [vmem:[%s8 + $0x24] sm:$0xf]
          %v2434 = vld [vmem:[%s8 + $0x28] sm:$0xf]
          %v2435 = vld [vmem:[%s8 + $0x2c] sm:$0xf]
          %v2436 = vld [vmem:[%s8 + $0x30] sm:$0xf]
          %v2437 = vld [vmem:[%s8 + $0x34] sm:$0xf]
          %v2438 = vld [vmem:[%s8 + $0x38] sm:$0xf]
          %v2439 = vld [vmem:[%s8 + $0x3c] sm:$0xf]
          %v2440 = vld [vmem:[%s8 + $0x40] sm:$0xf]
          %v2441 = vld [vmem:[%s8 + $0x44] sm:$0xf]
          %v2442 = vld [vmem:[%s8 + $0x48] sm:$0xf]
          %v2443 = vld [vmem:[%s8 + $0x4c] sm:$0xf]
          %v2444 = vld [vmem:[%s8 + $0x50] sm:$0xf]
          %v2445 = vld [vmem:[%s8 + $0x54] sm:$0xf]
          %v2446 = vld [vmem:[%s8 + $0x58] sm:$0xf]
          %v2447 = vld [vmem:[%s8 + $0x5c] sm:$0xf]
          %v2448 = vld [vmem:[%s8 + $0x60] sm:$0xf]
          %v2449 = vld [vmem:[%s8 + $0x64] sm:$0xf]
          %v2450 = vld [vmem:[%s8 + $0x68] sm:$0xf]
          %v2451 = vld [vmem:[%s8 + $0x6c] sm:$0xf]
          %v2452 = vld [vmem:[%s8 + $0x70] sm:$0xf]
          %v2453 = vld [vmem:[%s8 + $0x74] sm:$0xf]
          %v2454 = vld [vmem:[%s8 + $0x78] sm:$0xf]
          %v2455 = vld [vmem:[%s8 + $0x7c] sm:$0xf]
          %v2456 = vld [vmem:[%s8 + $0x80] sm:$0xf]
          %v2457 = vld [vmem:[%s8 + $0x84] sm:$0xf]
          %v2458 = vld [vmem:[%s8 + $0x88] sm:$0xf]
          %v2459 = vld [vmem:[%s8 + $0x8c] sm:$0xf]
          %v2460 = vld [vmem:[%s8 + $0x90] sm:$0xf]
          %v2461 = vld [vmem:[%s8 + $0x94] sm:$0xf]
          %v2462 = vld [vmem:[%s8 + $0x98] sm:$0xf]
          %v2463 = vld [vmem:[%s8 + $0x9c] sm:$0xf]
          %v2464 = vld [vmem:[%s8 + $0xa0] sm:$0xf]
          %v2465 = vld [vmem:[%s8 + $0xa4] sm:$0xf]
          %v2466 = vld [vmem:[%s8 + $0xa8] sm:$0xf]
          %v2467 = vld [vmem:[%s8 + $0xac] sm:$0xf]
          %v2468 = vld [vmem:[%s8 + $0xb0] sm:$0xf]
          %v2469 = vld [vmem:[%s8 + $0xb4] sm:$0xf]
          %v2470 = vld [vmem:[%s8 + $0xb8] sm:$0xf]
          %v2471 = vld [vmem:[%s8 + $0xbc] sm:$0xf]
          %v2472 = vld [vmem:[%s8 + $0xc0] sm:$0xf]
          %v2473 = vld [vmem:[%s8 + $0xc4] sm:$0xf]
          %v2474 = vld [vmem:[%s8 + $0xc8] sm:$0xf]
          %v2475 = vld [vmem:[%s8 + $0xcc] sm:$0xf]
          %v2476 = vld [vmem:[%s8 + $0xd0] sm:$0xf]
          %v2477 = vld [vmem:[%s8 + $0xd4] sm:$0xf]
          %v2478 = vld [vmem:[%s8 + $0xd8] sm:$0xf]
          %v2479 = vld [vmem:[%s8 + $0xdc] sm:$0xf]
          %v2480 = vld [vmem:[%s8 + $0xe0] sm:$0xf]
          %v2481 = vld [vmem:[%s8 + $0xe4] sm:$0xf]
          %v2482 = vld [vmem:[%s8 + $0xe8] sm:$0xf]
          %v2483 = vld [vmem:[%s8 + $0xec] sm:$0xf]
          %v2484 = vld [vmem:[%s8 + $0xf0] sm:$0xf]
          %v2485 = vld [vmem:[%s8 + $0xf4] sm:$0xf]
          %v2486 = vld [vmem:[%s8 + $0xf8] sm:$0xf]
          %v2487 = vld [vmem:[%s8 + $0xfc] sm:$0xf]
          %v2488 = vld [vmem:[%s8 + $0x100] sm:$0xf]
          %v2489 = vld [vmem:[%s8 + $0x104] sm:$0xf]
          %v2490 = vld [vmem:[%s8 + $0x108] sm:$0xf]
          %v2491 = vld [vmem:[%s8 + $0x10c] sm:$0xf]
          %v2492 = vld [vmem:[%s8 + $0x110] sm:$0xf]
          %v2493 = vld [vmem:[%s8 + $0x114] sm:$0xf]
          %v2494 = vld [vmem:[%s8 + $0x118] sm:$0xf]
          %v2495 = vld [vmem:[%s8 + $0x11c] sm:$0xf]
          %v2496 = vld [vmem:[%s8 + $0x120] sm:$0xf]
          %v2497 = vld [vmem:[%s8 + $0x124] sm:$0xf]
          %v2498 = vld [vmem:[%s8 + $0x128] sm:$0xf]
          %v2499 = vld [vmem:[%s8 + $0x12c] sm:$0xf]
          %v2500 = vld [vmem:[%s8 + $0x130] sm:$0xf]
          %v2501 = vld [vmem:[%s8 + $0x134] sm:$0xf]
          %v2502 = vld [vmem:[%s8 + $0x138] sm:$0xf]
          %v2503 = vld [vmem:[%s8 + $0x13c] sm:$0xf]
          %v2504 = vld [vmem:[%s8 + $0x140] sm:$0xf]
          %v2505 = vld [vmem:[%s8 + $0x144] sm:$0xf]
          %v2506 = vld [vmem:[%s8 + $0x148] sm:$0xf]
          %v2507 = vld [vmem:[%s8 + $0x14c] sm:$0xf]
          %v2508 = vld [vmem:[%s8 + $0x150] sm:$0xf]
          %v2509 = vld [vmem:[%s8 + $0x154] sm:$0xf]
          %v2510 = vld [vmem:[%s8 + $0x158] sm:$0xf]
          %v2511 = vld [vmem:[%s8 + $0x15c] sm:$0xf]
          %v2512 = vld [vmem:[%s8 + $0x160] sm:$0xf]
          %v2513 = vld [vmem:[%s8 + $0x164] sm:$0xf]
          %v2514 = vld [vmem:[%s8 + $0x168] sm:$0xf]
          %v2515 = vld [vmem:[%s8 + $0x16c] sm:$0xf]
          %v2516 = vld [vmem:[%s8 + $0x170] sm:$0xf]
          %v2517 = vld [vmem:[%s8 + $0x174] sm:$0xf]
          %v2518 = vld [vmem:[%s8 + $0x178] sm:$0xf]
          %v2519 = vld [vmem:[%s8 + $0x17c] sm:$0xf]
          %v2520 = vld [vmem:[%s8 + $0x180] sm:$0xf]
          %v2521 = vld [vmem:[%s8 + $0x184] sm:$0xf]
          %v2522 = vld [vmem:[%s8 + $0x188] sm:$0xf]
          %v2523 = vld [vmem:[%s8 + $0x18c] sm:$0xf]
          %v2524 = vld [vmem:[%s8 + $0x190] sm:$0xf]
          %v2525 = vld [vmem:[%s8 + $0x194] sm:$0xf]
          %v2526 = vld [vmem:[%s8 + $0x198] sm:$0xf]
          %v2527 = vld [vmem:[%s8 + $0x19c] sm:$0xf]
          %v2528 = vld [vmem:[%s8 + $0x1a0] sm:$0xf]
          %v2529 = vld [vmem:[%s8 + $0x1a4] sm:$0xf]
          %v2530 = vld [vmem:[%s8 + $0x1a8] sm:$0xf]
          %v2531 = vld [vmem:[%s8 + $0x1ac] sm:$0xf]
          %v2532 = vld [vmem:[%s8 + $0x1b0] sm:$0xf]
          %v2533 = vld [vmem:[%s8 + $0x1b4] sm:$0xf]
          %v2534 = vld [vmem:[%s8 + $0x1b8] sm:$0xf]
          %v2535 = vld [vmem:[%s8 + $0x1bc] sm:$0xf]
          %v2536 = vld [vmem:[%s8 + $0x1c0] sm:$0xf]
          %v2537 = vld [vmem:[%s8 + $0x1c4] sm:$0xf]
          %v2538 = vld [vmem:[%s8 + $0x1c8] sm:$0xf]
          %v2539 = vld [vmem:[%s8 + $0x1cc] sm:$0xf]
          %v2540 = vld [vmem:[%s8 + $0x1d0] sm:$0xf]
          %v2541 = vld [vmem:[%s8 + $0x1d4] sm:$0xf]
          %v2542 = vld [vmem:[%s8 + $0x1d8] sm:$0xf]
          %v2543 = vld [vmem:[%s8 + $0x1dc] sm:$0xf]
          %v2544 = vld [vmem:[%s8 + $0x1e0] sm:$0xf]
          %v2545 = vld [vmem:[%s8 + $0x1e4] sm:$0xf]
          %v2546 = vld [vmem:[%s8 + $0x1e8] sm:$0xf]
          %v2547 = vld [vmem:[%s8 + $0x1ec] sm:$0xf]
          %v2548 = vld [vmem:[%s8 + $0x1f0] sm:$0xf]
          %v2549 = vld [vmem:[%s8 + $0x1f4] sm:$0xf]
          %v2550 = vld [vmem:[%s8 + $0x1f8] sm:$0xf]
          %v2551 = vld [vmem:[%s8 + $0x1fc] sm:$0xf]
          %v2552 = vld [vmem:[%s8 + $0x200] sm:$0xf]
          %v2553 = vld [vmem:[%s8 + $0x204] sm:$0xf]
          %v2554 = vld [vmem:[%s8 + $0x208] sm:$0xf]
          %v2555 = vld [vmem:[%s8 + $0x20c] sm:$0xf]
          %v2556 = vld [vmem:[%s8 + $0x210] sm:$0xf]
          %v2557 = vld [vmem:[%s8 + $0x214] sm:$0xf]
          %v2558 = vld [vmem:[%s8 + $0x218] sm:$0xf]
          %v2559 = vld [vmem:[%s8 + $0x21c] sm:$0xf]
          %v2560 = vld [vmem:[%s8 + $0x220] sm:$0xf]
          %v2561 = vld [vmem:[%s8 + $0x224] sm:$0xf]
          %v2562 = vld [vmem:[%s8 + $0x228] sm:$0xf]
          %v2563 = vld [vmem:[%s8 + $0x22c] sm:$0xf]
          %v2564 = vld [vmem:[%s8 + $0x230] sm:$0xf]
          %v2565 = vld [vmem:[%s8 + $0x234] sm:$0xf]
          %v2566 = vld [vmem:[%s8 + $0x238] sm:$0xf]
          %v2567 = vld [vmem:[%s8 + $0x23c] sm:$0xf]
          %v2568 = vld [vmem:[%s8 + $0x240] sm:$0xf]
          %v2569 = vld [vmem:[%s8 + $0x244] sm:$0xf]
          %v2570 = vld [vmem:[%s8 + $0x248] sm:$0xf]
          %v2571 = vld [vmem:[%s8 + $0x24c] sm:$0xf]
          %v2572 = vld [vmem:[%s8 + $0x250] sm:$0xf]
          %v2573 = vld [vmem:[%s8 + $0x254] sm:$0xf]
          %v2574 = vld [vmem:[%s8 + $0x258] sm:$0xf]
          %v2575 = vld [vmem:[%s8 + $0x25c] sm:$0xf]
          %v2576 = vld [vmem:[%s8 + $0x260] sm:$0xf]
          %v2577 = vld [vmem:[%s8 + $0x264] sm:$0xf]
          %v2578 = vld [vmem:[%s8 + $0x268] sm:$0xf]
          %v2579 = vld [vmem:[%s8 + $0x26c] sm:$0xf]
          %v2580 = vld [vmem:[%s8 + $0x270] sm:$0xf]
          %v2581 = vld [vmem:[%s8 + $0x274] sm:$0xf]
          %v2582 = vld [vmem:[%s8 + $0x278] sm:$0xf]
          %v2583 = vld [vmem:[%s8 + $0x27c] sm:$0xf]
          %v2584 = vld [vmem:[%s8 + $0x280] sm:$0xf]
          %v2585 = vld [vmem:[%s8 + $0x284] sm:$0xf]
          %v2586 = vld [vmem:[%s8 + $0x288] sm:$0xf]
          %v2587 = vld [vmem:[%s8 + $0x28c] sm:$0xf]
          %v2588 = vld [vmem:[%s8 + $0x290] sm:$0xf]
          %v2589 = vld [vmem:[%s8 + $0x294] sm:$0xf]
          %v2590 = vld [vmem:[%s8 + $0x298] sm:$0xf]
          %v2591 = vld [vmem:[%s8 + $0x29c] sm:$0xf]
          %v2592 = vld [vmem:[%s8 + $0x2a0] sm:$0xf]
          %v2593 = vld [vmem:[%s8 + $0x2a4] sm:$0xf]
          %v2594 = vld [vmem:[%s8 + $0x2a8] sm:$0xf]
          %v2595 = vld [vmem:[%s8 + $0x2ac] sm:$0xf]
          %v2596 = vld [vmem:[%s8 + $0x2b0] sm:$0xf]
          %v2597 = vld [vmem:[%s8 + $0x2b4] sm:$0xf]
          %v2598 = vld [vmem:[%s8 + $0x2b8] sm:$0xf]
          %v2599 = vld [vmem:[%s8 + $0x2bc] sm:$0xf]
          %v2600 = vld [vmem:[%s8 + $0x2c0] sm:$0xf]
          %v2601 = vld [vmem:[%s8 + $0x2c4] sm:$0xf]
          %v2602 = vld [vmem:[%s8 + $0x2c8] sm:$0xf]
          %v2603 = vld [vmem:[%s8 + $0x2cc] sm:$0xf]
          %v2604 = vld [vmem:[%s8 + $0x2d0] sm:$0xf]
          %v2605 = vld [vmem:[%s8 + $0x2d4] sm:$0xf]
          %v2606 = vld [vmem:[%s8 + $0x2d8] sm:$0xf]
          %v2607 = vld [vmem:[%s8 + $0x2dc] sm:$0xf]
          %v2608 = vld [vmem:[%s8 + $0x2e0] sm:$0xf]
          %v2609 = vld [vmem:[%s8 + $0x2e4] sm:$0xf]
          %v2610 = vld [vmem:[%s8 + $0x2e8] sm:$0xf]
          %v2611 = vld [vmem:[%s8 + $0x2ec] sm:$0xf]
          %v2612 = vld [vmem:[%s8 + $0x2f0] sm:$0xf]
          %v2613 = vld [vmem:[%s8 + $0x2f4] sm:$0xf]
          %v2614 = vld [vmem:[%s8 + $0x2f8] sm:$0xf]
          %v2615 = vld [vmem:[%s8 + $0x2fc] sm:$0xf]
          %v2616 = vld [vmem:[%s8 + $0x300] sm:$0xf]
          %v2617 = vld [vmem:[%s8 + $0x304] sm:$0xf]
          %v2618 = vld [vmem:[%s8 + $0x308] sm:$0xf]
          %v2619 = vld [vmem:[%s8 + $0x30c] sm:$0xf]
          %v2620 = vld [vmem:[%s8 + $0x310] sm:$0xf]
          %v2621 = vld [vmem:[%s8 + $0x314] sm:$0xf]
          %v2622 = vld [vmem:[%s8 + $0x318] sm:$0xf]
          %v2623 = vld [vmem:[%s8 + $0x31c] sm:$0xf]
          %v2624 = vld [vmem:[%s8 + $0x320] sm:$0xf]
          %v2625 = vld [vmem:[%s8 + $0x324] sm:$0xf]
          %v2626 = vld [vmem:[%s8 + $0x328] sm:$0xf]
          %v2627 = vld [vmem:[%s8 + $0x32c] sm:$0xf]
          %v2628 = vld [vmem:[%s8 + $0x330] sm:$0xf]
          %v2629 = vld [vmem:[%s8 + $0x334] sm:$0xf]
          %v2630 = vld [vmem:[%s8 + $0x338] sm:$0xf]
          %v2631 = vld [vmem:[%s8 + $0x33c] sm:$0xf]
          %v2632 = vld [vmem:[%s8 + $0x340] sm:$0xf]
          %v2633 = vld [vmem:[%s8 + $0x344] sm:$0xf]
          %v2634 = vld [vmem:[%s8 + $0x348] sm:$0xf]
          %v2635 = vld [vmem:[%s8 + $0x34c] sm:$0xf]
          %v2636 = vld [vmem:[%s8 + $0x350] sm:$0xf]
          %v2637 = vld [vmem:[%s8 + $0x354] sm:$0xf]
          %v2638 = vld [vmem:[%s8 + $0x358] sm:$0xf]
          %v2639 = vld [vmem:[%s8 + $0x35c] sm:$0xf]
          %v2640 = vld [vmem:[%s8 + $0x360] sm:$0xf]
          %v2641 = vld [vmem:[%s8 + $0x364] sm:$0xf]
          %v2642 = vld [vmem:[%s8 + $0x368] sm:$0xf]
          %v2643 = vld [vmem:[%s8 + $0x36c] sm:$0xf]
          %v2644 = vld [vmem:[%s8 + $0x370] sm:$0xf]
          %v2645 = vld [vmem:[%s8 + $0x374] sm:$0xf]
          %v2646 = vld [vmem:[%s8 + $0x378] sm:$0xf]
          %v2647 = vld [vmem:[%s8 + $0x37c] sm:$0xf]
          %v2648 = vld [vmem:[%s8 + $0x380] sm:$0xf]
          %v2649 = vld [vmem:[%s8 + $0x384] sm:$0xf]
          %v2650 = vld [vmem:[%s8 + $0x388] sm:$0xf]
          %v2651 = vld [vmem:[%s8 + $0x38c] sm:$0xf]
          %v2652 = vld [vmem:[%s8 + $0x390] sm:$0xf]
          %v2653 = vld [vmem:[%s8 + $0x394] sm:$0xf]
          %v2654 = vld [vmem:[%s8 + $0x398] sm:$0xf]
          %v2655 = vld [vmem:[%s8 + $0x39c] sm:$0xf]
          %v2656 = vld [vmem:[%s8 + $0x3a0] sm:$0xf]
          %v2657 = vld [vmem:[%s8 + $0x3a4] sm:$0xf]
          %v2658 = vld [vmem:[%s8 + $0x3a8] sm:$0xf]
          %v2659 = vld [vmem:[%s8 + $0x3ac] sm:$0xf]
          %v2660 = vld [vmem:[%s8 + $0x3b0] sm:$0xf]
          %v2661 = vld [vmem:[%s8 + $0x3b4] sm:$0xf]
          %v2662 = vld [vmem:[%s8 + $0x3b8] sm:$0xf]
          %v2663 = vld [vmem:[%s8 + $0x3bc] sm:$0xf]
          %v2664 = vld [vmem:[%s8 + $0x3c0] sm:$0xf]
          %v2665 = vld [vmem:[%s8 + $0x3c4] sm:$0xf]
          %v2666 = vld [vmem:[%s8 + $0x3c8] sm:$0xf]
          %v2667 = vld [vmem:[%s8 + $0x3cc] sm:$0xf]
          %v2668 = vld [vmem:[%s8 + $0x3d0] sm:$0xf]
          %v2669 = vld [vmem:[%s8 + $0x3d4] sm:$0xf]
          %v2670 = vld [vmem:[%s8 + $0x3d8] sm:$0xf]
          %v2671 = vld [vmem:[%s8 + $0x3dc] sm:$0xf]
          %v2672 = vld [vmem:[%s8 + $0x3e0] sm:$0xf]
          %v2673 = vld [vmem:[%s8 + $0x3e4] sm:$0xf]
          %v2674 = vld [vmem:[%s8 + $0x3e8] sm:$0xf]
          %v2675 = vld [vmem:[%s8 + $0x3ec] sm:$0xf]
          %v2676 = vld [vmem:[%s8 + $0x3f0] sm:$0xf]
          %v2677 = vld [vmem:[%s8 + $0x3f4] sm:$0xf]
          %v2678 = vld [vmem:[%s8 + $0x3f8] sm:$0xf]
          %v2679 = vld [vmem:[%s8 + $0x3fc] sm:$0xf]
          %v2680 = vld [vmem:[%s8 + $0x400] sm:$0xf]
          %v2681 = vld [vmem:[%s8 + $0x404] sm:$0xf]
          %v2682 = vld [vmem:[%s8 + $0x408] sm:$0xf]
          %v2683 = vld [vmem:[%s8 + $0x40c] sm:$0xf]
          %v2684 = vld [vmem:[%s8 + $0x410] sm:$0xf]
          %v2685 = vld [vmem:[%s8 + $0x414] sm:$0xf]
          %v2686 = vld [vmem:[%s8 + $0x418] sm:$0xf]
          %v2687 = vld [vmem:[%s8 + $0x41c] sm:$0xf]
          %v2688 = vld [vmem:[%s8 + $0x420] sm:$0xf]
          %v2689 = vld [vmem:[%s8 + $0x424] sm:$0xf]
          %v2690 = vld [vmem:[%s8 + $0x428] sm:$0xf]
          %v2691 = vld [vmem:[%s8 + $0x42c] sm:$0xf]
          %v2692 = vld [vmem:[%s8 + $0x430] sm:$0xf]
          %v2693 = vld [vmem:[%s8 + $0x434] sm:$0xf]
          %v2694 = vld [vmem:[%s8 + $0x438] sm:$0xf]
          %v2695 = vld [vmem:[%s8 + $0x43c] sm:$0xf]
          %v2696 = vld [vmem:[%s8 + $0x440] sm:$0xf]
          %v2697 = vld [vmem:[%s8 + $0x444] sm:$0xf]
          %v2698 = vld [vmem:[%s8 + $0x448] sm:$0xf]
          %v2699 = vld [vmem:[%s8 + $0x44c] sm:$0xf]
          %v2700 = vld [vmem:[%s8 + $0x450] sm:$0xf]
          %v2701 = vld [vmem:[%s8 + $0x454] sm:$0xf]
          %v2702 = vld [vmem:[%s8 + $0x458] sm:$0xf]
          %v2703 = vld [vmem:[%s8 + $0x45c] sm:$0xf]
          %v2704 = vld [vmem:[%s8 + $0x460] sm:$0xf]
          %v2705 = vld [vmem:[%s8 + $0x464] sm:$0xf]
          %v2706 = vld [vmem:[%s8 + $0x468] sm:$0xf]
          %v2707 = vld [vmem:[%s8 + $0x46c] sm:$0xf]
          %v2708 = vld [vmem:[%s8 + $0x470] sm:$0xf]
          %v2709 = vld [vmem:[%s8 + $0x474] sm:$0xf]
          %v2710 = vld [vmem:[%s8 + $0x478] sm:$0xf]
          %v2711 = vld [vmem:[%s8 + $0x47c] sm:$0xf]
          %v2712 = vld [vmem:[%s8 + $0x480] sm:$0xf]
          %v2713 = vld [vmem:[%s8 + $0x484] sm:$0xf]
          %v2714 = vld [vmem:[%s8 + $0x488] sm:$0xf]
          %v2715 = vld [vmem:[%s8 + $0x48c] sm:$0xf]
          %v2716 = vld [vmem:[%s8 + $0x490] sm:$0xf]
          %v2717 = vld [vmem:[%s8 + $0x494] sm:$0xf]
          %v2718 = vld [vmem:[%s8 + $0x498] sm:$0xf]
          %v2719 = vld [vmem:[%s8 + $0x49c] sm:$0xf]
          %v2720 = vld [vmem:[%s8 + $0x4a0] sm:$0xf]
          %v2721 = vld [vmem:[%s8 + $0x4a4] sm:$0xf]
          %v2722 = vld [vmem:[%s8 + $0x4a8] sm:$0xf]
          %v2723 = vld [vmem:[%s8 + $0x4ac] sm:$0xf]
          %v2724 = vld [vmem:[%s8 + $0x4b0] sm:$0xf]
          %v2725 = vld [vmem:[%s8 + $0x4b4] sm:$0xf]
          %v2726 = vld [vmem:[%s8 + $0x4b8] sm:$0xf]
          %v2727 = vld [vmem:[%s8 + $0x4bc] sm:$0xf]
          %v2728 = vld [vmem:[%s8 + $0x4c0] sm:$0xf]
          %v2729 = vld [vmem:[%s8 + $0x4c4] sm:$0xf]
          %v2730 = vld [vmem:[%s8 + $0x4c8] sm:$0xf]
          %v2731 = vld [vmem:[%s8 + $0x4cc] sm:$0xf]
          %v2732 = vld [vmem:[%s8 + $0x4d0] sm:$0xf]
          %v2733 = vld [vmem:[%s8 + $0x4d4] sm:$0xf]
          %v2734 = vld [vmem:[%s8 + $0x4d8] sm:$0xf]
          %v2735 = vld [vmem:[%s8 + $0x4dc] sm:$0xf]
          %v2736 = vld [vmem:[%s8 + $0x4e0] sm:$0xf]
          %v2737 = vld [vmem:[%s8 + $0x4e4] sm:$0xf]
          %v2738 = vld [vmem:[%s8 + $0x4e8] sm:$0xf]
          %v2739 = vld [vmem:[%s8 + $0x4ec] sm:$0xf]
          %v2740 = vld [vmem:[%s8 + $0x4f0] sm:$0xf]
          %v2741 = vld [vmem:[%s8 + $0x4f4] sm:$0xf]
          %v2742 = vld [vmem:[%s8 + $0x4f8] sm:$0xf]
          %v2743 = vld [vmem:[%s8 + $0x4fc] sm:$0xf]
          %v2744 = vld [vmem:[%s9] sm:$0x1]
          %v2746 = vperm.slane %v2744, 0
          %v3068 = vunpack.c.l.b16 %v2424
          %v3069 = vunpack.c.l.b16 %v2425
          %v3070 = vunpack.c.l.b16 %v2426
          %v3071 = vunpack.c.l.b16 %v2427
          %v3072 = vunpack.c.l.b16 %v2428
          %v3073 = vunpack.c.l.b16 %v2429
          %v3074 = vunpack.c.l.b16 %v2430
          %v3075 = vunpack.c.l.b16 %v2431
          %v3076 = vunpack.c.l.b16 %v2432
          %v3077 = vunpack.c.l.b16 %v2433
          %v3078 = vunpack.c.l.b16 %v2434
          %v3079 = vunpack.c.l.b16 %v2435
          %v3080 = vunpack.c.l.b16 %v2436
          %v3081 = vunpack.c.l.b16 %v2437
          %v3082 = vunpack.c.l.b16 %v2438
          %v3083 = vunpack.c.l.b16 %v2439
          %v3084 = vunpack.c.l.b16 %v2440
          %v3085 = vunpack.c.l.b16 %v2441
          %v3086 = vunpack.c.l.b16 %v2442
          %v3087 = vunpack.c.l.b16 %v2443
          %v3088 = vunpack.c.l.b16 %v2444
          %v3089 = vunpack.c.l.b16 %v2445
          %v3090 = vunpack.c.l.b16 %v2446
          %v3091 = vunpack.c.l.b16 %v2447
          %v3092 = vunpack.c.l.b16 %v2448
          %v3093 = vunpack.c.l.b16 %v2449
          %v3094 = vunpack.c.l.b16 %v2450
          %v3095 = vunpack.c.l.b16 %v2451
          %v3096 = vunpack.c.l.b16 %v2452
          %v3097 = vunpack.c.l.b16 %v2453
          %v3098 = vunpack.c.l.b16 %v2454
          %v3099 = vunpack.c.l.b16 %v2455
          %v3100 = vunpack.c.l.b16 %v2456
          %v3101 = vunpack.c.l.b16 %v2457
          %v3102 = vunpack.c.l.b16 %v2458
          %v3103 = vunpack.c.l.b16 %v2459
          %v3104 = vunpack.c.l.b16 %v2460
          %v3105 = vunpack.c.l.b16 %v2461
          %v3106 = vunpack.c.l.b16 %v2462
          %v3107 = vunpack.c.l.b16 %v2463
          %v3108 = vunpack.c.l.b16 %v2464
          %v3109 = vunpack.c.l.b16 %v2465
          %v3110 = vunpack.c.l.b16 %v2466
          %v3111 = vunpack.c.l.b16 %v2467
          %v3112 = vunpack.c.l.b16 %v2468
          %v3113 = vunpack.c.l.b16 %v2469
          %v3114 = vunpack.c.l.b16 %v2470
          %v3115 = vunpack.c.l.b16 %v2471
          %v3116 = vunpack.c.l.b16 %v2472
          %v3117 = vunpack.c.l.b16 %v2473
          %v3118 = vunpack.c.l.b16 %v2474
          %v3119 = vunpack.c.l.b16 %v2475
          %v3120 = vunpack.c.l.b16 %v2476
          %v3121 = vunpack.c.l.b16 %v2477
          %v3122 = vunpack.c.l.b16 %v2478
          %v3123 = vunpack.c.l.b16 %v2479
          %v3124 = vunpack.c.l.b16 %v2480
          %v3125 = vunpack.c.l.b16 %v2481
          %v3126 = vunpack.c.l.b16 %v2482
          %v3127 = vunpack.c.l.b16 %v2483
          %v3128 = vunpack.c.l.b16 %v2484
          %v3129 = vunpack.c.l.b16 %v2485
          %v3130 = vunpack.c.l.b16 %v2486
          %v3131 = vunpack.c.l.b16 %v2487
          %v3132 = vunpack.c.l.b16 %v2488
          %v3133 = vunpack.c.l.b16 %v2489
          %v3134 = vunpack.c.l.b16 %v2490
          %v3135 = vunpack.c.l.b16 %v2491
          %v3136 = vunpack.c.l.b16 %v2492
          %v3137 = vunpack.c.l.b16 %v2493
          %v3138 = vunpack.c.l.b16 %v2494
          %v3139 = vunpack.c.l.b16 %v2495
          %v3140 = vunpack.c.l.b16 %v2496
          %v3141 = vunpack.c.l.b16 %v2497
          %v3142 = vunpack.c.l.b16 %v2498
          %v3143 = vunpack.c.l.b16 %v2499
          %v3144 = vunpack.c.l.b16 %v2500
          %v3145 = vunpack.c.l.b16 %v2501
          %v3146 = vunpack.c.l.b16 %v2502
          %v3147 = vunpack.c.l.b16 %v2503
          %v3148 = vunpack.c.l.b16 %v2504
          %v3149 = vunpack.c.l.b16 %v2505
          %v3150 = vunpack.c.l.b16 %v2506
          %v3151 = vunpack.c.l.b16 %v2507
          %v3152 = vunpack.c.l.b16 %v2508
          %v3153 = vunpack.c.l.b16 %v2509
          %v3154 = vunpack.c.l.b16 %v2510
          %v3155 = vunpack.c.l.b16 %v2511
          %v3156 = vunpack.c.l.b16 %v2512
          %v3157 = vunpack.c.l.b16 %v2513
          %v3158 = vunpack.c.l.b16 %v2514
          %v3159 = vunpack.c.l.b16 %v2515
          %v3160 = vunpack.c.l.b16 %v2516
          %v3161 = vunpack.c.l.b16 %v2517
          %v3162 = vunpack.c.l.b16 %v2518
          %v3163 = vunpack.c.l.b16 %v2519
          %v3164 = vunpack.c.l.b16 %v2520
          %v3165 = vunpack.c.l.b16 %v2521
          %v3166 = vunpack.c.l.b16 %v2522
          %v3167 = vunpack.c.l.b16 %v2523
          %v3168 = vunpack.c.l.b16 %v2524
          %v3169 = vunpack.c.l.b16 %v2525
          %v3170 = vunpack.c.l.b16 %v2526
          %v3171 = vunpack.c.l.b16 %v2527
          %v3172 = vunpack.c.l.b16 %v2528
          %v3173 = vunpack.c.l.b16 %v2529
          %v3174 = vunpack.c.l.b16 %v2530
          %v3175 = vunpack.c.l.b16 %v2531
          %v3176 = vunpack.c.l.b16 %v2532
          %v3177 = vunpack.c.l.b16 %v2533
          %v3178 = vunpack.c.l.b16 %v2534
          %v3179 = vunpack.c.l.b16 %v2535
          %v3180 = vunpack.c.l.b16 %v2536
          %v3181 = vunpack.c.l.b16 %v2537
          %v3182 = vunpack.c.l.b16 %v2538
          %v3183 = vunpack.c.l.b16 %v2539
          %v3184 = vunpack.c.l.b16 %v2540
          %v3185 = vunpack.c.l.b16 %v2541
          %v3186 = vunpack.c.l.b16 %v2542
          %v3187 = vunpack.c.l.b16 %v2543
          %v3188 = vunpack.c.l.b16 %v2544
          %v3189 = vunpack.c.l.b16 %v2545
          %v3190 = vunpack.c.l.b16 %v2546
          %v3191 = vunpack.c.l.b16 %v2547
          %v3192 = vunpack.c.l.b16 %v2548
          %v3193 = vunpack.c.l.b16 %v2549
          %v3194 = vunpack.c.l.b16 %v2550
          %v3195 = vunpack.c.l.b16 %v2551
          %v3196 = vunpack.c.l.b16 %v2552
          %v3197 = vunpack.c.l.b16 %v2553
          %v3198 = vunpack.c.l.b16 %v2554
          %v3199 = vunpack.c.l.b16 %v2555
          %v3200 = vunpack.c.l.b16 %v2556
          %v3201 = vunpack.c.l.b16 %v2557
          %v3202 = vunpack.c.l.b16 %v2558
          %v3203 = vunpack.c.l.b16 %v2559
          %v3204 = vunpack.c.l.b16 %v2560
          %v3205 = vunpack.c.l.b16 %v2561
          %v3206 = vunpack.c.l.b16 %v2562
          %v3207 = vunpack.c.l.b16 %v2563
          %v3208 = vunpack.c.l.b16 %v2564
          %v3209 = vunpack.c.l.b16 %v2565
          %v3210 = vunpack.c.l.b16 %v2566
          %v3211 = vunpack.c.l.b16 %v2567
          %v3212 = vunpack.c.l.b16 %v2568
          %v3213 = vunpack.c.l.b16 %v2569
          %v3214 = vunpack.c.l.b16 %v2570
          %v3215 = vunpack.c.l.b16 %v2571
          %v3216 = vunpack.c.l.b16 %v2572
          %v3217 = vunpack.c.l.b16 %v2573
          %v3218 = vunpack.c.l.b16 %v2574
          %v3219 = vunpack.c.l.b16 %v2575
          %v3220 = vunpack.c.l.b16 %v2576
          %v3221 = vunpack.c.l.b16 %v2577
          %v3222 = vunpack.c.l.b16 %v2578
          %v3223 = vunpack.c.l.b16 %v2579
          %v3224 = vunpack.c.l.b16 %v2580
          %v3225 = vunpack.c.l.b16 %v2581
          %v3226 = vunpack.c.l.b16 %v2582
          %v3227 = vunpack.c.l.b16 %v2583
          %v3228 = vunpack.c.l.b16 %v2584
          %v3229 = vunpack.c.l.b16 %v2585
          %v3230 = vunpack.c.l.b16 %v2586
          %v3231 = vunpack.c.l.b16 %v2587
          %v3232 = vunpack.c.l.b16 %v2588
          %v3233 = vunpack.c.l.b16 %v2589
          %v3234 = vunpack.c.l.b16 %v2590
          %v3235 = vunpack.c.l.b16 %v2591
          %v3236 = vunpack.c.l.b16 %v2592
          %v3237 = vunpack.c.l.b16 %v2593
          %v3238 = vunpack.c.l.b16 %v2594
          %v3239 = vunpack.c.l.b16 %v2595
          %v3240 = vunpack.c.l.b16 %v2596
          %v3241 = vunpack.c.l.b16 %v2597
          %v3242 = vunpack.c.l.b16 %v2598
          %v3243 = vunpack.c.l.b16 %v2599
          %v3244 = vunpack.c.l.b16 %v2600
          %v3245 = vunpack.c.l.b16 %v2601
          %v3246 = vunpack.c.l.b16 %v2602
          %v3247 = vunpack.c.l.b16 %v2603
          %v3248 = vunpack.c.l.b16 %v2604
          %v3249 = vunpack.c.l.b16 %v2605
          %v3250 = vunpack.c.l.b16 %v2606
          %v3251 = vunpack.c.l.b16 %v2607
          %v3252 = vunpack.c.l.b16 %v2608
          %v3253 = vunpack.c.l.b16 %v2609
          %v3254 = vunpack.c.l.b16 %v2610
          %v3255 = vunpack.c.l.b16 %v2611
          %v3256 = vunpack.c.l.b16 %v2612
          %v3257 = vunpack.c.l.b16 %v2613
          %v3258 = vunpack.c.l.b16 %v2614
          %v3259 = vunpack.c.l.b16 %v2615
          %v3260 = vunpack.c.l.b16 %v2616
          %v3261 = vunpack.c.l.b16 %v2617
          %v3262 = vunpack.c.l.b16 %v2618
          %v3263 = vunpack.c.l.b16 %v2619
          %v3264 = vunpack.c.l.b16 %v2620
          %v3265 = vunpack.c.l.b16 %v2621
          %v3266 = vunpack.c.l.b16 %v2622
          %v3267 = vunpack.c.l.b16 %v2623
          %v3268 = vunpack.c.l.b16 %v2624
          %v3269 = vunpack.c.l.b16 %v2625
          %v3270 = vunpack.c.l.b16 %v2626
          %v3271 = vunpack.c.l.b16 %v2627
          %v3272 = vunpack.c.l.b16 %v2628
          %v3273 = vunpack.c.l.b16 %v2629
          %v3274 = vunpack.c.l.b16 %v2630
          %v3275 = vunpack.c.l.b16 %v2631
          %v3276 = vunpack.c.l.b16 %v2632
          %v3277 = vunpack.c.l.b16 %v2633
          %v3278 = vunpack.c.l.b16 %v2634
          %v3279 = vunpack.c.l.b16 %v2635
          %v3280 = vunpack.c.l.b16 %v2636
          %v3281 = vunpack.c.l.b16 %v2637
          %v3282 = vunpack.c.l.b16 %v2638
          %v3283 = vunpack.c.l.b16 %v2639
          %v3284 = vunpack.c.l.b16 %v2640
          %v3285 = vunpack.c.l.b16 %v2641
          %v3286 = vunpack.c.l.b16 %v2642
          %v3287 = vunpack.c.l.b16 %v2643
          %v3288 = vunpack.c.l.b16 %v2644
          %v3289 = vunpack.c.l.b16 %v2645
          %v3290 = vunpack.c.l.b16 %v2646
          %v3291 = vunpack.c.l.b16 %v2647
          %v3292 = vunpack.c.l.b16 %v2648
          %v3293 = vunpack.c.l.b16 %v2649
          %v3294 = vunpack.c.l.b16 %v2650
          %v3295 = vunpack.c.l.b16 %v2651
          %v3296 = vunpack.c.l.b16 %v2652
          %v3297 = vunpack.c.l.b16 %v2653
          %v3298 = vunpack.c.l.b16 %v2654
          %v3299 = vunpack.c.l.b16 %v2655
          %v3300 = vunpack.c.l.b16 %v2656
          %v3301 = vunpack.c.l.b16 %v2657
          %v3302 = vunpack.c.l.b16 %v2658
          %v3303 = vunpack.c.l.b16 %v2659
          %v3304 = vunpack.c.l.b16 %v2660
          %v3305 = vunpack.c.l.b16 %v2661
          %v3306 = vunpack.c.l.b16 %v2662
          %v3307 = vunpack.c.l.b16 %v2663
          %v3308 = vunpack.c.l.b16 %v2664
          %v3309 = vunpack.c.l.b16 %v2665
          %v3310 = vunpack.c.l.b16 %v2666
          %v3311 = vunpack.c.l.b16 %v2667
          %v3312 = vunpack.c.l.b16 %v2668
          %v3313 = vunpack.c.l.b16 %v2669
          %v3314 = vunpack.c.l.b16 %v2670
          %v3315 = vunpack.c.l.b16 %v2671
          %v3316 = vunpack.c.l.b16 %v2672
          %v3317 = vunpack.c.l.b16 %v2673
          %v3318 = vunpack.c.l.b16 %v2674
          %v3319 = vunpack.c.l.b16 %v2675
          %v3320 = vunpack.c.l.b16 %v2676
          %v3321 = vunpack.c.l.b16 %v2677
          %v3322 = vunpack.c.l.b16 %v2678
          %v3323 = vunpack.c.l.b16 %v2679
          %v3324 = vunpack.c.l.b16 %v2680
          %v3325 = vunpack.c.l.b16 %v2681
          %v3326 = vunpack.c.l.b16 %v2682
          %v3327 = vunpack.c.l.b16 %v2683
          %v3328 = vunpack.c.l.b16 %v2684
          %v3329 = vunpack.c.l.b16 %v2685
          %v3330 = vunpack.c.l.b16 %v2686
          %v3331 = vunpack.c.l.b16 %v2687
          %v3332 = vunpack.c.l.b16 %v2688
          %v3333 = vunpack.c.l.b16 %v2689
          %v3334 = vunpack.c.l.b16 %v2690
          %v3335 = vunpack.c.l.b16 %v2691
          %v3336 = vunpack.c.l.b16 %v2692
          %v3337 = vunpack.c.l.b16 %v2693
          %v3338 = vunpack.c.l.b16 %v2694
          %v3339 = vunpack.c.l.b16 %v2695
          %v3340 = vunpack.c.l.b16 %v2696
          %v3341 = vunpack.c.l.b16 %v2697
          %v3342 = vunpack.c.l.b16 %v2698
          %v3343 = vunpack.c.l.b16 %v2699
          %v3344 = vunpack.c.l.b16 %v2700
          %v3345 = vunpack.c.l.b16 %v2701
          %v3346 = vunpack.c.l.b16 %v2702
          %v3347 = vunpack.c.l.b16 %v2703
          %v3348 = vunpack.c.l.b16 %v2704
          %v3349 = vunpack.c.l.b16 %v2705
          %v3350 = vunpack.c.l.b16 %v2706
          %v3351 = vunpack.c.l.b16 %v2707
          %v3352 = vunpack.c.l.b16 %v2708
          %v3353 = vunpack.c.l.b16 %v2709
          %v3354 = vunpack.c.l.b16 %v2710
          %v3355 = vunpack.c.l.b16 %v2711
          %v3356 = vunpack.c.l.b16 %v2712
          %v3357 = vunpack.c.l.b16 %v2713
          %v3358 = vunpack.c.l.b16 %v2714
          %v3359 = vunpack.c.l.b16 %v2715
          %v3360 = vunpack.c.l.b16 %v2716
          %v3361 = vunpack.c.l.b16 %v2717
          %v3362 = vunpack.c.l.b16 %v2718
          %v3363 = vunpack.c.l.b16 %v2719
          %v3364 = vunpack.c.l.b16 %v2720
          %v3365 = vunpack.c.l.b16 %v2721
          %v3366 = vunpack.c.l.b16 %v2722
          %v3367 = vunpack.c.l.b16 %v2723
          %v3368 = vunpack.c.l.b16 %v2724
          %v3369 = vunpack.c.l.b16 %v2725
          %v3370 = vunpack.c.l.b16 %v2726
          %v3371 = vunpack.c.l.b16 %v2727
          %v3372 = vunpack.c.l.b16 %v2728
          %v3373 = vunpack.c.l.b16 %v2729
          %v3374 = vunpack.c.l.b16 %v2730
          %v3375 = vunpack.c.l.b16 %v2731
          %v3376 = vunpack.c.l.b16 %v2732
          %v3377 = vunpack.c.l.b16 %v2733
          %v3378 = vunpack.c.l.b16 %v2734
          %v3379 = vunpack.c.l.b16 %v2735
          %v3380 = vunpack.c.l.b16 %v2736
          %v3381 = vunpack.c.l.b16 %v2737
          %v3382 = vunpack.c.l.b16 %v2738
          %v3383 = vunpack.c.l.b16 %v2739
          %v3384 = vunpack.c.l.b16 %v2740
          %v3385 = vunpack.c.l.b16 %v2741
          %v3386 = vunpack.c.l.b16 %v2742
          %v3387 = vunpack.c.l.b16 %v2743
          %v3388 = vpack.c.b16 %v3069, %v3068
          %v3389 = vpack.c.b16 %v3071, %v3070
          %v3390 = vpack.c.b16 %v3073, %v3072
          %v3391 = vpack.c.b16 %v3075, %v3074
          %v3392 = vpack.c.b16 %v3077, %v3076
          %v3393 = vpack.c.b16 %v3079, %v3078
          %v3394 = vpack.c.b16 %v3081, %v3080
          %v3395 = vpack.c.b16 %v3083, %v3082
          %v3396 = vpack.c.b16 %v3085, %v3084
          %v3397 = vpack.c.b16 %v3087, %v3086
          %v3398 = vpack.c.b16 %v3089, %v3088
          %v3399 = vpack.c.b16 %v3091, %v3090
          %v3400 = vpack.c.b16 %v3093, %v3092
          %v3401 = vpack.c.b16 %v3095, %v3094
          %v3402 = vpack.c.b16 %v3097, %v3096
          %v3403 = vpack.c.b16 %v3099, %v3098
          %v3404 = vpack.c.b16 %v3101, %v3100
          %v3405 = vpack.c.b16 %v3103, %v3102
          %v3406 = vpack.c.b16 %v3105, %v3104
          %v3407 = vpack.c.b16 %v3107, %v3106
          %v3408 = vpack.c.b16 %v3109, %v3108
          %v3409 = vpack.c.b16 %v3111, %v3110
          %v3410 = vpack.c.b16 %v3113, %v3112
          %v3411 = vpack.c.b16 %v3115, %v3114
          %v3412 = vpack.c.b16 %v3117, %v3116
          %v3413 = vpack.c.b16 %v3119, %v3118
          %v3414 = vpack.c.b16 %v3121, %v3120
          %v3415 = vpack.c.b16 %v3123, %v3122
          %v3416 = vpack.c.b16 %v3125, %v3124
          %v3417 = vpack.c.b16 %v3127, %v3126
          %v3418 = vpack.c.b16 %v3129, %v3128
          %v3419 = vpack.c.b16 %v3131, %v3130
          %v3420 = vpack.c.b16 %v3133, %v3132
          %v3421 = vpack.c.b16 %v3135, %v3134
          %v3422 = vpack.c.b16 %v3137, %v3136
          %v3423 = vpack.c.b16 %v3139, %v3138
          %v3424 = vpack.c.b16 %v3141, %v3140
          %v3425 = vpack.c.b16 %v3143, %v3142
          %v3426 = vpack.c.b16 %v3145, %v3144
          %v3427 = vpack.c.b16 %v3147, %v3146
          %v3428 = vpack.c.b16 %v3149, %v3148
          %v3429 = vpack.c.b16 %v3151, %v3150
          %v3430 = vpack.c.b16 %v3153, %v3152
          %v3431 = vpack.c.b16 %v3155, %v3154
          %v3432 = vpack.c.b16 %v3157, %v3156
          %v3433 = vpack.c.b16 %v3159, %v3158
          %v3434 = vpack.c.b16 %v3161, %v3160
          %v3435 = vpack.c.b16 %v3163, %v3162
          %v3436 = vpack.c.b16 %v3165, %v3164
          %v3437 = vpack.c.b16 %v3167, %v3166
          %v3438 = vpack.c.b16 %v3169, %v3168
          %v3439 = vpack.c.b16 %v3171, %v3170
          %v3440 = vpack.c.b16 %v3173, %v3172
          %v3441 = vpack.c.b16 %v3175, %v3174
          %v3442 = vpack.c.b16 %v3177, %v3176
          %v3443 = vpack.c.b16 %v3179, %v3178
          %v3444 = vpack.c.b16 %v3181, %v3180
          %v3445 = vpack.c.b16 %v3183, %v3182
          %v3446 = vpack.c.b16 %v3185, %v3184
          %v3447 = vpack.c.b16 %v3187, %v3186
          %v3448 = vpack.c.b16 %v3189, %v3188
          %v3449 = vpack.c.b16 %v3191, %v3190
          %v3450 = vpack.c.b16 %v3193, %v3192
          %v3451 = vpack.c.b16 %v3195, %v3194
          %v3452 = vpack.c.b16 %v3197, %v3196
          %v3453 = vpack.c.b16 %v3199, %v3198
          %v3454 = vpack.c.b16 %v3201, %v3200
          %v3455 = vpack.c.b16 %v3203, %v3202
          %v3456 = vpack.c.b16 %v3205, %v3204
          %v3457 = vpack.c.b16 %v3207, %v3206
          %v3458 = vpack.c.b16 %v3209, %v3208
          %v3459 = vpack.c.b16 %v3211, %v3210
          %v3460 = vpack.c.b16 %v3213, %v3212
          %v3461 = vpack.c.b16 %v3215, %v3214
          %v3462 = vpack.c.b16 %v3217, %v3216
          %v3463 = vpack.c.b16 %v3219, %v3218
          %v3464 = vpack.c.b16 %v3221, %v3220
          %v3465 = vpack.c.b16 %v3223, %v3222
          %v3466 = vpack.c.b16 %v3225, %v3224
          %v3467 = vpack.c.b16 %v3227, %v3226
          %v3468 = vpack.c.b16 %v3229, %v3228
          %v3469 = vpack.c.b16 %v3231, %v3230
          %v3470 = vpack.c.b16 %v3233, %v3232
          %v3471 = vpack.c.b16 %v3235, %v3234
          %v3472 = vpack.c.b16 %v3237, %v3236
          %v3473 = vpack.c.b16 %v3239, %v3238
          %v3474 = vpack.c.b16 %v3241, %v3240
          %v3475 = vpack.c.b16 %v3243, %v3242
          %v3476 = vpack.c.b16 %v3245, %v3244
          %v3477 = vpack.c.b16 %v3247, %v3246
          %v3478 = vpack.c.b16 %v3249, %v3248
          %v3479 = vpack.c.b16 %v3251, %v3250
          %v3480 = vpack.c.b16 %v3253, %v3252
          %v3481 = vpack.c.b16 %v3255, %v3254
          %v3482 = vpack.c.b16 %v3257, %v3256
          %v3483 = vpack.c.b16 %v3259, %v3258
          %v3484 = vpack.c.b16 %v3261, %v3260
          %v3485 = vpack.c.b16 %v3263, %v3262
          %v3486 = vpack.c.b16 %v3265, %v3264
          %v3487 = vpack.c.b16 %v3267, %v3266
          %v3488 = vpack.c.b16 %v3269, %v3268
          %v3489 = vpack.c.b16 %v3271, %v3270
          %v3490 = vpack.c.b16 %v3273, %v3272
          %v3491 = vpack.c.b16 %v3275, %v3274
          %v3492 = vpack.c.b16 %v3277, %v3276
          %v3493 = vpack.c.b16 %v3279, %v3278
          %v3494 = vpack.c.b16 %v3281, %v3280
          %v3495 = vpack.c.b16 %v3283, %v3282
          %v3496 = vpack.c.b16 %v3285, %v3284
          %v3497 = vpack.c.b16 %v3287, %v3286
          %v3498 = vpack.c.b16 %v3289, %v3288
          %v3499 = vpack.c.b16 %v3291, %v3290
          %v3500 = vpack.c.b16 %v3293, %v3292
          %v3501 = vpack.c.b16 %v3295, %v3294
          %v3502 = vpack.c.b16 %v3297, %v3296
          %v3503 = vpack.c.b16 %v3299, %v3298
          %v3504 = vpack.c.b16 %v3301, %v3300
          %v3505 = vpack.c.b16 %v3303, %v3302
          %v3506 = vpack.c.b16 %v3305, %v3304
          %v3507 = vpack.c.b16 %v3307, %v3306
          %v3508 = vpack.c.b16 %v3309, %v3308
          %v3509 = vpack.c.b16 %v3311, %v3310
          %v3510 = vpack.c.b16 %v3313, %v3312
          %v3511 = vpack.c.b16 %v3315, %v3314
          %v3512 = vpack.c.b16 %v3317, %v3316
          %v3513 = vpack.c.b16 %v3319, %v3318
          %v3514 = vpack.c.b16 %v3321, %v3320
          %v3515 = vpack.c.b16 %v3323, %v3322
          %v3516 = vpack.c.b16 %v3325, %v3324
          %v3517 = vpack.c.b16 %v3327, %v3326
          %v3518 = vpack.c.b16 %v3329, %v3328
          %v3519 = vpack.c.b16 %v3331, %v3330
          %v3520 = vpack.c.b16 %v3333, %v3332
          %v3521 = vpack.c.b16 %v3335, %v3334
          %v3522 = vpack.c.b16 %v3337, %v3336
          %v3523 = vpack.c.b16 %v3339, %v3338
          %v3524 = vpack.c.b16 %v3341, %v3340
          %v3525 = vpack.c.b16 %v3343, %v3342
          %v3526 = vpack.c.b16 %v3345, %v3344
          %v3527 = vpack.c.b16 %v3347, %v3346
          %v3528 = vpack.c.b16 %v3349, %v3348
          %v3529 = vpack.c.b16 %v3351, %v3350
          %v3530 = vpack.c.b16 %v3353, %v3352
          %v3531 = vpack.c.b16 %v3355, %v3354
          %v3532 = vpack.c.b16 %v3357, %v3356
          %v3533 = vpack.c.b16 %v3359, %v3358
          %v3534 = vpack.c.b16 %v3361, %v3360
          %v3535 = vpack.c.b16 %v3363, %v3362
          %v3536 = vpack.c.b16 %v3365, %v3364
          %v3537 = vpack.c.b16 %v3367, %v3366
          %v3538 = vpack.c.b16 %v3369, %v3368
          %v3539 = vpack.c.b16 %v3371, %v3370
          %v3540 = vpack.c.b16 %v3373, %v3372
          %v3541 = vpack.c.b16 %v3375, %v3374
          %v3542 = vpack.c.b16 %v3377, %v3376
          %v3543 = vpack.c.b16 %v3379, %v3378
          %v3544 = vpack.c.b16 %v3381, %v3380
          %v3545 = vpack.c.b16 %v3383, %v3382
          %v3546 = vpack.c.b16 %v3385, %v3384
          %v3547 = vpack.c.b16 %v3387, %v3386
          %3708 = vmatpush.bf16.msra.mxu0 %v3395
          %3709 = vmatpush.bf16.msra.mxu0 %v3394
          %3710 = vmatpush.bf16.msra.mxu0 %v3393
          %3711 = vmatpush.bf16.msra.mxu0 %v3392
          %3712 = vmatpush.bf16.msra.mxu0 %v3391
          %3713 = vmatpush.bf16.msra.mxu0 %v3390
          %3714 = vmatpush.bf16.msra.mxu0 %v3389
          %3715 = vmatpush.bf16.msra.mxu0 %v3388
          %3716 = vmatmul.bf16.gmra.mxu0 %v2394
          %v3717 = vpop.f32.mrf.mxu0
          %v3718 = vadd.f32 %v2746, %v3717
          %v3719 = vpop.f32.mrf.mxu0
          %3720 = vdwg.mxu0
          %3721 = vmatpush.bf16.msra.mxu0 %v3403
          %3722 = vmatpush.bf16.msra.mxu0 %v3402
          %3723 = vmatpush.bf16.msra.mxu0 %v3401
          %3724 = vmatpush.bf16.msra.mxu0 %v3400
          %3725 = vmatpush.bf16.msra.mxu0 %v3399
          %3726 = vmatpush.bf16.msra.mxu0 %v3398
          %3727 = vmatpush.bf16.msra.mxu0 %v3397
          %3728 = vmatpush.bf16.msra.mxu0 %v3396
          %3729 = vmatmul.bf16.gmra.mxu0 %v2395
          %v3730 = vpop.f32.mrf.mxu0
          %v3731 = vadd.f32 %v3718, %v3730
          %v3732 = vpop.f32.mrf.mxu0
          %3733 = vdwg.mxu0
          %3734 = vmatpush.bf16.msra.mxu0 %v3411
          %3735 = vmatpush.bf16.msra.mxu0 %v3410
          %3736 = vmatpush.bf16.msra.mxu0 %v3409
          %3737 = vmatpush.bf16.msra.mxu0 %v3408
          %3738 = vmatpush.bf16.msra.mxu0 %v3407
          %3739 = vmatpush.bf16.msra.mxu0 %v3406
          %3740 = vmatpush.bf16.msra.mxu0 %v3405
          %3741 = vmatpush.bf16.msra.mxu0 %v3404
          %3742 = vmatmul.bf16.gmra.mxu0 %v2396
          %v3743 = vpop.f32.mrf.mxu0
          %v3744 = vadd.f32 %v3731, %v3743
          %v3745 = vpop.f32.mrf.mxu0
          %3746 = vdwg.mxu0
          %3747 = vmatpush.bf16.msra.mxu0 %v3419
          %3748 = vmatpush.bf16.msra.mxu0 %v3418
          %3749 = vmatpush.bf16.msra.mxu0 %v3417
          %3750 = vmatpush.bf16.msra.mxu0 %v3416
          %3751 = vmatpush.bf16.msra.mxu0 %v3415
          %3752 = vmatpush.bf16.msra.mxu0 %v3414
          %3753 = vmatpush.bf16.msra.mxu0 %v3413
          %3754 = vmatpush.bf16.msra.mxu0 %v3412
          %3755 = vmatmul.bf16.gmra.mxu0 %v2397
          %v3756 = vpop.f32.mrf.mxu0
          %v3757 = vadd.f32 %v3744, %v3756
          %v3758 = vpop.f32.mrf.mxu0
          %3759 = vdwg.mxu0
          %3760 = vmatpush.bf16.msra.mxu0 %v3427
          %3761 = vmatpush.bf16.msra.mxu0 %v3426
          %3762 = vmatpush.bf16.msra.mxu0 %v3425
          %3763 = vmatpush.bf16.msra.mxu0 %v3424
          %3764 = vmatpush.bf16.msra.mxu0 %v3423
          %3765 = vmatpush.bf16.msra.mxu0 %v3422
          %3766 = vmatpush.bf16.msra.mxu0 %v3421
          %3767 = vmatpush.bf16.msra.mxu0 %v3420
          %3768 = vmatmul.bf16.gmra.mxu0 %v2398
          %v3769 = vpop.f32.mrf.mxu0
          %v3770 = vadd.f32 %v3757, %v3769
          %v3771 = vpop.f32.mrf.mxu0
          %3772 = vdwg.mxu0
          %3773 = vmatpush.bf16.msra.mxu0 %v3435
          %3774 = vmatpush.bf16.msra.mxu0 %v3434
          %3775 = vmatpush.bf16.msra.mxu0 %v3433
          %3776 = vmatpush.bf16.msra.mxu0 %v3432
          %3777 = vmatpush.bf16.msra.mxu0 %v3431
          %3778 = vmatpush.bf16.msra.mxu0 %v3430
          %3779 = vmatpush.bf16.msra.mxu0 %v3429
          %3780 = vmatpush.bf16.msra.mxu0 %v3428
          %3781 = vmatmul.bf16.gmra.mxu0 %v2399
          %v3782 = vpop.f32.mrf.mxu0
          %v3783 = vadd.f32 %v3770, %v3782
          %v3784 = vpop.f32.mrf.mxu0
          %3785 = vdwg.mxu0
          %3786 = vmatpush.bf16.msra.mxu0 %v3443
          %3787 = vmatpush.bf16.msra.mxu0 %v3442
          %3788 = vmatpush.bf16.msra.mxu0 %v3441
          %3789 = vmatpush.bf16.msra.mxu0 %v3440
          %3790 = vmatpush.bf16.msra.mxu0 %v3439
          %3791 = vmatpush.bf16.msra.mxu0 %v3438
          %3792 = vmatpush.bf16.msra.mxu0 %v3437
          %3793 = vmatpush.bf16.msra.mxu0 %v3436
          %3794 = vmatmul.bf16.gmra.mxu0 %v2400
          %v3795 = vpop.f32.mrf.mxu0
          %v3796 = vadd.f32 %v3783, %v3795
          %v3797 = vpop.f32.mrf.mxu0
          %3798 = vdwg.mxu0
          %3799 = vmatpush.bf16.msra.mxu0 %v3451
          %3800 = vmatpush.bf16.msra.mxu0 %v3450
          %3801 = vmatpush.bf16.msra.mxu0 %v3449
          %3802 = vmatpush.bf16.msra.mxu0 %v3448
          %3803 = vmatpush.bf16.msra.mxu0 %v3447
          %3804 = vmatpush.bf16.msra.mxu0 %v3446
          %3805 = vmatpush.bf16.msra.mxu0 %v3445
          %3806 = vmatpush.bf16.msra.mxu0 %v3444
          %3807 = vmatmul.bf16.gmra.mxu0 %v2401
          %v3808 = vpop.f32.mrf.mxu0
          %v3809 = vadd.f32 %v3796, %v3808
          %v3810 = vpop.f32.mrf.mxu0
          %3811 = vdwg.mxu0
          %3812 = vmatpush.bf16.msra.mxu0 %v3459
          %3813 = vmatpush.bf16.msra.mxu0 %v3458
          %3814 = vmatpush.bf16.msra.mxu0 %v3457
          %3815 = vmatpush.bf16.msra.mxu0 %v3456
          %3816 = vmatpush.bf16.msra.mxu0 %v3455
          %3817 = vmatpush.bf16.msra.mxu0 %v3454
          %3818 = vmatpush.bf16.msra.mxu0 %v3453
          %3819 = vmatpush.bf16.msra.mxu0 %v3452
          %3820 = vmatmul.bf16.gmra.mxu0 %v2402
          %v3821 = vpop.f32.mrf.mxu0
          %v3822 = vadd.f32 %v3809, %v3821
          %v3823 = vpop.f32.mrf.mxu0
          %3824 = vdwg.mxu0
          %3825 = vmatpush.bf16.msra.mxu0 %v3467
          %3826 = vmatpush.bf16.msra.mxu0 %v3466
          %3827 = vmatpush.bf16.msra.mxu0 %v3465
          %3828 = vmatpush.bf16.msra.mxu0 %v3464
          %3829 = vmatpush.bf16.msra.mxu0 %v3463
          %3830 = vmatpush.bf16.msra.mxu0 %v3462
          %3831 = vmatpush.bf16.msra.mxu0 %v3461
          %3832 = vmatpush.bf16.msra.mxu0 %v3460
          %3833 = vmatmul.bf16.gmra.mxu0 %v2403
          %v3834 = vpop.f32.mrf.mxu0
          %v3835 = vadd.f32 %v3822, %v3834
          %v3836 = vpop.f32.mrf.mxu0
          %3837 = vdwg.mxu0
          %3838 = vmatpush.bf16.msra.mxu0 %v3475
          %3839 = vmatpush.bf16.msra.mxu0 %v3474
          %3840 = vmatpush.bf16.msra.mxu0 %v3473
          %3841 = vmatpush.bf16.msra.mxu0 %v3472
          %3842 = vmatpush.bf16.msra.mxu0 %v3471
          %3843 = vmatpush.bf16.msra.mxu0 %v3470
          %3844 = vmatpush.bf16.msra.mxu0 %v3469
          %3845 = vmatpush.bf16.msra.mxu0 %v3468
          %3846 = vmatmul.bf16.gmra.mxu0 %v2404
          %v3847 = vpop.f32.mrf.mxu0
          %v3848 = vadd.f32 %v3835, %v3847
          %v3849 = vpop.f32.mrf.mxu0
          %3850 = vdwg.mxu0
          %3851 = vmatpush.bf16.msra.mxu0 %v3483
          %3852 = vmatpush.bf16.msra.mxu0 %v3482
          %3853 = vmatpush.bf16.msra.mxu0 %v3481
          %3854 = vmatpush.bf16.msra.mxu0 %v3480
          %3855 = vmatpush.bf16.msra.mxu0 %v3479
          %3856 = vmatpush.bf16.msra.mxu0 %v3478
          %3857 = vmatpush.bf16.msra.mxu0 %v3477
          %3858 = vmatpush.bf16.msra.mxu0 %v3476
          %3859 = vmatmul.bf16.gmra.mxu0 %v2405
          %v3860 = vpop.f32.mrf.mxu0
          %v3861 = vadd.f32 %v3848, %v3860
          %v3862 = vpop.f32.mrf.mxu0
          %3863 = vdwg.mxu0
          %3864 = vmatpush.bf16.msra.mxu0 %v3491
          %3865 = vmatpush.bf16.msra.mxu0 %v3490
          %3866 = vmatpush.bf16.msra.mxu0 %v3489
          %3867 = vmatpush.bf16.msra.mxu0 %v3488
          %3868 = vmatpush.bf16.msra.mxu0 %v3487
          %3869 = vmatpush.bf16.msra.mxu0 %v3486
          %3870 = vmatpush.bf16.msra.mxu0 %v3485
          %3871 = vmatpush.bf16.msra.mxu0 %v3484
          %3872 = vmatmul.bf16.gmra.mxu0 %v2406
          %v3873 = vpop.f32.mrf.mxu0
          %v3874 = vadd.f32 %v3861, %v3873
          %v3875 = vpop.f32.mrf.mxu0
          %3876 = vdwg.mxu0
          %3877 = vmatpush.bf16.msra.mxu0 %v3499
          %3878 = vmatpush.bf16.msra.mxu0 %v3498
          %3879 = vmatpush.bf16.msra.mxu0 %v3497
          %3880 = vmatpush.bf16.msra.mxu0 %v3496
          %3881 = vmatpush.bf16.msra.mxu0 %v3495
          %3882 = vmatpush.bf16.msra.mxu0 %v3494
          %3883 = vmatpush.bf16.msra.mxu0 %v3493
          %3884 = vmatpush.bf16.msra.mxu0 %v3492
          %3885 = vmatmul.bf16.gmra.mxu0 %v2407
          %v3886 = vpop.f32.mrf.mxu0
          %v3887 = vadd.f32 %v3874, %v3886
          %v3888 = vpop.f32.mrf.mxu0
          %3889 = vdwg.mxu0
          %3890 = vmatpush.bf16.msra.mxu0 %v3507
          %3891 = vmatpush.bf16.msra.mxu0 %v3506
          %3892 = vmatpush.bf16.msra.mxu0 %v3505
          %3893 = vmatpush.bf16.msra.mxu0 %v3504
          %3894 = vmatpush.bf16.msra.mxu0 %v3503
          %3895 = vmatpush.bf16.msra.mxu0 %v3502
          %3896 = vmatpush.bf16.msra.mxu0 %v3501
          %3897 = vmatpush.bf16.msra.mxu0 %v3500
          %3898 = vmatmul.bf16.gmra.mxu0 %v2408
          %v3899 = vpop.f32.mrf.mxu0
          %v3900 = vadd.f32 %v3887, %v3899
          %v3901 = vpop.f32.mrf.mxu0
          %3902 = vdwg.mxu0
          %3903 = vmatpush.bf16.msra.mxu0 %v3515
          %3904 = vmatpush.bf16.msra.mxu0 %v3514
          %3905 = vmatpush.bf16.msra.mxu0 %v3513
          %3906 = vmatpush.bf16.msra.mxu0 %v3512
          %3907 = vmatpush.bf16.msra.mxu0 %v3511
          %3908 = vmatpush.bf16.msra.mxu0 %v3510
          %3909 = vmatpush.bf16.msra.mxu0 %v3509
          %3910 = vmatpush.bf16.msra.mxu0 %v3508
          %3911 = vmatmul.bf16.gmra.mxu0 %v2409
          %v3912 = vpop.f32.mrf.mxu0
          %v3913 = vadd.f32 %v3900, %v3912
          %v3914 = vpop.f32.mrf.mxu0
          %3915 = vdwg.mxu0
          %3916 = vmatpush.bf16.msra.mxu0 %v3523
          %3917 = vmatpush.bf16.msra.mxu0 %v3522
          %3918 = vmatpush.bf16.msra.mxu0 %v3521
          %3919 = vmatpush.bf16.msra.mxu0 %v3520
          %3920 = vmatpush.bf16.msra.mxu0 %v3519
          %3921 = vmatpush.bf16.msra.mxu0 %v3518
          %3922 = vmatpush.bf16.msra.mxu0 %v3517
          %3923 = vmatpush.bf16.msra.mxu0 %v3516
          %3924 = vmatmul.bf16.gmra.mxu0 %v2410
          %v3925 = vpop.f32.mrf.mxu0
          %v3926 = vadd.f32 %v3913, %v3925
          %v3927 = vpop.f32.mrf.mxu0
          %3928 = vdwg.mxu0
          %3929 = vmatpush.bf16.msra.mxu0 %v3531
          %3930 = vmatpush.bf16.msra.mxu0 %v3530
          %3931 = vmatpush.bf16.msra.mxu0 %v3529
          %3932 = vmatpush.bf16.msra.mxu0 %v3528
          %3933 = vmatpush.bf16.msra.mxu0 %v3527
          %3934 = vmatpush.bf16.msra.mxu0 %v3526
          %3935 = vmatpush.bf16.msra.mxu0 %v3525
          %3936 = vmatpush.bf16.msra.mxu0 %v3524
          %3937 = vmatmul.bf16.gmra.mxu0 %v2411
          %v3938 = vpop.f32.mrf.mxu0
          %v3939 = vadd.f32 %v3926, %v3938
          %v3940 = vpop.f32.mrf.mxu0
          %3941 = vdwg.mxu0
          %3942 = vmatpush.bf16.msra.mxu0 %v3539
          %3943 = vmatpush.bf16.msra.mxu0 %v3538
          %3944 = vmatpush.bf16.msra.mxu0 %v3537
          %3945 = vmatpush.bf16.msra.mxu0 %v3536
          %3946 = vmatpush.bf16.msra.mxu0 %v3535
          %3947 = vmatpush.bf16.msra.mxu0 %v3534
          %3948 = vmatpush.bf16.msra.mxu0 %v3533
          %3949 = vmatpush.bf16.msra.mxu0 %v3532
          %3950 = vmatmul.bf16.gmra.mxu0 %v2412
          %v3951 = vpop.f32.mrf.mxu0
          %v3952 = vadd.f32 %v3939, %v3951
          %v3953 = vpop.f32.mrf.mxu0
          %3954 = vdwg.mxu0
          %3955 = vmatpush.bf16.msra.mxu0 %v3547
          %3956 = vmatpush.bf16.msra.mxu0 %v3546
          %3957 = vmatpush.bf16.msra.mxu0 %v3545
          %3958 = vmatpush.bf16.msra.mxu0 %v3544
          %3959 = vmatpush.bf16.msra.mxu0 %v3543
          %3960 = vmatpush.bf16.msra.mxu0 %v3542
          %3961 = vmatpush.bf16.msra.mxu0 %v3541
          %3962 = vmatpush.bf16.msra.mxu0 %v3540
          %3963 = vmatmul.bf16.gmra.mxu0 %v2413
          %v3964 = vpop.f32.mrf.mxu0
          %v3965 = vadd.f32 %v3952, %v3964
          %v3966 = vpop.f32.mrf.mxu0
          %3967 = vdwg.mxu0
          %v3968 = vmax.f32 %v3965, 0.0
          %v3969 = vld [vmem:[%s10] sm:$0xf]
          %v3970 = vld [vmem:[%s10 + $0x4] sm:$0xf]
          %v3971 = vld [vmem:[%s10 + $0x8] sm:$0xf]
          %v3972 = vld [vmem:[%s10 + $0xc] sm:$0xf]
          %v3973 = vld [vmem:[%s10 + $0x10] sm:$0xf]
          %v3974 = vld [vmem:[%s10 + $0x14] sm:$0xf]
          %v3975 = vld [vmem:[%s10 + $0x18] sm:$0xf]
          %v3976 = vld [vmem:[%s10 + $0x1c] sm:$0xf]
          %v3977 = vld [vmem:[%s10 + $0x20] sm:$0xf]
          %v3978 = vld [vmem:[%s10 + $0x24] sm:$0xf]
          %v3979 = vld [vmem:[%s10 + $0x28] sm:$0xf]
          %v3980 = vld [vmem:[%s10 + $0x2c] sm:$0xf]
          %v3981 = vld [vmem:[%s10 + $0x30] sm:$0xf]
          %v3982 = vld [vmem:[%s10 + $0x34] sm:$0xf]
          %v3983 = vld [vmem:[%s10 + $0x38] sm:$0xf]
          %v3984 = vld [vmem:[%s10 + $0x3c] sm:$0xf]
          %v3985 = vld [vmem:[%s10 + $0x40] sm:$0xf]
          %v3986 = vld [vmem:[%s10 + $0x44] sm:$0xf]
          %v3987 = vld [vmem:[%s10 + $0x48] sm:$0xf]
          %v3988 = vld [vmem:[%s10 + $0x4c] sm:$0xf]
          %v3989 = vld [vmem:[%s10 + $0x50] sm:$0xf]
          %v3990 = vld [vmem:[%s10 + $0x54] sm:$0xf]
          %v3991 = vld [vmem:[%s10 + $0x58] sm:$0xf]
          %v3992 = vld [vmem:[%s10 + $0x5c] sm:$0xf]
          %v3993 = vld [vmem:[%s10 + $0x60] sm:$0xf]
          %v3994 = vld [vmem:[%s10 + $0x64] sm:$0xf]
          %v3995 = vld [vmem:[%s10 + $0x68] sm:$0xf]
          %v3996 = vld [vmem:[%s10 + $0x6c] sm:$0xf]
          %v3997 = vld [vmem:[%s10 + $0x70] sm:$0xf]
          %v3998 = vld [vmem:[%s10 + $0x74] sm:$0xf]
          %v3999 = vld [vmem:[%s10 + $0x78] sm:$0xf]
          %v4000 = vld [vmem:[%s10 + $0x7c] sm:$0xf]
          %v4001 = vld [vmem:[%s11] sm:$0x1]
          %v4003 = vperm.slane %v4001, 0
          %v4037 = vunpack.c.l.b16 %v3969
          %v4038 = vunpack.c.l.b16 %v3970
          %v4039 = vunpack.c.l.b16 %v3971
          %v4040 = vunpack.c.l.b16 %v3972
          %v4041 = vunpack.c.l.b16 %v3973
          %v4042 = vunpack.c.l.b16 %v3974
          %v4043 = vunpack.c.l.b16 %v3975
          %v4044 = vunpack.c.l.b16 %v3976
          %v4045 = vunpack.c.l.b16 %v3977
          %v4046 = vunpack.c.l.b16 %v3978
          %v4047 = vunpack.c.l.b16 %v3979
          %v4048 = vunpack.c.l.b16 %v3980
          %v4049 = vunpack.c.l.b16 %v3981
          %v4050 = vunpack.c.l.b16 %v3982
          %v4051 = vunpack.c.l.b16 %v3983
          %v4052 = vunpack.c.l.b16 %v3984
          %v4053 = vunpack.c.l.b16 %v3985
          %v4054 = vunpack.c.l.b16 %v3986
          %v4055 = vunpack.c.l.b16 %v3987
          %v4056 = vunpack.c.l.b16 %v3988
          %v4057 = vunpack.c.l.b16 %v3989
          %v4058 = vunpack.c.l.b16 %v3990
          %v4059 = vunpack.c.l.b16 %v3991
          %v4060 = vunpack.c.l.b16 %v3992
          %v4061 = vunpack.c.l.b16 %v3993
          %v4062 = vunpack.c.l.b16 %v3994
          %v4063 = vunpack.c.l.b16 %v3995
          %v4064 = vunpack.c.l.b16 %v3996
          %v4065 = vunpack.c.l.b16 %v3997
          %v4066 = vunpack.c.l.b16 %v3998
          %v4067 = vunpack.c.l.b16 %v3999
          %v4068 = vunpack.c.l.b16 %v4000
          %v4069 = vpack.c.b16 %v4038, %v4037
          %v4070 = vpack.c.b16 %v4040, %v4039
          %v4071 = vpack.c.b16 %v4042, %v4041
          %v4072 = vpack.c.b16 %v4044, %v4043
          %v4073 = vpack.c.b16 %v4046, %v4045
          %v4074 = vpack.c.b16 %v4048, %v4047
          %v4075 = vpack.c.b16 %v4050, %v4049
          %v4076 = vpack.c.b16 %v4052, %v4051
          %v4077 = vpack.c.b16 %v4054, %v4053
          %v4078 = vpack.c.b16 %v4056, %v4055
          %v4079 = vpack.c.b16 %v4058, %v4057
          %v4080 = vpack.c.b16 %v4060, %v4059
          %v4081 = vpack.c.b16 %v4062, %v4061
          %v4082 = vpack.c.b16 %v4064, %v4063
          %v4083 = vpack.c.b16 %v4066, %v4065
          %v4084 = vpack.c.b16 %v4068, %v4067
          %4101 = vmatpush.bf16.msra.mxu0 %v4076
          %4102 = vmatpush.bf16.msra.mxu0 %v4075
          %4103 = vmatpush.bf16.msra.mxu0 %v4074
          %4104 = vmatpush.bf16.msra.mxu0 %v4073
          %4105 = vmatpush.bf16.msra.mxu0 %v4072
          %4106 = vmatpush.bf16.msra.mxu0 %v4071
          %4107 = vmatpush.bf16.msra.mxu0 %v4070
          %4108 = vmatpush.bf16.msra.mxu0 %v4069
          %4109 = vmatmul.bf16.gmra.mxu0 %v2422
          %v4110 = vpop.f32.mrf.mxu0
          %v4111 = vadd.f32 %v4003, %v4110
          %v4112 = vpop.f32.mrf.mxu0
          %4113 = vdwg.mxu0
          %4114 = vmatpush.bf16.msra.mxu0 %v4084
          %4115 = vmatpush.bf16.msra.mxu0 %v4083
          %4116 = vmatpush.bf16.msra.mxu0 %v4082
          %4117 = vmatpush.bf16.msra.mxu0 %v4081
          %4118 = vmatpush.bf16.msra.mxu0 %v4080
          %4119 = vmatpush.bf16.msra.mxu0 %v4079
          %4120 = vmatpush.bf16.msra.mxu0 %v4078
          %4121 = vmatpush.bf16.msra.mxu0 %v4077
          %4122 = vmatmul.bf16.gmra.mxu0 %v2423
          %v4123 = vpop.f32.mrf.mxu0
          %v4124 = vadd.f32 %v4111, %v4123
          %v4125 = vpop.f32.mrf.mxu0
          %4126 = vdwg.mxu0
          %v4127 = vmax.f32 %v4124, 0.0
          %v4128 = vpack.c.bf16 %v2313, %v2313
          %v4129 = vld [vmem:[%s12] sm:$0xf]
          %v4130 = vld [vmem:[%s12 + $0x4] sm:$0xf]
          %v4131 = vld [vmem:[%s12 + $0x8] sm:$0xf]
          %v4132 = vld [vmem:[%s12 + $0xc] sm:$0xf]
          %v4133 = vld [vmem:[%s12 + $0x10] sm:$0xf]
          %v4134 = vld [vmem:[%s12 + $0x14] sm:$0xf]
          %v4135 = vld [vmem:[%s12 + $0x18] sm:$0x1]
          %v4136 = vpack.c.bf16 %v3968, %v3968
          %v4137 = vld [vmem:[%s13] sm:$0xf]
          %v4138 = vld [vmem:[%s13 + $0x4] sm:$0xf]
          %v4139 = vld [vmem:[%s13 + $0x8] sm:$0xf]
          %v4140 = vld [vmem:[%s13 + $0xc] sm:$0xf]
          %v4141 = vld [vmem:[%s13 + $0x10] sm:$0xf]
          %v4142 = vld [vmem:[%s13 + $0x14] sm:$0xf]
          %v4143 = vld [vmem:[%s13 + $0x18] sm:$0x1]
          %v4151 = vunpack.c.l.b16 %v4137
          %v4152 = vunpack.c.l.b16 %v4138
          %v4153 = vunpack.c.l.b16 %v4139
          %v4154 = vunpack.c.l.b16 %v4140
          %v4155 = vunpack.c.l.b16 %v4141
          %v4156 = vunpack.c.l.b16 %v4142
          %v4157 = vunpack.c.l.b16 %v4143
          %v4158 = vpack.c.b16 %v4152, %v4151
          %v4159 = vpack.c.b16 %v4154, %v4153
          %v4160 = vpack.c.b16 %v4156, %v4155
          %v4161 = vpack.c.b16 %v4157, %v4157
          %v4166 = vsel %vm2301, %v4136, 0
          %vm4168 = vcmask 1040384
          %v4170 = vsel %vm4168, %v4161, 0
          %4172 = vmatpush.bf16.msra.mxu0 0
          %4173 = vmatpush.bf16.msra.mxu0 0
          %4174 = vmatpush.bf16.msra.mxu0 0
          %4175 = vmatpush.bf16.msra.mxu0 0
          %4176 = vmatpush.bf16.msra.mxu0 %v4170
          %4177 = vmatpush.bf16.msra.mxu0 %v4160
          %4178 = vmatpush.bf16.msra.mxu0 %v4159
          %4179 = vmatpush.bf16.msra.mxu0 %v4158
          %4180 = vmatmul.bf16.gmra.mxu0 %v4166
          %v4181 = vpop.f32.mrf.mxu0
          %v4182 = vadd.f32 0.0, %v4181
          %v4183 = vpop.f32.mrf.mxu0
          %4184 = vdwg.mxu0
          %v4192 = vunpack.c.l.b16 %v4129
          %v4193 = vunpack.c.l.b16 %v4130
          %v4194 = vunpack.c.l.b16 %v4131
          %v4195 = vunpack.c.l.b16 %v4132
          %v4196 = vunpack.c.l.b16 %v4133
          %v4197 = vunpack.c.l.b16 %v4134
          %v4198 = vunpack.c.l.b16 %v4135
          %v4199 = vpack.c.b16 %v4193, %v4192
          %v4200 = vpack.c.b16 %v4195, %v4194
          %v4201 = vpack.c.b16 %v4197, %v4196
          %v4202 = vpack.c.b16 %v4198, %v4198
          %v4207 = vsel %vm2301, %v4128, 0
          %v4210 = vsel %vm4168, %v4202, 0
          %4212 = vmatpush.bf16.msra.mxu0 0
          %4213 = vmatpush.bf16.msra.mxu0 0
          %4214 = vmatpush.bf16.msra.mxu0 0
          %4215 = vmatpush.bf16.msra.mxu0 0
          %4216 = vmatpush.bf16.msra.mxu0 %v4210
          %4217 = vmatpush.bf16.msra.mxu0 %v4201
          %4218 = vmatpush.bf16.msra.mxu0 %v4200
          %4219 = vmatpush.bf16.msra.mxu0 %v4199
          %4220 = vmatmul.bf16.gmra.mxu0 %v4207
          %v4221 = vpop.f32.mrf.mxu0
          %v4222 = vadd.f32 %v4182, %v4221
          %v4223 = vpop.f32.mrf.mxu0
          %4224 = vdwg.mxu0
          %v4225 = vpack.c.bf16 %v4127, %v4127
          %v4226 = vld [vmem:[%s14] sm:$0xf]
          %v4227 = vld [vmem:[%s14 + $0x4] sm:$0xf]
          %v4228 = vld [vmem:[%s14 + $0x8] sm:$0xf]
          %v4229 = vld [vmem:[%s14 + $0xc] sm:$0xf]
          %v4230 = vld [vmem:[%s14 + $0x10] sm:$0xf]
          %v4231 = vld [vmem:[%s14 + $0x14] sm:$0xf]
          %v4232 = vld [vmem:[%s14 + $0x18] sm:$0x1]
          %v4240 = vunpack.c.l.b16 %v4226
          %v4241 = vunpack.c.l.b16 %v4227
          %v4242 = vunpack.c.l.b16 %v4228
          %v4243 = vunpack.c.l.b16 %v4229
          %v4244 = vunpack.c.l.b16 %v4230
          %v4245 = vunpack.c.l.b16 %v4231
          %v4246 = vunpack.c.l.b16 %v4232
          %v4247 = vpack.c.b16 %v4241, %v4240
          %v4248 = vpack.c.b16 %v4243, %v4242
          %v4249 = vpack.c.b16 %v4245, %v4244
          %v4250 = vpack.c.b16 %v4246, %v4246
          %v4255 = vsel %vm2301, %v4225, 0
          %v4258 = vsel %vm4168, %v4250, 0
          %4260 = vmatpush.bf16.msra.mxu0 0
          %4261 = vmatpush.bf16.msra.mxu0 0
          %4262 = vmatpush.bf16.msra.mxu0 0
          %4263 = vmatpush.bf16.msra.mxu0 0
          %4264 = vmatpush.bf16.msra.mxu0 %v4258
          %4265 = vmatpush.bf16.msra.mxu0 %v4249
          %4266 = vmatpush.bf16.msra.mxu0 %v4248
          %4267 = vmatpush.bf16.msra.mxu0 %v4247
          %4268 = vmatmul.bf16.gmra.mxu0 %v4255
          %v4269 = vpop.f32.mrf.mxu0
          %v4270 = vadd.f32 0.0, %v4269
          %v4271 = vpop.f32.mrf.mxu0
          %4272 = vdwg.mxu0
          %v4273 = vadd.f32 %v4222, %v4270
          %v4274 = vld [vmem:[%s15] sm:$0x1]
          %v4276 = vperm.slane %v4274, 0
          %v4278 = vadd.f32 %v4273, %v4276
          %v4279 = vmax.f32 %v4278, 0.0
          %v4280 = vpack.c.bf16 %v4279, %v4279
          %v4281 = vld [vmem:[%s16] sm:$0xf]
          %v4282 = vld [vmem:[%s16 + $0x4] sm:$0xf]
          %v4283 = vld [vmem:[%s16 + $0x8] sm:$0xf]
          %v4284 = vld [vmem:[%s16 + $0xc] sm:$0xf]
          %v4285 = vld [vmem:[%s16 + $0x10] sm:$0xf]
          %v4286 = vld [vmem:[%s16 + $0x14] sm:$0xf]
          %v4287 = vld [vmem:[%s16 + $0x18] sm:$0x1]
          %v4288 = vld [vmem:[%s17] sm:$0x1]
          %v4290 = vperm.slane %v4288, 0
          %v4299 = vunpack.c.l.b16 %v4281
          %v4300 = vunpack.c.l.b16 %v4282
          %v4301 = vunpack.c.l.b16 %v4283
          %v4302 = vunpack.c.l.b16 %v4284
          %v4303 = vunpack.c.l.b16 %v4285
          %v4304 = vunpack.c.l.b16 %v4286
          %v4305 = vunpack.c.l.b16 %v4287
          %v4306 = vpack.c.b16 %v4300, %v4299
          %v4307 = vpack.c.b16 %v4302, %v4301
          %v4308 = vpack.c.b16 %v4304, %v4303
          %v4309 = vpack.c.b16 %v4305, %v4305
          %v4314 = vsel %vm2301, %v4280, 0
          %v4317 = vsel %vm4168, %v4309, 0
          %4319 = vmatpush.bf16.msra.mxu0 0
          %4320 = vmatpush.bf16.msra.mxu0 0
          %4321 = vmatpush.bf16.msra.mxu0 0
          %4322 = vmatpush.bf16.msra.mxu0 0
          %4323 = vmatpush.bf16.msra.mxu0 %v4317
          %4324 = vmatpush.bf16.msra.mxu0 %v4308
          %4325 = vmatpush.bf16.msra.mxu0 %v4307
          %4326 = vmatpush.bf16.msra.mxu0 %v4306
          %4327 = vmatmul.bf16.gmra.mxu0 %v4314
          %v4328 = vpop.f32.mrf.mxu0
          %v4329 = vadd.f32 %v4290, %v4328
          %v4330 = vpop.f32.mrf.mxu0
          %4331 = vdwg.mxu0
          %4332 = vst [vmem:[#allocation3] sm:$0xff] %v4329
        $region100: #{tpu_custom_call.1} parent=91 // pred_fallthru
          _
        // Predicated region
        $region101: #{tpu_custom_call.1} parent=91 // pred_check
          %p4333 = pneg %p477
        $region102: #{tpu_custom_call.1} parent=91 // pred_check_branch
          %4335 = sbr.rel (%p4333) target = $region104
        $region103: #{tpu_custom_call.1} parent=91 // pred_region
          %4337 = vsyncadd [#allocation4], 0
          %s4338 = smul.addr %s34, 8
          %s4339 = scalar_lea.hbm %s18, %s4338
          %s4341 = sshll.u32 [#allocation3], 4
          %s4342 = int_to_ptr.vmem [resolvable:$true] %s4341
          %s4343 = sshll.u32 %s4339, 4
          %s4344 = int_to_ptr.hbm [resolvable:$true] %s4343
          %4346 = dma.vmem_to_hbm [thread:$0]  %s4342, 128, %s4344, [#allocation4]
        $region104: #{tpu_custom_call.1} parent=91 // pred_fallthru
          _
        // Predicated region
        $region105: #{tpu_custom_call.1} parent=91 // pred_check
          %p4347 = pneg %p477
        $region106: #{tpu_custom_call.1} parent=91 // pred_check_branch
          %4349 = sbr.rel (%p4347) target = $region108
        $region107: #{tpu_custom_call.1} parent=91 // pred_region
          %4351 = dma.done [#allocation4], 128
        $region108: #{tpu_custom_call.1} parent=91 // pred_fallthru
          _
      $region92: #{tpu_custom_call.1} parent=5 // pred_fallthru
        _
      %p4352 = scmp.le.s32.totalorder 2, %s25
      // Predicated region
      $region109: #{tpu_custom_call.1} parent=5 // pred_check
        %p4353 = pneg %p4352
      $region110: #{tpu_custom_call.1} parent=5 // pred_check_branch
        %4355 = sbr.rel (%p4353) target = $region112
      $region111: #{tpu_custom_call.1} parent=5 // pred_region
        %s4356 = ssub.s32 %s25, 2
      $region112: #{tpu_custom_call.1} parent=5 // pred_fallthru
        _
    $region6: #{tpu_custom_call.1} parent=1 // loop_footer
      %s29 = sadd.s32 1, %s25
    $region7: #{tpu_custom_call.1} parent=1 // loop_footer_branch
      %24 = sbr.rel target = $region3
    $region8: #{tpu_custom_call.1} parent=1 // loop_exit
      _
    %4357 = vsyncpa [#allocation4], 1
    %s4358 = scalar_lea.sflag [#allocation4], 1
    %4359 = vsyncpa %s4358, 1

</llo_original>
